<compile_context>
chip_gen: v6e
topology: v6e:2x2x1
jax: 0.10.0
libtpu: 0.0.40
codegen_flags: <defaults>
</compile_context>

<pallas_src>
import jax
import jax.numpy as jnp
from jax.experimental import pallas as pl
from jax.experimental.pallas import tpu as pltpu

IMG_SIZE = 28
IMG = IMG_SIZE * IMG_SIZE      # 784
IMG_PAD = 896                  # 7 * 128 -> lane-dense recon output
LATENT_DIM = 10
N_CLASSES = 10
LANE = 128                     # padded lane width for the packed eps/one-hot input


def _cvae_kernel(
    x_ref, c_ref,
    w1x_ref, w1y_ref, b1_ref, w2_ref, b2_ref,
    wmulv_ref, bmulv_ref,
    wd1_ref, bd1_ref, wd2_ref, bd2_ref, wd3_ref, bd3_ref,
    recon_ref, mulv_ref,
):
    f32, bf16 = jnp.float32, jnp.bfloat16

    x = x_ref[...]          # (TB, 784) bf16
    c = c_ref[...]          # (TB, 128) f32: eps at lanes [0,10), one-hot at [10,20)
    c_bf = c.astype(bf16)   # one-hot values (0/1) are exact in bf16

    # ---- encoder: concat([x, one_hot]) fused via split / lane-placed weights.
    # w1y rows [0,10) and [20,128) are zero, so the eps lanes contribute nothing.
    h1 = (jnp.dot(x, w1x_ref[...], preferred_element_type=f32)
          + jnp.dot(c_bf, w1y_ref[...], preferred_element_type=f32)
          + b1_ref[...])
    h1 = jnp.maximum(h1, 0.0).astype(bf16)

    h2 = jnp.dot(h1, w2_ref[...], preferred_element_type=f32) + b2_ref[...]
    h2 = jnp.maximum(h2, 0.0).astype(bf16)

    # ---- fused mu | log_var head: one N=256 dot.
    # mu at lanes [0,10), log_var at lanes [128,138); all other lanes exactly 0.
    mulv = jnp.dot(h2, wmulv_ref[...], preferred_element_type=f32) + bmulv_ref[...]
    mulv_ref[...] = mulv                      # single lane-dense f32 store

    mu = mulv[:, :LANE]                       # (TB, 128)
    lv = mulv[:, LANE:]                       # (TB, 128)

    # ---- reparameterize (f32).
    # lanes [0,10):  mu + eps * exp(0.5*log_var)
    # lanes [10,20): 0 + one_hot * exp(0)  ->  one_hot   (decoder concat for free)
    # lanes >= 20:   0 + 0 * exp(0)        ->  0
    z = mu + c * jnp.exp(0.5 * lv)
    zc = z.astype(bf16)                       # already equals concat([z, one_hot])

    # ---- decoder
    d1 = jnp.dot(zc, wd1_ref[...], preferred_element_type=f32) + bd1_ref[...]
    d1 = jnp.maximum(d1, 0.0).astype(bf16)
    d2 = jnp.dot(d1, wd2_ref[...], preferred_element_type=f32) + bd2_ref[...]
    d2 = jnp.maximum(d2, 0.0).astype(bf16)
    d3 = jnp.dot(d2, wd3_ref[...], preferred_element_type=f32) + bd3_ref[...]
    recon_ref[...] = jnp.tanh(d3).astype(bf16)   # (TB, 896) bf16; lanes >=784 are 0


def pack_params(params):
    """One-time layout transform: split/pad/fuse/cast weights into kernel layout."""
    (w1, b1, w2, b2, wmu, bmu, wlv, blv,
     wd1, bd1, wd2, bd2, wd3, bd3) = params
    f32, bf16 = jnp.float32, jnp.bfloat16

    w1x = w1[:IMG].astype(bf16)                                          # (784, 512)
    w1y = (jnp.zeros((LANE, 512), f32)
           .at[LATENT_DIM:LATENT_DIM + N_CLASSES].set(w1[IMG:])).astype(bf16)

    # Fused mu|log_var head: mu -> output lanes [0,10), log_var -> [128,138).
    wmulv = jnp.zeros((256, 2 * LANE), f32)
    wmulv = wmulv.at[:, :LATENT_DIM].set(wmu)
    wmulv = wmulv.at[:, LANE:LANE + LATENT_DIM].set(wlv)
    bmulv = jnp.zeros((1, 2 * LANE), f32)
    bmulv = bmulv.at[0, :LATENT_DIM].set(bmu)
    bmulv = bmulv.at[0, LANE:LANE + LATENT_DIM].set(blv)

    wd1_p = (jnp.zeros((LANE, 256), f32)
             .at[:LATENT_DIM + N_CLASSES].set(wd1)).astype(bf16)          # rows 0:20
    wd3_p = (jnp.zeros((512, IMG_PAD), f32).at[:, :IMG].set(wd3)).astype(bf16)
    bd3_p = jnp.zeros((1, IMG_PAD), f32).at[0, :IMG].set(bd3)

    return (w1x, w1y, b1.reshape(1, -1).astype(f32),
            w2.astype(bf16), b2.reshape(1, -1).astype(f32),
            wmulv.astype(bf16), bmulv,
            wd1_p, bd1.reshape(1, -1).astype(f32),
            wd2.astype(bf16), bd2.reshape(1, -1).astype(f32),
            wd3_p, bd3_p)


def _pick_tile(B: int) -> int:
    """Batch tile: big tiles (amortize per-step overhead), but >=2 grid steps
    when the batch allows it so both v7x TensorCores get work."""
    b8 = -(-B // 8) * 8            # round batch up to sublane multiple
    if b8 <= 16:
        return b8                  # tiny batch: single tile (block == full array)
    half = -(-b8 // 2)
    half = -(-half // 8) * 8       # half the batch, rounded up to sublanes
    return min(512, half)          # cap per-tile rows at 512


@jax.jit
def cvae_forward(x, y, eps, packed):
    """x: (B,1,28,28) f32, y: (B,) int32, eps: (B, LATENT_DIM) f32."""
    B = x.shape[0]
    TB = _pick_tile(B)
    B_pad = -(-B // TB) * TB

    x_flat = x.reshape(B, IMG).astype(jnp.bfloat16)
    yoh = jax.nn.one_hot(y, N_CLASSES, dtype=jnp.float32)
    # Single packed side input: eps at lanes [0,10), one-hot at [10,20), zeros after.
    comb = jnp.concatenate(
        [eps, yoh, jnp.zeros((B, LANE - LATENT_DIM - N_CLASSES), jnp.float32)],
        axis=1)

    if B_pad != B:
        pad = ((0, B_pad - B), (0, 0))
        x_flat = jnp.pad(x_flat, pad)
        comb = jnp.pad(comb, pad)

    batch_map = lambda i: (i, 0)
    const_map = lambda i: (0, 0)   # weights stay VMEM-resident across grid steps

    data_specs = [
        pl.BlockSpec((TB, IMG), batch_map),
        pl.BlockSpec((TB, LANE), batch_map),
    ]
    weight_specs = [pl.BlockSpec(w.shape, const_map) for w in packed]

    out_shapes = (
        jax.ShapeDtypeStruct((B_pad, IMG_PAD), jnp.bfloat16),   # bf16 recon
        jax.ShapeDtypeStruct((B_pad, 2 * LANE), jnp.float32),   # fused mu | log_var
    )
    out_specs = (
        pl.BlockSpec((TB, IMG_PAD), batch_map),
        pl.BlockSpec((TB, 2 * LANE), batch_map),
    )

    recon_pad, mulv_pad = pl.pallas_call(
        _cvae_kernel,
        out_shape=out_shapes,
        grid=(B_pad // TB,),
        in_specs=data_specs + weight_specs,
        out_specs=out_specs,
        compiler_params=pltpu.CompilerParams(
            dimension_semantics=("parallel",),
            vmem_limit_bytes=32 << 20,   # plenty for TB=512 with bf16 recon
        ),
    )(x_flat, comb, *packed)

    recon = recon_pad[:B, :IMG].astype(jnp.float32).reshape(B, 1, IMG_SIZE, IMG_SIZE)
    mu = mulv_pad[:B, :LATENT_DIM]
    log_var = mulv_pad[:B, LANE:LANE + LATENT_DIM]
    return recon, mu, log_var


def init_params(key):
    """nn.Linear-style init (U[-1/sqrt(fan_in), 1/sqrt(fan_in)]).
    Weights stored as (in_features, out_features), f32."""
    dims = [
        (IMG + N_CLASSES, 512), (512, 256),                      # encoder
        (256, LATENT_DIM), (256, LATENT_DIM),                    # fc_mu, fc_log_var
        (LATENT_DIM + N_CLASSES, 256), (256, 512), (512, IMG),   # decoder
    ]
    params = []
    for (fan_in, fan_out) in dims:
        key, kw, kb = jax.random.split(key, 3)
        bound = 1.0 / jnp.sqrt(jnp.float32(fan_in))
        w = jax.random.uniform(kw, (fan_in, fan_out), jnp.float32, -bound, bound)
        b = jax.random.uniform(kb, (fan_out,), jnp.float32, -bound, bound)
        params += [w, b]
    return tuple(params)


def reference_forward(x, y, eps, params):
    """Pure-JAX f32 reference matching the PyTorch module."""
    (w1, b1, w2, b2, wmu, bmu, wlv, blv,
     wd1, bd1, wd2, bd2, wd3, bd3) = params
    B = x.shape[0]
    x_flat = x.reshape(B, -1)
    yoh = jax.nn.one_hot(y, N_CLASSES, dtype=jnp.float32)
    c = jnp.concatenate([x_flat, yoh], axis=1)
    h = jax.nn.relu(c @ w1 + b1)
    h = jax.nn.relu(h @ w2 + b2)
    mu = h @ wmu + bmu
    lv = h @ wlv + blv
    z = mu + eps * jnp.exp(0.5 * lv)
    zc = jnp.concatenate([z, yoh], axis=1)
    d = jax.nn.relu(zc @ wd1 + bd1)
    d = jax.nn.relu(d @ wd2 + bd2)
    recon = jnp.tanh(d @ wd3 + bd3).reshape(B, 1, IMG_SIZE, IMG_SIZE)
    return recon, mu, lv


def _check(B, k_params, params, packed, seed):
    kx, ky, ke = jax.random.split(jax.random.PRNGKey(seed), 3)
    x = jax.random.normal(kx, (B, 1, IMG_SIZE, IMG_SIZE), jnp.float32)
    y = jax.random.randint(ky, (B,), 0, N_CLASSES, jnp.int32)
    # eps is generated outside the kernel so the result is deterministic.
    eps = jax.random.normal(ke, (B, LATENT_DIM), jnp.float32)

    recon, mu, log_var = cvae_forward(x, y, eps, packed)
    jax.block_until_ready((recon, mu, log_var))

    r_recon, r_mu, r_lv = reference_forward(x, y, eps, params)
    assert recon.shape == (B, 1, IMG_SIZE, IMG_SIZE) and recon.dtype == jnp.float32
    assert mu.shape == (B, LATENT_DIM) and log_var.shape == (B, LATENT_DIM)
    # bf16 weights/activations + bf16 recon store -> relaxed tolerance vs f32 ref.
    assert jnp.allclose(mu, r_mu, atol=5e-2, rtol=5e-2)
    assert jnp.allclose(log_var, r_lv, atol=5e-2, rtol=5e-2)
    assert jnp.allclose(recon, r_recon, atol=5e-2, rtol=5e-2)


if __name__ == "__main__":
    k_params = jax.random.PRNGKey(0)
    params = init_params(k_params)
    packed = pack_params(params)          # one-time bf16/padded/fused layout

    _check(2, k_params, params, packed, seed=1)    # tiny batch, single-tile grid
    _check(48, k_params, params, packed, seed=2)   # multi-tile grid (2 steps)

    print("KERNEL_OK")
</pallas_src>

<mosaic_0001>
module attributes {stable_mosaic.version = 11 : i64} {
  func.func @_cvae_kernel(%arg0: i32, %arg1: memref<8x784xbf16, #tpu.memory_space<vmem>>, %arg2: memref<8x128xf32, #tpu.memory_space<vmem>>, %arg3: memref<784x512xbf16, #tpu.memory_space<vmem>>, %arg4: memref<128x512xbf16, #tpu.memory_space<vmem>>, %arg5: memref<1x512xf32, #tpu.memory_space<vmem>>, %arg6: memref<512x256xbf16, #tpu.memory_space<vmem>>, %arg7: memref<1x256xf32, #tpu.memory_space<vmem>>, %arg8: memref<256x256xbf16, #tpu.memory_space<vmem>>, %arg9: memref<1x256xf32, #tpu.memory_space<vmem>>, %arg10: memref<128x256xbf16, #tpu.memory_space<vmem>>, %arg11: memref<1x256xf32, #tpu.memory_space<vmem>>, %arg12: memref<256x512xbf16, #tpu.memory_space<vmem>>, %arg13: memref<1x512xf32, #tpu.memory_space<vmem>>, %arg14: memref<512x896xbf16, #tpu.memory_space<vmem>>, %arg15: memref<1x896xf32, #tpu.memory_space<vmem>>, %arg16: memref<8x896xbf16, #tpu.memory_space<vmem>>, %arg17: memref<8x256xf32, #tpu.memory_space<vmem>>) attributes {dimension_semantics = [#tpu.dimension_semantics<parallel>], iteration_bounds = array<i64: 1>, scalar_prefetch = 0 : i64, scratch_operands = 0 : i64, tpu.core_type = #tpu.core_type<tc>, window_params = [{transform_indices = @transform_0, window_bounds = array<i64: 8, 784>}, {transform_indices = @transform_1, window_bounds = array<i64: 8, 128>}, {pipeline_mode = #tpu.pipeline_mode<synchronous>, transform_indices = @transform_2, window_bounds = array<i64: 784, 512>}, {pipeline_mode = #tpu.pipeline_mode<synchronous>, transform_indices = @transform_3, window_bounds = array<i64: 128, 512>}, {pipeline_mode = #tpu.pipeline_mode<synchronous>, transform_indices = @transform_4, window_bounds = array<i64: 1, 512>}, {pipeline_mode = #tpu.pipeline_mode<synchronous>, transform_indices = @transform_5, window_bounds = array<i64: 512, 256>}, {pipeline_mode = #tpu.pipeline_mode<synchronous>, transform_indices = @transform_6, window_bounds = array<i64: 1, 256>}, {pipeline_mode = #tpu.pipeline_mode<synchronous>, transform_indices = @transform_7, window_bounds = array<i64: 256, 256>}, {pipeline_mode = #tpu.pipeline_mode<synchronous>, transform_indices = @transform_8, window_bounds = array<i64: 1, 256>}, {pipeline_mode = #tpu.pipeline_mode<synchronous>, transform_indices = @transform_9, window_bounds = array<i64: 128, 256>}, {pipeline_mode = #tpu.pipeline_mode<synchronous>, transform_indices = @transform_10, window_bounds = array<i64: 1, 256>}, {pipeline_mode = #tpu.pipeline_mode<synchronous>, transform_indices = @transform_11, window_bounds = array<i64: 256, 512>}, {pipeline_mode = #tpu.pipeline_mode<synchronous>, transform_indices = @transform_12, window_bounds = array<i64: 1, 512>}, {pipeline_mode = #tpu.pipeline_mode<synchronous>, transform_indices = @transform_13, window_bounds = array<i64: 512, 896>}, {pipeline_mode = #tpu.pipeline_mode<synchronous>, transform_indices = @transform_14, window_bounds = array<i64: 1, 896>}, {transform_indices = @transform_15, window_bounds = array<i64: 8, 896>}, {transform_indices = @transform_16, window_bounds = array<i64: 8, 256>}]} {
    %c0 = arith.constant 0 : index
    %c0_0 = arith.constant 0 : index
    %0 = vector.load %arg1[%c0, %c0_0] : memref<8x784xbf16, #tpu.memory_space<vmem>>, vector<8x784xbf16>
    %c0_1 = arith.constant 0 : index
    %c0_2 = arith.constant 0 : index
    %1 = vector.load %arg2[%c0_1, %c0_2] : memref<8x128xf32, #tpu.memory_space<vmem>>, vector<8x128xf32>
    %2 = arith.truncf %1 : vector<8x128xf32> to vector<8x128xbf16>
    %c0_3 = arith.constant 0 : index
    %c0_4 = arith.constant 0 : index
    %3 = vector.load %arg3[%c0_3, %c0_4] : memref<784x512xbf16, #tpu.memory_space<vmem>>, vector<784x512xbf16>
    %cst = arith.constant dense<0.000000e+00> : vector<8x512xf32>
    %4 = tpu.matmul %0, %3, %cst {dimension_numbers = #tpu.dot_dimension_numbers<[1], [0], [0], [1], [0, 0, 1, 1], [], []>} : vector<8x784xbf16>, vector<784x512xbf16>, vector<8x512xf32> -> vector<8x512xf32>
    %c0_5 = arith.constant 0 : index
    %c0_6 = arith.constant 0 : index
    %5 = vector.load %arg4[%c0_5, %c0_6] : memref<128x512xbf16, #tpu.memory_space<vmem>>, vector<128x512xbf16>
    %cst_7 = arith.constant dense<0.000000e+00> : vector<8x512xf32>
    %6 = tpu.matmul %2, %5, %cst_7 {dimension_numbers = #tpu.dot_dimension_numbers<[1], [0], [0], [1], [0, 0, 1, 1], [], []>} : vector<8x128xbf16>, vector<128x512xbf16>, vector<8x512xf32> -> vector<8x512xf32>
    %7 = arith.addf %4, %6 : vector<8x512xf32>
    %c0_8 = arith.constant 0 : index
    %c0_9 = arith.constant 0 : index
    %8 = vector.load %arg5[%c0_8, %c0_9] : memref<1x512xf32, #tpu.memory_space<vmem>>, vector<1x512xf32>
    %9 = vector.broadcast %8 : vector<1x512xf32> to vector<8x512xf32>
    %10 = arith.addf %7, %9 : vector<8x512xf32>
    %cst_10 = arith.constant 0.000000e+00 : f32
    %11 = vector.broadcast %cst_10 : f32 to vector<8x512xf32>
    %12 = arith.maximumf %10, %11 : vector<8x512xf32>
    %13 = arith.truncf %12 : vector<8x512xf32> to vector<8x512xbf16>
    %c0_11 = arith.constant 0 : index
    %c0_12 = arith.constant 0 : index
    %14 = vector.load %arg6[%c0_11, %c0_12] : memref<512x256xbf16, #tpu.memory_space<vmem>>, vector<512x256xbf16>
    %cst_13 = arith.constant dense<0.000000e+00> : vector<8x256xf32>
    %15 = tpu.matmul %13, %14, %cst_13 {dimension_numbers = #tpu.dot_dimension_numbers<[1], [0], [0], [1], [0, 0, 1, 1], [], []>} : vector<8x512xbf16>, vector<512x256xbf16>, vector<8x256xf32> -> vector<8x256xf32>
    %c0_14 = arith.constant 0 : index
    %c0_15 = arith.constant 0 : index
    %16 = vector.load %arg7[%c0_14, %c0_15] : memref<1x256xf32, #tpu.memory_space<vmem>>, vector<1x256xf32>
    %17 = vector.broadcast %16 : vector<1x256xf32> to vector<8x256xf32>
    %18 = arith.addf %15, %17 : vector<8x256xf32>
    %cst_16 = arith.constant 0.000000e+00 : f32
    %19 = vector.broadcast %cst_16 : f32 to vector<8x256xf32>
    %20 = arith.maximumf %18, %19 : vector<8x256xf32>
    %21 = arith.truncf %20 : vector<8x256xf32> to vector<8x256xbf16>
    %c0_17 = arith.constant 0 : index
    %c0_18 = arith.constant 0 : index
    %22 = vector.load %arg8[%c0_17, %c0_18] : memref<256x256xbf16, #tpu.memory_space<vmem>>, vector<256x256xbf16>
    %cst_19 = arith.constant dense<0.000000e+00> : vector<8x256xf32>
    %23 = tpu.matmul %21, %22, %cst_19 {dimension_numbers = #tpu.dot_dimension_numbers<[1], [0], [0], [1], [0, 0, 1, 1], [], []>} : vector<8x256xbf16>, vector<256x256xbf16>, vector<8x256xf32> -> vector<8x256xf32>
    %c0_20 = arith.constant 0 : index
    %c0_21 = arith.constant 0 : index
    %24 = vector.load %arg9[%c0_20, %c0_21] : memref<1x256xf32, #tpu.memory_space<vmem>>, vector<1x256xf32>
    %25 = vector.broadcast %24 : vector<1x256xf32> to vector<8x256xf32>
    %26 = arith.addf %23, %25 : vector<8x256xf32>
    %c0_22 = arith.constant 0 : index
    %c0_23 = arith.constant 0 : index
    %27 = vector.load %arg17[%c0_22, %c0_23] : memref<8x256xf32, #tpu.memory_space<vmem>>, vector<8x256xf32>
    tpu.vector_store %arg17[%c0_22, %c0_23], %26 {strides = array<i32>} : memref<8x256xf32, #tpu.memory_space<vmem>>, vector<8x256xf32>,
    %28 = vector.extract_strided_slice %26 {offsets = [0, 0], sizes = [8, 128], strides = [1, 1]} : vector<8x256xf32> to vector<8x128xf32>
    %29 = vector.extract_strided_slice %26 {offsets = [0, 128], sizes = [8, 128], strides = [1, 1]} : vector<8x256xf32> to vector<8x128xf32>
    %cst_24 = arith.constant 5.000000e-01 : f32
    %30 = vector.broadcast %cst_24 : f32 to vector<8x128xf32>
    %31 = arith.mulf %30, %29 : vector<8x128xf32>
    %32 = math.exp %31 : vector<8x128xf32>
    %33 = arith.mulf %1, %32 : vector<8x128xf32>
    %34 = arith.addf %28, %33 : vector<8x128xf32>
    %35 = arith.truncf %34 : vector<8x128xf32> to vector<8x128xbf16>
    %c0_25 = arith.constant 0 : index
    %c0_26 = arith.constant 0 : index
    %36 = vector.load %arg10[%c0_25, %c0_26] : memref<128x256xbf16, #tpu.memory_space<vmem>>, vector<128x256xbf16>
    %cst_27 = arith.constant dense<0.000000e+00> : vector<8x256xf32>
    %37 = tpu.matmul %35, %36, %cst_27 {dimension_numbers = #tpu.dot_dimension_numbers<[1], [0], [0], [1], [0, 0, 1, 1], [], []>} : vector<8x128xbf16>, vector<128x256xbf16>, vector<8x256xf32> -> vector<8x256xf32>
    %c0_28 = arith.constant 0 : index
    %c0_29 = arith.constant 0 : index
    %38 = vector.load %arg11[%c0_28, %c0_29] : memref<1x256xf32, #tpu.memory_space<vmem>>, vector<1x256xf32>
    %39 = vector.broadcast %38 : vector<1x256xf32> to vector<8x256xf32>
    %40 = arith.addf %37, %39 : vector<8x256xf32>
    %cst_30 = arith.constant 0.000000e+00 : f32
    %41 = vector.broadcast %cst_30 : f32 to vector<8x256xf32>
    %42 = arith.maximumf %40, %41 : vector<8x256xf32>
    %43 = arith.truncf %42 : vector<8x256xf32> to vector<8x256xbf16>
    %c0_31 = arith.constant 0 : index
    %c0_32 = arith.constant 0 : index
    %44 = vector.load %arg12[%c0_31, %c0_32] : memref<256x512xbf16, #tpu.memory_space<vmem>>, vector<256x512xbf16>
    %cst_33 = arith.constant dense<0.000000e+00> : vector<8x512xf32>
    %45 = tpu.matmul %43, %44, %cst_33 {dimension_numbers = #tpu.dot_dimension_numbers<[1], [0], [0], [1], [0, 0, 1, 1], [], []>} : vector<8x256xbf16>, vector<256x512xbf16>, vector<8x512xf32> -> vector<8x512xf32>
    %c0_34 = arith.constant 0 : index
    %c0_35 = arith.constant 0 : index
    %46 = vector.load %arg13[%c0_34, %c0_35] : memref<1x512xf32, #tpu.memory_space<vmem>>, vector<1x512xf32>
    %47 = vector.broadcast %46 : vector<1x512xf32> to vector<8x512xf32>
    %48 = arith.addf %45, %47 : vector<8x512xf32>
    %cst_36 = arith.constant 0.000000e+00 : f32
    %49 = vector.broadcast %cst_36 : f32 to vector<8x512xf32>
    %50 = arith.maximumf %48, %49 : vector<8x512xf32>
    %51 = arith.truncf %50 : vector<8x512xf32> to vector<8x512xbf16>
    %c0_37 = arith.constant 0 : index
    %c0_38 = arith.constant 0 : index
    %52 = vector.load %arg14[%c0_37, %c0_38] : memref<512x896xbf16, #tpu.memory_space<vmem>>, vector<512x896xbf16>
    %cst_39 = arith.constant dense<0.000000e+00> : vector<8x896xf32>
    %53 = tpu.matmul %51, %52, %cst_39 {dimension_numbers = #tpu.dot_dimension_numbers<[1], [0], [0], [1], [0, 0, 1, 1], [], []>} : vector<8x512xbf16>, vector<512x896xbf16>, vector<8x896xf32> -> vector<8x896xf32>
    %c0_40 = arith.constant 0 : index
    %c0_41 = arith.constant 0 : index
    %54 = vector.load %arg15[%c0_40, %c0_41] : memref<1x896xf32, #tpu.memory_space<vmem>>, vector<1x896xf32>
    %55 = vector.broadcast %54 : vector<1x896xf32> to vector<8x896xf32>
    %56 = arith.addf %53, %55 : vector<8x896xf32>
    %57 = math.tanh %56 : vector<8x896xf32>
    %58 = arith.truncf %57 : vector<8x896xf32> to vector<8x896xbf16>
    %c0_42 = arith.constant 0 : index
    %c0_43 = arith.constant 0 : index
    %59 = vector.load %arg16[%c0_42, %c0_43] : memref<8x896xbf16, #tpu.memory_space<vmem>>, vector<8x896xbf16>
    tpu.vector_store %arg16[%c0_42, %c0_43], %58 {strides = array<i32>} : memref<8x896xbf16, #tpu.memory_space<vmem>>, vector<8x896xbf16>,
    return
  }
  func.func @transform_0(%arg0: i32) -> (i32, i32) {
    %c0_i32 = arith.constant 0 : i32
    %c0_i32_0 = arith.constant 0 : i32
    return %arg0, %c0_i32 : i32, i32
  }
  func.func @transform_1(%arg0: i32) -> (i32, i32) {
    %c0_i32 = arith.constant 0 : i32
    %c0_i32_0 = arith.constant 0 : i32
    return %arg0, %c0_i32 : i32, i32
  }
  func.func @transform_2(%arg0: i32) -> (i32, i32) {
    %c0_i32 = arith.constant 0 : i32
    %c0_i32_0 = arith.constant 0 : i32
    %c0_i32_1 = arith.constant 0 : i32
    return %c0_i32, %c0_i32_0 : i32, i32
  }
  func.func @transform_3(%arg0: i32) -> (i32, i32) {
    %c0_i32 = arith.constant 0 : i32
    %c0_i32_0 = arith.constant 0 : i32
    %c0_i32_1 = arith.constant 0 : i32
    return %c0_i32, %c0_i32_0 : i32, i32
  }
  func.func @transform_4(%arg0: i32) -> (i32, i32) {
    %c0_i32 = arith.constant 0 : i32
    %c0_i32_0 = arith.constant 0 : i32
    %c0_i32_1 = arith.constant 0 : i32
    return %c0_i32, %c0_i32_0 : i32, i32
  }
  func.func @transform_5(%arg0: i32) -> (i32, i32) {
    %c0_i32 = arith.constant 0 : i32
    %c0_i32_0 = arith.constant 0 : i32
    %c0_i32_1 = arith.constant 0 : i32
    return %c0_i32, %c0_i32_0 : i32, i32
  }
  func.func @transform_6(%arg0: i32) -> (i32, i32) {
    %c0_i32 = arith.constant 0 : i32
    %c0_i32_0 = arith.constant 0 : i32
    %c0_i32_1 = arith.constant 0 : i32
    return %c0_i32, %c0_i32_0 : i32, i32
  }
  func.func @transform_7(%arg0: i32) -> (i32, i32) {
    %c0_i32 = arith.constant 0 : i32
    %c0_i32_0 = arith.constant 0 : i32
    %c0_i32_1 = arith.constant 0 : i32
    return %c0_i32, %c0_i32_0 : i32, i32
  }
  func.func @transform_8(%arg0: i32) -> (i32, i32) {
    %c0_i32 = arith.constant 0 : i32
    %c0_i32_0 = arith.constant 0 : i32
    %c0_i32_1 = arith.constant 0 : i32
    return %c0_i32, %c0_i32_0 : i32, i32
  }
  func.func @transform_9(%arg0: i32) -> (i32, i32) {
    %c0_i32 = arith.constant 0 : i32
    %c0_i32_0 = arith.constant 0 : i32
    %c0_i32_1 = arith.constant 0 : i32
    return %c0_i32, %c0_i32_0 : i32, i32
  }
  func.func @transform_10(%arg0: i32) -> (i32, i32) {
    %c0_i32 = arith.constant 0 : i32
    %c0_i32_0 = arith.constant 0 : i32
    %c0_i32_1 = arith.constant 0 : i32
    return %c0_i32, %c0_i32_0 : i32, i32
  }
  func.func @transform_11(%arg0: i32) -> (i32, i32) {
    %c0_i32 = arith.constant 0 : i32
    %c0_i32_0 = arith.constant 0 : i32
    %c0_i32_1 = arith.constant 0 : i32
    return %c0_i32, %c0_i32_0 : i32, i32
  }
  func.func @transform_12(%arg0: i32) -> (i32, i32) {
    %c0_i32 = arith.constant 0 : i32
    %c0_i32_0 = arith.constant 0 : i32
    %c0_i32_1 = arith.constant 0 : i32
    return %c0_i32, %c0_i32_0 : i32, i32
  }
  func.func @transform_13(%arg0: i32) -> (i32, i32) {
    %c0_i32 = arith.constant 0 : i32
    %c0_i32_0 = arith.constant 0 : i32
    %c0_i32_1 = arith.constant 0 : i32
    return %c0_i32, %c0_i32_0 : i32, i32
  }
  func.func @transform_14(%arg0: i32) -> (i32, i32) {
    %c0_i32 = arith.constant 0 : i32
    %c0_i32_0 = arith.constant 0 : i32
    %c0_i32_1 = arith.constant 0 : i32
    return %c0_i32, %c0_i32_0 : i32, i32
  }
  func.func @transform_15(%arg0: i32) -> (i32, i32) {
    %c0_i32 = arith.constant 0 : i32
    %c0_i32_0 = arith.constant 0 : i32
    return %arg0, %c0_i32 : i32, i32
  }
  func.func @transform_16(%arg0: i32) -> (i32, i32) {
    %c0_i32 = arith.constant 0 : i32
    %c0_i32_0 = arith.constant 0 : i32
    return %arg0, %c0_i32 : i32, i32
  }
}

</mosaic_0001>

<llo_original>
// kernel: cvae_forward.1
$region0: #{cvae_forward.1}
  #allocation0 [shape = 'u32[]', space=smem, size = 0x4, offset = 0x4, fixed_abs, tag = 'smem constant byte address 0x4 - core index']
  #allocation1 [shape = 'u32[144,128]{1,0:T(1,128)}', space=vmem, size = 0x12000, scoped, tag = 'internal scratch']
  %s0 = inlined_call_operand.vmem [shape: bf16[8,784], index: 0, kind: input, shape index: {}]
  %s1 = inlined_call_operand.vmem [shape: f32[8,128], index: 1, kind: input, shape index: {}]
  %s2 = inlined_call_operand.hbm [shape: bf16[784,512], index: 2, kind: input, shape index: {}]
  %s3 = inlined_call_operand.hbm [shape: bf16[128,512], index: 3, kind: input, shape index: {}]
  %s4 = inlined_call_operand.vmem [shape: f32[1,512], index: 4, kind: input, shape index: {}]
  %s5 = inlined_call_operand.hbm [shape: bf16[512,256], index: 5, kind: input, shape index: {}]
  %s6 = inlined_call_operand.vmem [shape: f32[1,256], index: 6, kind: input, shape index: {}]
  %s7 = inlined_call_operand.hbm [shape: bf16[256,256], index: 7, kind: input, shape index: {}]
  %s8 = inlined_call_operand.vmem [shape: f32[1,256], index: 8, kind: input, shape index: {}]
  %s9 = inlined_call_operand.vmem [shape: bf16[128,256], index: 9, kind: input, shape index: {}]
  %s10 = inlined_call_operand.vmem [shape: f32[1,256], index: 10, kind: input, shape index: {}]
  %s11 = inlined_call_operand.hbm [shape: bf16[256,512], index: 11, kind: input, shape index: {}]
  %s12 = inlined_call_operand.vmem [shape: f32[1,512], index: 12, kind: input, shape index: {}]
  %s13 = inlined_call_operand.hbm [shape: bf16[512,896], index: 13, kind: input, shape index: {}]
  %s14 = inlined_call_operand.vmem [shape: f32[1,896], index: 14, kind: input, shape index: {}]
  %s15 = inlined_call_operand.vmem [shape: bf16[8,896], index: 15, kind: output, shape index: {0}]
  %s16 = inlined_call_operand.vmem [shape: f32[8,256], index: 16, kind: output, shape index: {1}]
  %17 = xla_tuple %s15, %s16
  %s18 = sld [smem:[#allocation0]]
  $region102: #{cvae_forward.1} parent=0
    _
  %s20 = ssub.s32 1, %s18
  %s21 = scalar_select 0, %s20, %s18
  $region1: #{cvae_forward.1} parent=0
    #allocation2 [shape = 'u8[802816]{0}', space=vmem, size = 0xc4000, scoped, tag = 'input window, operand 2, single buffered']
    #allocation3 [shape = 's32[1]{0}', space=sflag, size = 0x4, scoped, tag = 'scoped memory for cvae_forward.1']
    #allocation4 [shape = 'u8[131072]{0}', space=vmem, size = 0x20000, scoped, tag = 'input window, operand 3, single buffered']
    #allocation5 [shape = 's32[1]{0}', space=sflag, size = 0x4, scoped, tag = 'scoped memory for cvae_forward.1']
    #allocation6 [shape = 'u8[262144]{0}', space=vmem, size = 0x40000, scoped, tag = 'input window, operand 5, single buffered']
    #allocation7 [shape = 'u8[131072]{0}', space=vmem, size = 0x20000, scoped, tag = 'input window, operand 7, single buffered']
    #allocation8 [shape = 's32[1]{0}', space=sflag, size = 0x4, scoped, tag = 'scoped memory for cvae_forward.1']
    #allocation9 [shape = 'u8[262144]{0}', space=vmem, size = 0x40000, scoped, tag = 'input window, operand 11, single buffered']
    #allocation10 [shape = 'u8[917504]{0}', space=vmem, size = 0xe0000, scoped, tag = 'input window, operand 13, single buffered']
    #allocation11 [shape = 's32[1]{0}', space=sflag, size = 0x4, scoped, tag = 'scoped memory for cvae_forward.1']
    %22 = vsyncpa [#allocation3], 0
    %23 = vsyncpa [#allocation5], 0
    %24 = vsyncpa [#allocation8], 0
    %25 = vsyncpa [#allocation11], 0
    // Predicated region
    $region2: #{cvae_forward.1} parent=1 // pred_check
      _
    $region3: #{cvae_forward.1} parent=1 // pred_check_branch
      %27 = sbr.rel (0) target = $region5
    $region4: #{cvae_forward.1} parent=1 // pred_region
      _
    $region5: #{cvae_forward.1} parent=1 // pred_fallthru
      _
    // Predicated region
    $region6: #{cvae_forward.1} parent=1 // pred_check
      _
    $region7: #{cvae_forward.1} parent=1 // pred_check_branch
      %29 = sbr.rel (0) target = $region9
    $region8: #{cvae_forward.1} parent=1 // pred_region
      _
    $region9: #{cvae_forward.1} parent=1 // pred_fallthru
      _
    // Predicated region
    $region10: #{cvae_forward.1} parent=1 // pred_check
      _
    $region11: #{cvae_forward.1} parent=1 // pred_check_branch
      %31 = sbr.rel (0) target = $region13
    $region12: #{cvae_forward.1} parent=1 // pred_region
      %s33 = ssub.s32 25088, 25088
      %34 = vsyncadd [#allocation3], %s33
      %s35 = sshll.u32 [#allocation2], 4
      %s36 = int_to_ptr.vmem [resolvable:$true] %s35
      %41 = dma.hbm_to_vmem [thread:$0]  %s2, 25088, %s36, [#allocation3], 256, 256, 16
    $region13: #{cvae_forward.1} parent=1 // pred_fallthru
      _
    // Predicated region
    $region14: #{cvae_forward.1} parent=1 // pred_check
      _
    $region15: #{cvae_forward.1} parent=1 // pred_check_branch
      %43 = sbr.rel (0) target = $region17
    $region16: #{cvae_forward.1} parent=1 // pred_region
      %s45 = ssub.s32 4096, 4096
      %46 = vsyncadd [#allocation5], %s45
      %s47 = sshll.u32 [#allocation4], 4
      %s48 = int_to_ptr.vmem [resolvable:$true] %s47
      %53 = dma.hbm_to_vmem [thread:$0]  %s3, 4096, %s48, [#allocation5], 256, 256, 16
    $region17: #{cvae_forward.1} parent=1 // pred_fallthru
      _
    // Predicated region
    $region18: #{cvae_forward.1} parent=1 // pred_check
      _
    $region19: #{cvae_forward.1} parent=1 // pred_check_branch
      %55 = sbr.rel (0) target = $region21
    $region20: #{cvae_forward.1} parent=1 // pred_region
      _
    $region21: #{cvae_forward.1} parent=1 // pred_fallthru
      _
    // Predicated region
    $region22: #{cvae_forward.1} parent=1 // pred_check
      _
    $region23: #{cvae_forward.1} parent=1 // pred_check_branch
      %57 = sbr.rel (0) target = $region25
    $region24: #{cvae_forward.1} parent=1 // pred_region
      %s59 = ssub.s32 8192, 8192
      %60 = vsyncadd [#allocation5], %s59
      %s61 = sshll.u32 [#allocation6], 4
      %s62 = int_to_ptr.vmem [resolvable:$true] %s61
      %67 = dma.hbm_to_vmem [thread:$0]  %s5, 8192, %s62, [#allocation5], 128, 128, 8
    $region25: #{cvae_forward.1} parent=1 // pred_fallthru
      _
    // Predicated region
    $region26: #{cvae_forward.1} parent=1 // pred_check
      _
    $region27: #{cvae_forward.1} parent=1 // pred_check_branch
      %69 = sbr.rel (0) target = $region29
    $region28: #{cvae_forward.1} parent=1 // pred_region
      _
    $region29: #{cvae_forward.1} parent=1 // pred_fallthru
      _
    // Predicated region
    $region30: #{cvae_forward.1} parent=1 // pred_check
      _
    $region31: #{cvae_forward.1} parent=1 // pred_check_branch
      %71 = sbr.rel (0) target = $region33
    $region32: #{cvae_forward.1} parent=1 // pred_region
      %s73 = ssub.s32 4096, 4096
      %74 = vsyncadd [#allocation8], %s73
      %s75 = sshll.u32 [#allocation7], 4
      %s76 = int_to_ptr.vmem [resolvable:$true] %s75
      %81 = dma.hbm_to_vmem [thread:$0]  %s7, 4096, %s76, [#allocation8], 128, 128, 8
    $region33: #{cvae_forward.1} parent=1 // pred_fallthru
      _
    // Predicated region
    $region34: #{cvae_forward.1} parent=1 // pred_check
      _
    $region35: #{cvae_forward.1} parent=1 // pred_check_branch
      %83 = sbr.rel (0) target = $region37
    $region36: #{cvae_forward.1} parent=1 // pred_region
      _
    $region37: #{cvae_forward.1} parent=1 // pred_fallthru
      _
    // Predicated region
    $region38: #{cvae_forward.1} parent=1 // pred_check
      _
    $region39: #{cvae_forward.1} parent=1 // pred_check_branch
      %85 = sbr.rel (0) target = $region41
    $region40: #{cvae_forward.1} parent=1 // pred_region
      _
    $region41: #{cvae_forward.1} parent=1 // pred_fallthru
      _
    // Predicated region
    $region42: #{cvae_forward.1} parent=1 // pred_check
      _
    $region43: #{cvae_forward.1} parent=1 // pred_check_branch
      %87 = sbr.rel (0) target = $region45
    $region44: #{cvae_forward.1} parent=1 // pred_region
      _
    $region45: #{cvae_forward.1} parent=1 // pred_fallthru
      _
    // Predicated region
    $region46: #{cvae_forward.1} parent=1 // pred_check
      _
    $region47: #{cvae_forward.1} parent=1 // pred_check_branch
      %89 = sbr.rel (0) target = $region49
    $region48: #{cvae_forward.1} parent=1 // pred_region
      %s91 = ssub.s32 8192, 8192
      %92 = vsyncadd [#allocation8], %s91
      %s93 = sshll.u32 [#allocation9], 4
      %s94 = int_to_ptr.vmem [resolvable:$true] %s93
      %99 = dma.hbm_to_vmem [thread:$0]  %s11, 8192, %s94, [#allocation8], 256, 256, 16
    $region49: #{cvae_forward.1} parent=1 // pred_fallthru
      _
    // Predicated region
    $region50: #{cvae_forward.1} parent=1 // pred_check
      _
    $region51: #{cvae_forward.1} parent=1 // pred_check_branch
      %101 = sbr.rel (0) target = $region53
    $region52: #{cvae_forward.1} parent=1 // pred_region
      _
    $region53: #{cvae_forward.1} parent=1 // pred_fallthru
      _
    // Predicated region
    $region54: #{cvae_forward.1} parent=1 // pred_check
      _
    $region55: #{cvae_forward.1} parent=1 // pred_check_branch
      %103 = sbr.rel (0) target = $region57
    $region56: #{cvae_forward.1} parent=1 // pred_region
      %s105 = ssub.s32 28672, 28672
      %106 = vsyncadd [#allocation11], %s105
      %s107 = sshll.u32 [#allocation10], 4
      %s108 = int_to_ptr.vmem [resolvable:$true] %s107
      %113 = dma.hbm_to_vmem [thread:$0]  %s13, 28672, %s108, [#allocation11], 448, 448, 28
    $region57: #{cvae_forward.1} parent=1 // pred_fallthru
      _
    // Predicated region
    $region58: #{cvae_forward.1} parent=1 // pred_check
      _
    $region59: #{cvae_forward.1} parent=1 // pred_check_branch
      %115 = sbr.rel (0) target = $region61
    $region60: #{cvae_forward.1} parent=1 // pred_region
      _
    $region61: #{cvae_forward.1} parent=1 // pred_fallthru
      _
    // Predicated region
    $region62: #{cvae_forward.1} parent=1 // pred_check
      _
    $region63: #{cvae_forward.1} parent=1 // pred_check_branch
      %117 = sbr.rel (0) target = $region65
    $region64: #{cvae_forward.1} parent=1 // pred_region
      %118 = dma.done [#allocation3], 25088
    $region65: #{cvae_forward.1} parent=1 // pred_fallthru
      _
    // Predicated region
    $region66: #{cvae_forward.1} parent=1 // pred_check
      _
    $region67: #{cvae_forward.1} parent=1 // pred_check_branch
      %120 = sbr.rel (0) target = $region69
    $region68: #{cvae_forward.1} parent=1 // pred_region
      %121 = dma.done [#allocation5], 4096
    $region69: #{cvae_forward.1} parent=1 // pred_fallthru
      _
    // Predicated region
    $region70: #{cvae_forward.1} parent=1 // pred_check
      _
    $region71: #{cvae_forward.1} parent=1 // pred_check_branch
      %123 = sbr.rel (0) target = $region73
    $region72: #{cvae_forward.1} parent=1 // pred_region
      %124 = dma.done [#allocation5], 8192
    $region73: #{cvae_forward.1} parent=1 // pred_fallthru
      _
    // Predicated region
    $region74: #{cvae_forward.1} parent=1 // pred_check
      _
    $region75: #{cvae_forward.1} parent=1 // pred_check_branch
      %126 = sbr.rel (0) target = $region77
    $region76: #{cvae_forward.1} parent=1 // pred_region
      %127 = dma.done [#allocation8], 4096
    $region77: #{cvae_forward.1} parent=1 // pred_fallthru
      _
    // Predicated region
    $region78: #{cvae_forward.1} parent=1 // pred_check
      _
    $region79: #{cvae_forward.1} parent=1 // pred_check_branch
      %129 = sbr.rel (0) target = $region81
    $region80: #{cvae_forward.1} parent=1 // pred_region
      %130 = dma.done [#allocation8], 8192
    $region81: #{cvae_forward.1} parent=1 // pred_fallthru
      _
    // Predicated region
    $region82: #{cvae_forward.1} parent=1 // pred_check
      _
    $region83: #{cvae_forward.1} parent=1 // pred_check_branch
      %132 = sbr.rel (0) target = $region85
    $region84: #{cvae_forward.1} parent=1 // pred_region
      %133 = dma.done [#allocation11], 28672
    $region85: #{cvae_forward.1} parent=1 // pred_fallthru
      _
    %v135 = vld [vmem:[%s0] sm:$0xff]
    %v136 = vld [vmem:[%s0 + $0x8] sm:$0xff]
    %v137 = vld [vmem:[%s0 + $0x10] sm:$0xff]
    %v138 = vld [vmem:[%s0 + $0x18] sm:$0xf]
    %v139 = vld [vmem:[%s1] sm:$0xff]
    %v140 = vpack.c.bf16 %v139, %v139
    %v141 = vld [vmem:[#allocation2] sm:$0xff]
    %v142 = vld [vmem:[#allocation2 + $0x8] sm:$0xff]
    %v143 = vld [vmem:[#allocation2 + $0x10] sm:$0xff]
    %v144 = vld [vmem:[#allocation2 + $0x18] sm:$0xff]
    %v145 = vld [vmem:[#allocation2 + $0x20] sm:$0xff]
    %v146 = vld [vmem:[#allocation2 + $0x28] sm:$0xff]
    %v147 = vld [vmem:[#allocation2 + $0x30] sm:$0xff]
    %v148 = vld [vmem:[#allocation2 + $0x38] sm:$0xff]
    %v149 = vld [vmem:[#allocation2 + $0x40] sm:$0xff]
    %v150 = vld [vmem:[#allocation2 + $0x48] sm:$0xff]
    %v151 = vld [vmem:[#allocation2 + $0x50] sm:$0xff]
    %v152 = vld [vmem:[#allocation2 + $0x58] sm:$0xff]
    %v153 = vld [vmem:[#allocation2 + $0x60] sm:$0xff]
    %v154 = vld [vmem:[#allocation2 + $0x68] sm:$0xff]
    %v155 = vld [vmem:[#allocation2 + $0x70] sm:$0xff]
    %v156 = vld [vmem:[#allocation2 + $0x78] sm:$0xff]
    %v157 = vld [vmem:[#allocation2 + $0x80] sm:$0xff]
    %v158 = vld [vmem:[#allocation2 + $0x88] sm:$0xff]
    %v159 = vld [vmem:[#allocation2 + $0x90] sm:$0xff]
    %v160 = vld [vmem:[#allocation2 + $0x98] sm:$0xff]
    %v161 = vld [vmem:[#allocation2 + $0xa0] sm:$0xff]
    %v162 = vld [vmem:[#allocation2 + $0xa8] sm:$0xff]
    %v163 = vld [vmem:[#allocation2 + $0xb0] sm:$0xff]
    %v164 = vld [vmem:[#allocation2 + $0xb8] sm:$0xff]
    %v165 = vld [vmem:[#allocation2 + $0xc0] sm:$0xff]
    %v166 = vld [vmem:[#allocation2 + $0xc8] sm:$0xff]
    %v167 = vld [vmem:[#allocation2 + $0xd0] sm:$0xff]
    %v168 = vld [vmem:[#allocation2 + $0xd8] sm:$0xff]
    %v169 = vld [vmem:[#allocation2 + $0xe0] sm:$0xff]
    %v170 = vld [vmem:[#allocation2 + $0xe8] sm:$0xff]
    %v171 = vld [vmem:[#allocation2 + $0xf0] sm:$0xff]
    %v172 = vld [vmem:[#allocation2 + $0xf8] sm:$0xff]
    %v173 = vld [vmem:[#allocation2 + $0x100] sm:$0xff]
    %v174 = vld [vmem:[#allocation2 + $0x108] sm:$0xff]
    %v175 = vld [vmem:[#allocation2 + $0x110] sm:$0xff]
    %v176 = vld [vmem:[#allocation2 + $0x118] sm:$0xff]
    %v177 = vld [vmem:[#allocation2 + $0x120] sm:$0xff]
    %v178 = vld [vmem:[#allocation2 + $0x128] sm:$0xff]
    %v179 = vld [vmem:[#allocation2 + $0x130] sm:$0xff]
    %v180 = vld [vmem:[#allocation2 + $0x138] sm:$0xff]
    %v181 = vld [vmem:[#allocation2 + $0x140] sm:$0xff]
    %v182 = vld [vmem:[#allocation2 + $0x148] sm:$0xff]
    %v183 = vld [vmem:[#allocation2 + $0x150] sm:$0xff]
    %v184 = vld [vmem:[#allocation2 + $0x158] sm:$0xff]
    %v185 = vld [vmem:[#allocation2 + $0x160] sm:$0xff]
    %v186 = vld [vmem:[#allocation2 + $0x168] sm:$0xff]
    %v187 = vld [vmem:[#allocation2 + $0x170] sm:$0xff]
    %v188 = vld [vmem:[#allocation2 + $0x178] sm:$0xff]
    %v189 = vld [vmem:[#allocation2 + $0x180] sm:$0xff]
    %v190 = vld [vmem:[#allocation2 + $0x188] sm:$0xff]
    %v191 = vld [vmem:[#allocation2 + $0x190] sm:$0xff]
    %v192 = vld [vmem:[#allocation2 + $0x198] sm:$0xff]
    %v193 = vld [vmem:[#allocation2 + $0x1a0] sm:$0xff]
    %v194 = vld [vmem:[#allocation2 + $0x1a8] sm:$0xff]
    %v195 = vld [vmem:[#allocation2 + $0x1b0] sm:$0xff]
    %v196 = vld [vmem:[#allocation2 + $0x1b8] sm:$0xff]
    %v197 = vld [vmem:[#allocation2 + $0x1c0] sm:$0xff]
    %v198 = vld [vmem:[#allocation2 + $0x1c8] sm:$0xff]
    %v199 = vld [vmem:[#allocation2 + $0x1d0] sm:$0xff]
    %v200 = vld [vmem:[#allocation2 + $0x1d8] sm:$0xff]
    %v201 = vld [vmem:[#allocation2 + $0x1e0] sm:$0xff]
    %v202 = vld [vmem:[#allocation2 + $0x1e8] sm:$0xff]
    %v203 = vld [vmem:[#allocation2 + $0x1f0] sm:$0xff]
    %v204 = vld [vmem:[#allocation2 + $0x1f8] sm:$0xff]
    %v205 = vld [vmem:[#allocation2 + $0x200] sm:$0xff]
    %v206 = vld [vmem:[#allocation2 + $0x208] sm:$0xff]
    %v207 = vld [vmem:[#allocation2 + $0x210] sm:$0xff]
    %v208 = vld [vmem:[#allocation2 + $0x218] sm:$0xff]
    %v209 = vld [vmem:[#allocation2 + $0x220] sm:$0xff]
    %v210 = vld [vmem:[#allocation2 + $0x228] sm:$0xff]
    %v211 = vld [vmem:[#allocation2 + $0x230] sm:$0xff]
    %v212 = vld [vmem:[#allocation2 + $0x238] sm:$0xff]
    %v213 = vld [vmem:[#allocation2 + $0x240] sm:$0xff]
    %v214 = vld [vmem:[#allocation2 + $0x248] sm:$0xff]
    %v215 = vld [vmem:[#allocation2 + $0x250] sm:$0xff]
    %v216 = vld [vmem:[#allocation2 + $0x258] sm:$0xff]
    %v217 = vld [vmem:[#allocation2 + $0x260] sm:$0xff]
    %v218 = vld [vmem:[#allocation2 + $0x268] sm:$0xff]
    %v219 = vld [vmem:[#allocation2 + $0x270] sm:$0xff]
    %v220 = vld [vmem:[#allocation2 + $0x278] sm:$0xff]
    %v221 = vld [vmem:[#allocation2 + $0x280] sm:$0xff]
    %v222 = vld [vmem:[#allocation2 + $0x288] sm:$0xff]
    %v223 = vld [vmem:[#allocation2 + $0x290] sm:$0xff]
    %v224 = vld [vmem:[#allocation2 + $0x298] sm:$0xff]
    %v225 = vld [vmem:[#allocation2 + $0x2a0] sm:$0xff]
    %v226 = vld [vmem:[#allocation2 + $0x2a8] sm:$0xff]
    %v227 = vld [vmem:[#allocation2 + $0x2b0] sm:$0xff]
    %v228 = vld [vmem:[#allocation2 + $0x2b8] sm:$0xff]
    %v229 = vld [vmem:[#allocation2 + $0x2c0] sm:$0xff]
    %v230 = vld [vmem:[#allocation2 + $0x2c8] sm:$0xff]
    %v231 = vld [vmem:[#allocation2 + $0x2d0] sm:$0xff]
    %v232 = vld [vmem:[#allocation2 + $0x2d8] sm:$0xff]
    %v233 = vld [vmem:[#allocation2 + $0x2e0] sm:$0xff]
    %v234 = vld [vmem:[#allocation2 + $0x2e8] sm:$0xff]
    %v235 = vld [vmem:[#allocation2 + $0x2f0] sm:$0xff]
    %v236 = vld [vmem:[#allocation2 + $0x2f8] sm:$0xff]
    %v237 = vld [vmem:[#allocation2 + $0x300] sm:$0xff]
    %v238 = vld [vmem:[#allocation2 + $0x308] sm:$0xff]
    %v239 = vld [vmem:[#allocation2 + $0x310] sm:$0xff]
    %v240 = vld [vmem:[#allocation2 + $0x318] sm:$0xff]
    %v241 = vld [vmem:[#allocation2 + $0x320] sm:$0xff]
    %v242 = vld [vmem:[#allocation2 + $0x328] sm:$0xff]
    %v243 = vld [vmem:[#allocation2 + $0x330] sm:$0xff]
    %v244 = vld [vmem:[#allocation2 + $0x338] sm:$0xff]
    %v245 = vld [vmem:[#allocation2 + $0x340] sm:$0xff]
    %v246 = vld [vmem:[#allocation2 + $0x348] sm:$0xff]
    %v247 = vld [vmem:[#allocation2 + $0x350] sm:$0xff]
    %v248 = vld [vmem:[#allocation2 + $0x358] sm:$0xff]
    %v249 = vld [vmem:[#allocation2 + $0x360] sm:$0xff]
    %v250 = vld [vmem:[#allocation2 + $0x368] sm:$0xff]
    %v251 = vld [vmem:[#allocation2 + $0x370] sm:$0xff]
    %v252 = vld [vmem:[#allocation2 + $0x378] sm:$0xff]
    %v253 = vld [vmem:[#allocation2 + $0x380] sm:$0xff]
    %v254 = vld [vmem:[#allocation2 + $0x388] sm:$0xff]
    %v255 = vld [vmem:[#allocation2 + $0x390] sm:$0xff]
    %v256 = vld [vmem:[#allocation2 + $0x398] sm:$0xff]
    %v257 = vld [vmem:[#allocation2 + $0x3a0] sm:$0xff]
    %v258 = vld [vmem:[#allocation2 + $0x3a8] sm:$0xff]
    %v259 = vld [vmem:[#allocation2 + $0x3b0] sm:$0xff]
    %v260 = vld [vmem:[#allocation2 + $0x3b8] sm:$0xff]
    %v261 = vld [vmem:[#allocation2 + $0x3c0] sm:$0xff]
    %v262 = vld [vmem:[#allocation2 + $0x3c8] sm:$0xff]
    %v263 = vld [vmem:[#allocation2 + $0x3d0] sm:$0xff]
    %v264 = vld [vmem:[#allocation2 + $0x3d8] sm:$0xff]
    %v265 = vld [vmem:[#allocation2 + $0x3e0] sm:$0xff]
    %v266 = vld [vmem:[#allocation2 + $0x3e8] sm:$0xff]
    %v267 = vld [vmem:[#allocation2 + $0x3f0] sm:$0xff]
    %v268 = vld [vmem:[#allocation2 + $0x3f8] sm:$0xff]
    %v269 = vld [vmem:[#allocation2 + $0x400] sm:$0xff]
    %v270 = vld [vmem:[#allocation2 + $0x408] sm:$0xff]
    %v271 = vld [vmem:[#allocation2 + $0x410] sm:$0xff]
    %v272 = vld [vmem:[#allocation2 + $0x418] sm:$0xff]
    %v273 = vld [vmem:[#allocation2 + $0x420] sm:$0xff]
    %v274 = vld [vmem:[#allocation2 + $0x428] sm:$0xff]
    %v275 = vld [vmem:[#allocation2 + $0x430] sm:$0xff]
    %v276 = vld [vmem:[#allocation2 + $0x438] sm:$0xff]
    %v277 = vld [vmem:[#allocation2 + $0x440] sm:$0xff]
    %v278 = vld [vmem:[#allocation2 + $0x448] sm:$0xff]
    %v279 = vld [vmem:[#allocation2 + $0x450] sm:$0xff]
    %v280 = vld [vmem:[#allocation2 + $0x458] sm:$0xff]
    %v281 = vld [vmem:[#allocation2 + $0x460] sm:$0xff]
    %v282 = vld [vmem:[#allocation2 + $0x468] sm:$0xff]
    %v283 = vld [vmem:[#allocation2 + $0x470] sm:$0xff]
    %v284 = vld [vmem:[#allocation2 + $0x478] sm:$0xff]
    %v285 = vld [vmem:[#allocation2 + $0x480] sm:$0xff]
    %v286 = vld [vmem:[#allocation2 + $0x488] sm:$0xff]
    %v287 = vld [vmem:[#allocation2 + $0x490] sm:$0xff]
    %v288 = vld [vmem:[#allocation2 + $0x498] sm:$0xff]
    %v289 = vld [vmem:[#allocation2 + $0x4a0] sm:$0xff]
    %v290 = vld [vmem:[#allocation2 + $0x4a8] sm:$0xff]
    %v291 = vld [vmem:[#allocation2 + $0x4b0] sm:$0xff]
    %v292 = vld [vmem:[#allocation2 + $0x4b8] sm:$0xff]
    %v293 = vld [vmem:[#allocation2 + $0x4c0] sm:$0xff]
    %v294 = vld [vmem:[#allocation2 + $0x4c8] sm:$0xff]
    %v295 = vld [vmem:[#allocation2 + $0x4d0] sm:$0xff]
    %v296 = vld [vmem:[#allocation2 + $0x4d8] sm:$0xff]
    %v297 = vld [vmem:[#allocation2 + $0x4e0] sm:$0xff]
    %v298 = vld [vmem:[#allocation2 + $0x4e8] sm:$0xff]
    %v299 = vld [vmem:[#allocation2 + $0x4f0] sm:$0xff]
    %v300 = vld [vmem:[#allocation2 + $0x4f8] sm:$0xff]
    %v301 = vld [vmem:[#allocation2 + $0x500] sm:$0xff]
    %v302 = vld [vmem:[#allocation2 + $0x508] sm:$0xff]
    %v303 = vld [vmem:[#allocation2 + $0x510] sm:$0xff]
    %v304 = vld [vmem:[#allocation2 + $0x518] sm:$0xff]
    %v305 = vld [vmem:[#allocation2 + $0x520] sm:$0xff]
    %v306 = vld [vmem:[#allocation2 + $0x528] sm:$0xff]
    %v307 = vld [vmem:[#allocation2 + $0x530] sm:$0xff]
    %v308 = vld [vmem:[#allocation2 + $0x538] sm:$0xff]
    %v309 = vld [vmem:[#allocation2 + $0x540] sm:$0xff]
    %v310 = vld [vmem:[#allocation2 + $0x548] sm:$0xff]
    %v311 = vld [vmem:[#allocation2 + $0x550] sm:$0xff]
    %v312 = vld [vmem:[#allocation2 + $0x558] sm:$0xff]
    %v313 = vld [vmem:[#allocation2 + $0x560] sm:$0xff]
    %v314 = vld [vmem:[#allocation2 + $0x568] sm:$0xff]
    %v315 = vld [vmem:[#allocation2 + $0x570] sm:$0xff]
    %v316 = vld [vmem:[#allocation2 + $0x578] sm:$0xff]
    %v317 = vld [vmem:[#allocation2 + $0x580] sm:$0xff]
    %v318 = vld [vmem:[#allocation2 + $0x588] sm:$0xff]
    %v319 = vld [vmem:[#allocation2 + $0x590] sm:$0xff]
    %v320 = vld [vmem:[#allocation2 + $0x598] sm:$0xff]
    %v321 = vld [vmem:[#allocation2 + $0x5a0] sm:$0xff]
    %v322 = vld [vmem:[#allocation2 + $0x5a8] sm:$0xff]
    %v323 = vld [vmem:[#allocation2 + $0x5b0] sm:$0xff]
    %v324 = vld [vmem:[#allocation2 + $0x5b8] sm:$0xff]
    %v325 = vld [vmem:[#allocation2 + $0x5c0] sm:$0xff]
    %v326 = vld [vmem:[#allocation2 + $0x5c8] sm:$0xff]
    %v327 = vld [vmem:[#allocation2 + $0x5d0] sm:$0xff]
    %v328 = vld [vmem:[#allocation2 + $0x5d8] sm:$0xff]
    %v329 = vld [vmem:[#allocation2 + $0x5e0] sm:$0xff]
    %v330 = vld [vmem:[#allocation2 + $0x5e8] sm:$0xff]
    %v331 = vld [vmem:[#allocation2 + $0x5f0] sm:$0xff]
    %v332 = vld [vmem:[#allocation2 + $0x5f8] sm:$0xff]
    %v333 = vld [vmem:[#allocation2 + $0x600] sm:$0xff]
    %v334 = vld [vmem:[#allocation2 + $0x608] sm:$0xff]
    %v335 = vld [vmem:[#allocation2 + $0x610] sm:$0xff]
    %v336 = vld [vmem:[#allocation2 + $0x618] sm:$0xff]
    %v337 = vld [vmem:[#allocation4] sm:$0xff]
    %v338 = vld [vmem:[#allocation4 + $0x8] sm:$0xff]
    %v339 = vld [vmem:[#allocation4 + $0x10] sm:$0xff]
    %v340 = vld [vmem:[#allocation4 + $0x18] sm:$0xff]
    %v341 = vld [vmem:[#allocation4 + $0x20] sm:$0xff]
    %v342 = vld [vmem:[#allocation4 + $0x28] sm:$0xff]
    %v343 = vld [vmem:[#allocation4 + $0x30] sm:$0xff]
    %v344 = vld [vmem:[#allocation4 + $0x38] sm:$0xff]
    %v345 = vld [vmem:[#allocation4 + $0x40] sm:$0xff]
    %v346 = vld [vmem:[#allocation4 + $0x48] sm:$0xff]
    %v347 = vld [vmem:[#allocation4 + $0x50] sm:$0xff]
    %v348 = vld [vmem:[#allocation4 + $0x58] sm:$0xff]
    %v349 = vld [vmem:[#allocation4 + $0x60] sm:$0xff]
    %v350 = vld [vmem:[#allocation4 + $0x68] sm:$0xff]
    %v351 = vld [vmem:[#allocation4 + $0x70] sm:$0xff]
    %v352 = vld [vmem:[#allocation4 + $0x78] sm:$0xff]
    %v353 = vld [vmem:[#allocation4 + $0x80] sm:$0xff]
    %v354 = vld [vmem:[#allocation4 + $0x88] sm:$0xff]
    %v355 = vld [vmem:[#allocation4 + $0x90] sm:$0xff]
    %v356 = vld [vmem:[#allocation4 + $0x98] sm:$0xff]
    %v357 = vld [vmem:[#allocation4 + $0xa0] sm:$0xff]
    %v358 = vld [vmem:[#allocation4 + $0xa8] sm:$0xff]
    %v359 = vld [vmem:[#allocation4 + $0xb0] sm:$0xff]
    %v360 = vld [vmem:[#allocation4 + $0xb8] sm:$0xff]
    %v361 = vld [vmem:[#allocation4 + $0xc0] sm:$0xff]
    %v362 = vld [vmem:[#allocation4 + $0xc8] sm:$0xff]
    %v363 = vld [vmem:[#allocation4 + $0xd0] sm:$0xff]
    %v364 = vld [vmem:[#allocation4 + $0xd8] sm:$0xff]
    %v365 = vld [vmem:[#allocation4 + $0xe0] sm:$0xff]
    %v366 = vld [vmem:[#allocation4 + $0xe8] sm:$0xff]
    %v367 = vld [vmem:[#allocation4 + $0xf0] sm:$0xff]
    %v368 = vld [vmem:[#allocation4 + $0xf8] sm:$0xff]
    %v401 = vunpack.c.l.b16 %v337
    %v402 = vunpack.c.h.b16 %v337
    %v403 = vunpack.c.l.b16 %v338
    %v404 = vunpack.c.h.b16 %v338
    %v405 = vunpack.c.l.b16 %v339
    %v406 = vunpack.c.h.b16 %v339
    %v407 = vunpack.c.l.b16 %v340
    %v408 = vunpack.c.h.b16 %v340
    %v409 = vunpack.c.l.b16 %v341
    %v410 = vunpack.c.h.b16 %v341
    %v411 = vunpack.c.l.b16 %v342
    %v412 = vunpack.c.h.b16 %v342
    %v413 = vunpack.c.l.b16 %v343
    %v414 = vunpack.c.h.b16 %v343
    %v415 = vunpack.c.l.b16 %v344
    %v416 = vunpack.c.h.b16 %v344
    %v417 = vunpack.c.l.b16 %v345
    %v418 = vunpack.c.h.b16 %v345
    %v419 = vunpack.c.l.b16 %v346
    %v420 = vunpack.c.h.b16 %v346
    %v421 = vunpack.c.l.b16 %v347
    %v422 = vunpack.c.h.b16 %v347
    %v423 = vunpack.c.l.b16 %v348
    %v424 = vunpack.c.h.b16 %v348
    %v425 = vunpack.c.l.b16 %v349
    %v426 = vunpack.c.h.b16 %v349
    %v427 = vunpack.c.l.b16 %v350
    %v428 = vunpack.c.h.b16 %v350
    %v429 = vunpack.c.l.b16 %v351
    %v430 = vunpack.c.h.b16 %v351
    %v431 = vunpack.c.l.b16 %v352
    %v432 = vunpack.c.h.b16 %v352
    %v433 = vunpack.c.l.b16 %v353
    %v434 = vunpack.c.h.b16 %v353
    %v435 = vunpack.c.l.b16 %v354
    %v436 = vunpack.c.h.b16 %v354
    %v437 = vunpack.c.l.b16 %v355
    %v438 = vunpack.c.h.b16 %v355
    %v439 = vunpack.c.l.b16 %v356
    %v440 = vunpack.c.h.b16 %v356
    %v441 = vunpack.c.l.b16 %v357
    %v442 = vunpack.c.h.b16 %v357
    %v443 = vunpack.c.l.b16 %v358
    %v444 = vunpack.c.h.b16 %v358
    %v445 = vunpack.c.l.b16 %v359
    %v446 = vunpack.c.h.b16 %v359
    %v447 = vunpack.c.l.b16 %v360
    %v448 = vunpack.c.h.b16 %v360
    %v449 = vunpack.c.l.b16 %v361
    %v450 = vunpack.c.h.b16 %v361
    %v451 = vunpack.c.l.b16 %v362
    %v452 = vunpack.c.h.b16 %v362
    %v453 = vunpack.c.l.b16 %v363
    %v454 = vunpack.c.h.b16 %v363
    %v455 = vunpack.c.l.b16 %v364
    %v456 = vunpack.c.h.b16 %v364
    %v457 = vunpack.c.l.b16 %v365
    %v458 = vunpack.c.h.b16 %v365
    %v459 = vunpack.c.l.b16 %v366
    %v460 = vunpack.c.h.b16 %v366
    %v461 = vunpack.c.l.b16 %v367
    %v462 = vunpack.c.h.b16 %v367
    %v463 = vunpack.c.l.b16 %v368
    %v464 = vunpack.c.h.b16 %v368
    %v465 = vpack.c.b16 %v405, %v401
    %v466 = vpack.c.b16 %v406, %v402
    %v467 = vpack.c.b16 %v407, %v403
    %v468 = vpack.c.b16 %v408, %v404
    %v469 = vpack.c.b16 %v413, %v409
    %v470 = vpack.c.b16 %v414, %v410
    %v471 = vpack.c.b16 %v415, %v411
    %v472 = vpack.c.b16 %v416, %v412
    %v473 = vpack.c.b16 %v421, %v417
    %v474 = vpack.c.b16 %v422, %v418
    %v475 = vpack.c.b16 %v423, %v419
    %v476 = vpack.c.b16 %v424, %v420
    %v477 = vpack.c.b16 %v429, %v425
    %v478 = vpack.c.b16 %v430, %v426
    %v479 = vpack.c.b16 %v431, %v427
    %v480 = vpack.c.b16 %v432, %v428
    %v481 = vpack.c.b16 %v437, %v433
    %v482 = vpack.c.b16 %v438, %v434
    %v483 = vpack.c.b16 %v439, %v435
    %v484 = vpack.c.b16 %v440, %v436
    %v485 = vpack.c.b16 %v445, %v441
    %v486 = vpack.c.b16 %v446, %v442
    %v487 = vpack.c.b16 %v447, %v443
    %v488 = vpack.c.b16 %v448, %v444
    %v489 = vpack.c.b16 %v453, %v449
    %v490 = vpack.c.b16 %v454, %v450
    %v491 = vpack.c.b16 %v455, %v451
    %v492 = vpack.c.b16 %v456, %v452
    %v493 = vpack.c.b16 %v461, %v457
    %v494 = vpack.c.b16 %v462, %v458
    %v495 = vpack.c.b16 %v463, %v459
    %v496 = vpack.c.b16 %v464, %v460
    %529 = vmatprep.subr.bf16.mxu0 %v494
    %530 = vmatpush1.bf16.msra.mxu0 %v493
    %531 = vmatprep.subr.bf16.mxu0 %v490
    %532 = vmatpush1.bf16.msra.mxu0 %v489
    %533 = vmatprep.subr.bf16.mxu0 %v486
    %534 = vmatpush1.bf16.msra.mxu0 %v485
    %535 = vmatprep.subr.bf16.mxu0 %v482
    %536 = vmatpush1.bf16.msra.mxu0 %v481
    %537 = vmatprep.subr.bf16.mxu0 %v478
    %538 = vmatpush1.bf16.msra.mxu0 %v477
    %539 = vmatprep.subr.bf16.mxu0 %v474
    %540 = vmatpush1.bf16.msra.mxu0 %v473
    %541 = vmatprep.subr.bf16.mxu0 %v470
    %542 = vmatpush1.bf16.msra.mxu0 %v469
    %543 = vmatprep.subr.bf16.mxu0 %v466
    %544 = vmatpush1.bf16.msra.mxu0 %v465
    %545 = vmatprep.subr.bf16.mxu0 0
    %546 = vmatpush2.bf16.msra.mxu0 0
    %547 = vmatprep.subr.bf16.mxu0 0
    %548 = vmatpush2.bf16.msra.mxu0 0
    %549 = vmatprep.subr.bf16.mxu0 0
    %550 = vmatpush2.bf16.msra.mxu0 0
    %551 = vmatprep.subr.bf16.mxu0 0
    %552 = vmatpush2.bf16.msra.mxu0 0
    %553 = vmatprep.subr.bf16.mxu0 0
    %554 = vmatpush2.bf16.msra.mxu0 0
    %555 = vmatprep.subr.bf16.mxu0 0
    %556 = vmatpush2.bf16.msra.mxu0 0
    %557 = vmatprep.subr.bf16.mxu0 0
    %558 = vmatpush2.bf16.msra.mxu0 0
    %559 = vmatprep.subr.bf16.mxu0 0
    %560 = vmatpush2.bf16.msra.mxu0 0
    %561 = vmatprep.mubr.bf16.mxu0 0
    %562 = vmatmul.mubr.bf16.gmra.mxu0 %v140
    %v563 = vpop.f32.mrf.mxu0
    %v564 = vadd.f32 0.0, %v563
    %v565 = vpop.f32.mrf.mxu0
    %v566 = vadd.f32 0.0, %v565
    %v567 = vpop.f32.mrf.mxu0
    %v568 = vpop.f32.mrf.mxu0
    %569 = vdwg.mxu0
    %570 = vmatprep.subr.bf16.mxu0 %v496
    %571 = vmatpush1.bf16.msra.mxu0 %v495
    %572 = vmatprep.subr.bf16.mxu0 %v492
    %573 = vmatpush1.bf16.msra.mxu0 %v491
    %574 = vmatprep.subr.bf16.mxu0 %v488
    %575 = vmatpush1.bf16.msra.mxu0 %v487
    %576 = vmatprep.subr.bf16.mxu0 %v484
    %577 = vmatpush1.bf16.msra.mxu0 %v483
    %578 = vmatprep.subr.bf16.mxu0 %v480
    %579 = vmatpush1.bf16.msra.mxu0 %v479
    %580 = vmatprep.subr.bf16.mxu0 %v476
    %581 = vmatpush1.bf16.msra.mxu0 %v475
    %582 = vmatprep.subr.bf16.mxu0 %v472
    %583 = vmatpush1.bf16.msra.mxu0 %v471
    %584 = vmatprep.subr.bf16.mxu0 %v468
    %585 = vmatpush1.bf16.msra.mxu0 %v467
    %586 = vmatprep.subr.bf16.mxu0 0
    %587 = vmatpush2.bf16.msra.mxu0 0
    %588 = vmatprep.subr.bf16.mxu0 0
    %589 = vmatpush2.bf16.msra.mxu0 0
    %590 = vmatprep.subr.bf16.mxu0 0
    %591 = vmatpush2.bf16.msra.mxu0 0
    %592 = vmatprep.subr.bf16.mxu0 0
    %593 = vmatpush2.bf16.msra.mxu0 0
    %594 = vmatprep.subr.bf16.mxu0 0
    %595 = vmatpush2.bf16.msra.mxu0 0
    %596 = vmatprep.subr.bf16.mxu0 0
    %597 = vmatpush2.bf16.msra.mxu0 0
    %598 = vmatprep.subr.bf16.mxu0 0
    %599 = vmatpush2.bf16.msra.mxu0 0
    %600 = vmatprep.subr.bf16.mxu0 0
    %601 = vmatpush2.bf16.msra.mxu0 0
    %602 = vmatprep.mubr.bf16.mxu0 0
    %603 = vmatmul.mubr.bf16.gmra.mxu0 %v140
    %v604 = vpop.f32.mrf.mxu0
    %v605 = vadd.f32 0.0, %v604
    %v606 = vpop.f32.mrf.mxu0
    %v607 = vadd.f32 0.0, %v606
    %v608 = vpop.f32.mrf.mxu0
    %v609 = vpop.f32.mrf.mxu0
    %610 = vdwg.mxu0
    %v615 = vunpack.c.l.b16 %v135
    %v616 = vunpack.c.h.b16 %v135
    %v617 = vunpack.c.l.b16 %v136
    %v618 = vunpack.c.h.b16 %v136
    %v619 = vunpack.c.l.b16 %v137
    %v620 = vunpack.c.h.b16 %v137
    %v621 = vunpack.c.l.b16 %v138
    %v622 = vpack.c.b16 %v615, %v615
    %v623 = vpack.c.b16 %v616, %v616
    %v624 = vpack.c.b16 %v617, %v617
    %v625 = vpack.c.b16 %v618, %v618
    %v626 = vpack.c.b16 %v619, %v619
    %v627 = vpack.c.b16 %v620, %v620
    %v628 = vpack.c.b16 %v621, %v621
    %v831 = vunpack.c.l.b16 %v141
    %v832 = vunpack.c.h.b16 %v141
    %v833 = vunpack.c.l.b16 %v142
    %v834 = vunpack.c.h.b16 %v142
    %v835 = vunpack.c.l.b16 %v143
    %v836 = vunpack.c.h.b16 %v143
    %v837 = vunpack.c.l.b16 %v144
    %v838 = vunpack.c.h.b16 %v144
    %v839 = vunpack.c.l.b16 %v145
    %v840 = vunpack.c.h.b16 %v145
    %v841 = vunpack.c.l.b16 %v146
    %v842 = vunpack.c.h.b16 %v146
    %v843 = vunpack.c.l.b16 %v147
    %v844 = vunpack.c.h.b16 %v147
    %v845 = vunpack.c.l.b16 %v148
    %v846 = vunpack.c.h.b16 %v148
    %v847 = vunpack.c.l.b16 %v149
    %v848 = vunpack.c.h.b16 %v149
    %v849 = vunpack.c.l.b16 %v150
    %v850 = vunpack.c.h.b16 %v150
    %v851 = vunpack.c.l.b16 %v151
    %v852 = vunpack.c.h.b16 %v151
    %v853 = vunpack.c.l.b16 %v152
    %v854 = vunpack.c.h.b16 %v152
    %v855 = vunpack.c.l.b16 %v153
    %v856 = vunpack.c.h.b16 %v153
    %v857 = vunpack.c.l.b16 %v154
    %v858 = vunpack.c.h.b16 %v154
    %v859 = vunpack.c.l.b16 %v155
    %v860 = vunpack.c.h.b16 %v155
    %v861 = vunpack.c.l.b16 %v156
    %v862 = vunpack.c.h.b16 %v156
    %v863 = vunpack.c.l.b16 %v157
    %v864 = vunpack.c.h.b16 %v157
    %v865 = vunpack.c.l.b16 %v158
    %v866 = vunpack.c.h.b16 %v158
    %v867 = vunpack.c.l.b16 %v159
    %v868 = vunpack.c.h.b16 %v159
    %v869 = vunpack.c.l.b16 %v160
    %v870 = vunpack.c.h.b16 %v160
    %v871 = vunpack.c.l.b16 %v161
    %v872 = vunpack.c.h.b16 %v161
    %v873 = vunpack.c.l.b16 %v162
    %v874 = vunpack.c.h.b16 %v162
    %v875 = vunpack.c.l.b16 %v163
    %v876 = vunpack.c.h.b16 %v163
    %v877 = vunpack.c.l.b16 %v164
    %v878 = vunpack.c.h.b16 %v164
    %v879 = vunpack.c.l.b16 %v165
    %v880 = vunpack.c.h.b16 %v165
    %v881 = vunpack.c.l.b16 %v166
    %v882 = vunpack.c.h.b16 %v166
    %v883 = vunpack.c.l.b16 %v167
    %v884 = vunpack.c.h.b16 %v167
    %v885 = vunpack.c.l.b16 %v168
    %v886 = vunpack.c.h.b16 %v168
    %v887 = vunpack.c.l.b16 %v169
    %v888 = vunpack.c.h.b16 %v169
    %v889 = vunpack.c.l.b16 %v170
    %v890 = vunpack.c.h.b16 %v170
    %v891 = vunpack.c.l.b16 %v171
    %v892 = vunpack.c.h.b16 %v171
    %v893 = vunpack.c.l.b16 %v172
    %v894 = vunpack.c.h.b16 %v172
    %v895 = vunpack.c.l.b16 %v173
    %v896 = vunpack.c.h.b16 %v173
    %v897 = vunpack.c.l.b16 %v174
    %v898 = vunpack.c.h.b16 %v174
    %v899 = vunpack.c.l.b16 %v175
    %v900 = vunpack.c.h.b16 %v175
    %v901 = vunpack.c.l.b16 %v176
    %v902 = vunpack.c.h.b16 %v176
    %v903 = vunpack.c.l.b16 %v177
    %v904 = vunpack.c.h.b16 %v177
    %v905 = vunpack.c.l.b16 %v178
    %v906 = vunpack.c.h.b16 %v178
    %v907 = vunpack.c.l.b16 %v179
    %v908 = vunpack.c.h.b16 %v179
    %v909 = vunpack.c.l.b16 %v180
    %v910 = vunpack.c.h.b16 %v180
    %v911 = vunpack.c.l.b16 %v181
    %v912 = vunpack.c.h.b16 %v181
    %v913 = vunpack.c.l.b16 %v182
    %v914 = vunpack.c.h.b16 %v182
    %v915 = vunpack.c.l.b16 %v183
    %v916 = vunpack.c.h.b16 %v183
    %v917 = vunpack.c.l.b16 %v184
    %v918 = vunpack.c.h.b16 %v184
    %v919 = vunpack.c.l.b16 %v185
    %v920 = vunpack.c.h.b16 %v185
    %v921 = vunpack.c.l.b16 %v186
    %v922 = vunpack.c.h.b16 %v186
    %v923 = vunpack.c.l.b16 %v187
    %v924 = vunpack.c.h.b16 %v187
    %v925 = vunpack.c.l.b16 %v188
    %v926 = vunpack.c.h.b16 %v188
    %v927 = vunpack.c.l.b16 %v189
    %v928 = vunpack.c.h.b16 %v189
    %v929 = vunpack.c.l.b16 %v190
    %v930 = vunpack.c.h.b16 %v190
    %v931 = vunpack.c.l.b16 %v191
    %v932 = vunpack.c.h.b16 %v191
    %v933 = vunpack.c.l.b16 %v192
    %v934 = vunpack.c.h.b16 %v192
    %v935 = vunpack.c.l.b16 %v193
    %v936 = vunpack.c.h.b16 %v193
    %v937 = vunpack.c.l.b16 %v194
    %v938 = vunpack.c.h.b16 %v194
    %v939 = vunpack.c.l.b16 %v195
    %v940 = vunpack.c.h.b16 %v195
    %v941 = vunpack.c.l.b16 %v196
    %v942 = vunpack.c.h.b16 %v196
    %v943 = vunpack.c.l.b16 %v197
    %v944 = vunpack.c.h.b16 %v197
    %v945 = vunpack.c.l.b16 %v198
    %v946 = vunpack.c.h.b16 %v198
    %v947 = vunpack.c.l.b16 %v199
    %v948 = vunpack.c.h.b16 %v199
    %v949 = vunpack.c.l.b16 %v200
    %v950 = vunpack.c.h.b16 %v200
    %v951 = vunpack.c.l.b16 %v201
    %v952 = vunpack.c.h.b16 %v201
    %v953 = vunpack.c.l.b16 %v202
    %v954 = vunpack.c.h.b16 %v202
    %v955 = vunpack.c.l.b16 %v203
    %v956 = vunpack.c.h.b16 %v203
    %v957 = vunpack.c.l.b16 %v204
    %v958 = vunpack.c.h.b16 %v204
    %v959 = vunpack.c.l.b16 %v205
    %v960 = vunpack.c.h.b16 %v205
    %v961 = vunpack.c.l.b16 %v206
    %v962 = vunpack.c.h.b16 %v206
    %v963 = vunpack.c.l.b16 %v207
    %v964 = vunpack.c.h.b16 %v207
    %v965 = vunpack.c.l.b16 %v208
    %v966 = vunpack.c.h.b16 %v208
    %v967 = vunpack.c.l.b16 %v209
    %v968 = vunpack.c.h.b16 %v209
    %v969 = vunpack.c.l.b16 %v210
    %v970 = vunpack.c.h.b16 %v210
    %v971 = vunpack.c.l.b16 %v211
    %v972 = vunpack.c.h.b16 %v211
    %v973 = vunpack.c.l.b16 %v212
    %v974 = vunpack.c.h.b16 %v212
    %v975 = vunpack.c.l.b16 %v213
    %v976 = vunpack.c.h.b16 %v213
    %v977 = vunpack.c.l.b16 %v214
    %v978 = vunpack.c.h.b16 %v214
    %v979 = vunpack.c.l.b16 %v215
    %v980 = vunpack.c.h.b16 %v215
    %v981 = vunpack.c.l.b16 %v216
    %v982 = vunpack.c.h.b16 %v216
    %v983 = vunpack.c.l.b16 %v217
    %v984 = vunpack.c.h.b16 %v217
    %v985 = vunpack.c.l.b16 %v218
    %v986 = vunpack.c.h.b16 %v218
    %v987 = vunpack.c.l.b16 %v219
    %v988 = vunpack.c.h.b16 %v219
    %v989 = vunpack.c.l.b16 %v220
    %v990 = vunpack.c.h.b16 %v220
    %v991 = vunpack.c.l.b16 %v221
    %v992 = vunpack.c.h.b16 %v221
    %v993 = vunpack.c.l.b16 %v222
    %v994 = vunpack.c.h.b16 %v222
    %v995 = vunpack.c.l.b16 %v223
    %v996 = vunpack.c.h.b16 %v223
    %v997 = vunpack.c.l.b16 %v224
    %v998 = vunpack.c.h.b16 %v224
    %v999 = vunpack.c.l.b16 %v225
    %v1000 = vunpack.c.h.b16 %v225
    %v1001 = vunpack.c.l.b16 %v226
    %v1002 = vunpack.c.h.b16 %v226
    %v1003 = vunpack.c.l.b16 %v227
    %v1004 = vunpack.c.h.b16 %v227
    %v1005 = vunpack.c.l.b16 %v228
    %v1006 = vunpack.c.h.b16 %v228
    %v1007 = vunpack.c.l.b16 %v229
    %v1008 = vunpack.c.h.b16 %v229
    %v1009 = vunpack.c.l.b16 %v230
    %v1010 = vunpack.c.h.b16 %v230
    %v1011 = vunpack.c.l.b16 %v231
    %v1012 = vunpack.c.h.b16 %v231
    %v1013 = vunpack.c.l.b16 %v232
    %v1014 = vunpack.c.h.b16 %v232
    %v1015 = vunpack.c.l.b16 %v233
    %v1016 = vunpack.c.h.b16 %v233
    %v1017 = vunpack.c.l.b16 %v234
    %v1018 = vunpack.c.h.b16 %v234
    %v1019 = vunpack.c.l.b16 %v235
    %v1020 = vunpack.c.h.b16 %v235
    %v1021 = vunpack.c.l.b16 %v236
    %v1022 = vunpack.c.h.b16 %v236
    %v1023 = vunpack.c.l.b16 %v237
    %v1024 = vunpack.c.h.b16 %v237
    %v1025 = vunpack.c.l.b16 %v238
    %v1026 = vunpack.c.h.b16 %v238
    %v1027 = vunpack.c.l.b16 %v239
    %v1028 = vunpack.c.h.b16 %v239
    %v1029 = vunpack.c.l.b16 %v240
    %v1030 = vunpack.c.h.b16 %v240
    %v1031 = vunpack.c.l.b16 %v241
    %v1032 = vunpack.c.h.b16 %v241
    %v1033 = vunpack.c.l.b16 %v242
    %v1034 = vunpack.c.h.b16 %v242
    %v1035 = vunpack.c.l.b16 %v243
    %v1036 = vunpack.c.h.b16 %v243
    %v1037 = vunpack.c.l.b16 %v244
    %v1038 = vunpack.c.h.b16 %v244
    %v1039 = vunpack.c.l.b16 %v245
    %v1040 = vunpack.c.h.b16 %v245
    %v1041 = vunpack.c.l.b16 %v246
    %v1042 = vunpack.c.h.b16 %v246
    %v1043 = vunpack.c.l.b16 %v247
    %v1044 = vunpack.c.h.b16 %v247
    %v1045 = vunpack.c.l.b16 %v248
    %v1046 = vunpack.c.h.b16 %v248
    %v1047 = vunpack.c.l.b16 %v249
    %v1048 = vunpack.c.h.b16 %v249
    %v1049 = vunpack.c.l.b16 %v250
    %v1050 = vunpack.c.h.b16 %v250
    %v1051 = vunpack.c.l.b16 %v251
    %v1052 = vunpack.c.h.b16 %v251
    %v1053 = vunpack.c.l.b16 %v252
    %v1054 = vunpack.c.h.b16 %v252
    %v1055 = vunpack.c.l.b16 %v253
    %v1056 = vunpack.c.h.b16 %v253
    %v1057 = vunpack.c.l.b16 %v254
    %v1058 = vunpack.c.h.b16 %v254
    %v1059 = vunpack.c.l.b16 %v255
    %v1060 = vunpack.c.h.b16 %v255
    %v1061 = vunpack.c.l.b16 %v256
    %v1062 = vunpack.c.h.b16 %v256
    %v1063 = vunpack.c.l.b16 %v257
    %v1064 = vunpack.c.h.b16 %v257
    %v1065 = vunpack.c.l.b16 %v258
    %v1066 = vunpack.c.h.b16 %v258
    %v1067 = vunpack.c.l.b16 %v259
    %v1068 = vunpack.c.h.b16 %v259
    %v1069 = vunpack.c.l.b16 %v260
    %v1070 = vunpack.c.h.b16 %v260
    %v1071 = vunpack.c.l.b16 %v261
    %v1072 = vunpack.c.h.b16 %v261
    %v1073 = vunpack.c.l.b16 %v262
    %v1074 = vunpack.c.h.b16 %v262
    %v1075 = vunpack.c.l.b16 %v263
    %v1076 = vunpack.c.h.b16 %v263
    %v1077 = vunpack.c.l.b16 %v264
    %v1078 = vunpack.c.h.b16 %v264
    %v1079 = vunpack.c.l.b16 %v265
    %v1080 = vunpack.c.h.b16 %v265
    %v1081 = vunpack.c.l.b16 %v266
    %v1082 = vunpack.c.h.b16 %v266
    %v1083 = vunpack.c.l.b16 %v267
    %v1084 = vunpack.c.h.b16 %v267
    %v1085 = vunpack.c.l.b16 %v268
    %v1086 = vunpack.c.h.b16 %v268
    %v1087 = vunpack.c.l.b16 %v269
    %v1088 = vunpack.c.h.b16 %v269
    %v1089 = vunpack.c.l.b16 %v270
    %v1090 = vunpack.c.h.b16 %v270
    %v1091 = vunpack.c.l.b16 %v271
    %v1092 = vunpack.c.h.b16 %v271
    %v1093 = vunpack.c.l.b16 %v272
    %v1094 = vunpack.c.h.b16 %v272
    %v1095 = vunpack.c.l.b16 %v273
    %v1096 = vunpack.c.h.b16 %v273
    %v1097 = vunpack.c.l.b16 %v274
    %v1098 = vunpack.c.h.b16 %v274
    %v1099 = vunpack.c.l.b16 %v275
    %v1100 = vunpack.c.h.b16 %v275
    %v1101 = vunpack.c.l.b16 %v276
    %v1102 = vunpack.c.h.b16 %v276
    %v1103 = vunpack.c.l.b16 %v277
    %v1104 = vunpack.c.h.b16 %v277
    %v1105 = vunpack.c.l.b16 %v278
    %v1106 = vunpack.c.h.b16 %v278
    %v1107 = vunpack.c.l.b16 %v279
    %v1108 = vunpack.c.h.b16 %v279
    %v1109 = vunpack.c.l.b16 %v280
    %v1110 = vunpack.c.h.b16 %v280
    %v1111 = vunpack.c.l.b16 %v281
    %v1112 = vunpack.c.h.b16 %v281
    %v1113 = vunpack.c.l.b16 %v282
    %v1114 = vunpack.c.h.b16 %v282
    %v1115 = vunpack.c.l.b16 %v283
    %v1116 = vunpack.c.h.b16 %v283
    %v1117 = vunpack.c.l.b16 %v284
    %v1118 = vunpack.c.h.b16 %v284
    %v1119 = vunpack.c.l.b16 %v285
    %v1120 = vunpack.c.h.b16 %v285
    %v1121 = vunpack.c.l.b16 %v286
    %v1122 = vunpack.c.h.b16 %v286
    %v1123 = vunpack.c.l.b16 %v287
    %v1124 = vunpack.c.h.b16 %v287
    %v1125 = vunpack.c.l.b16 %v288
    %v1126 = vunpack.c.h.b16 %v288
    %v1127 = vunpack.c.l.b16 %v289
    %v1128 = vunpack.c.h.b16 %v289
    %v1129 = vunpack.c.l.b16 %v290
    %v1130 = vunpack.c.h.b16 %v290
    %v1131 = vunpack.c.l.b16 %v291
    %v1132 = vunpack.c.h.b16 %v291
    %v1133 = vunpack.c.l.b16 %v292
    %v1134 = vunpack.c.h.b16 %v292
    %v1135 = vunpack.c.l.b16 %v293
    %v1136 = vunpack.c.h.b16 %v293
    %v1137 = vunpack.c.l.b16 %v294
    %v1138 = vunpack.c.h.b16 %v294
    %v1139 = vunpack.c.l.b16 %v295
    %v1140 = vunpack.c.h.b16 %v295
    %v1141 = vunpack.c.l.b16 %v296
    %v1142 = vunpack.c.h.b16 %v296
    %v1143 = vunpack.c.l.b16 %v297
    %v1144 = vunpack.c.h.b16 %v297
    %v1145 = vunpack.c.l.b16 %v298
    %v1146 = vunpack.c.h.b16 %v298
    %v1147 = vunpack.c.l.b16 %v299
    %v1148 = vunpack.c.h.b16 %v299
    %v1149 = vunpack.c.l.b16 %v300
    %v1150 = vunpack.c.h.b16 %v300
    %v1151 = vunpack.c.l.b16 %v301
    %v1152 = vunpack.c.h.b16 %v301
    %v1153 = vunpack.c.l.b16 %v302
    %v1154 = vunpack.c.h.b16 %v302
    %v1155 = vunpack.c.l.b16 %v303
    %v1156 = vunpack.c.h.b16 %v303
    %v1157 = vunpack.c.l.b16 %v304
    %v1158 = vunpack.c.h.b16 %v304
    %v1159 = vunpack.c.l.b16 %v305
    %v1160 = vunpack.c.h.b16 %v305
    %v1161 = vunpack.c.l.b16 %v306
    %v1162 = vunpack.c.h.b16 %v306
    %v1163 = vunpack.c.l.b16 %v307
    %v1164 = vunpack.c.h.b16 %v307
    %v1165 = vunpack.c.l.b16 %v308
    %v1166 = vunpack.c.h.b16 %v308
    %v1167 = vunpack.c.l.b16 %v309
    %v1168 = vunpack.c.h.b16 %v309
    %v1169 = vunpack.c.l.b16 %v310
    %v1170 = vunpack.c.h.b16 %v310
    %v1171 = vunpack.c.l.b16 %v311
    %v1172 = vunpack.c.h.b16 %v311
    %v1173 = vunpack.c.l.b16 %v312
    %v1174 = vunpack.c.h.b16 %v312
    %v1175 = vunpack.c.l.b16 %v313
    %v1176 = vunpack.c.h.b16 %v313
    %v1177 = vunpack.c.l.b16 %v314
    %v1178 = vunpack.c.h.b16 %v314
    %v1179 = vunpack.c.l.b16 %v315
    %v1180 = vunpack.c.h.b16 %v315
    %v1181 = vunpack.c.l.b16 %v316
    %v1182 = vunpack.c.h.b16 %v316
    %v1183 = vunpack.c.l.b16 %v317
    %v1184 = vunpack.c.h.b16 %v317
    %v1185 = vunpack.c.l.b16 %v318
    %v1186 = vunpack.c.h.b16 %v318
    %v1187 = vunpack.c.l.b16 %v319
    %v1188 = vunpack.c.h.b16 %v319
    %v1189 = vunpack.c.l.b16 %v320
    %v1190 = vunpack.c.h.b16 %v320
    %v1191 = vunpack.c.l.b16 %v321
    %v1192 = vunpack.c.h.b16 %v321
    %v1193 = vunpack.c.l.b16 %v322
    %v1194 = vunpack.c.h.b16 %v322
    %v1195 = vunpack.c.l.b16 %v323
    %v1196 = vunpack.c.h.b16 %v323
    %v1197 = vunpack.c.l.b16 %v324
    %v1198 = vunpack.c.h.b16 %v324
    %v1199 = vunpack.c.l.b16 %v325
    %v1200 = vunpack.c.h.b16 %v325
    %v1201 = vunpack.c.l.b16 %v326
    %v1202 = vunpack.c.h.b16 %v326
    %v1203 = vunpack.c.l.b16 %v327
    %v1204 = vunpack.c.h.b16 %v327
    %v1205 = vunpack.c.l.b16 %v328
    %v1206 = vunpack.c.h.b16 %v328
    %v1207 = vunpack.c.l.b16 %v329
    %v1208 = vunpack.c.h.b16 %v329
    %v1209 = vunpack.c.l.b16 %v330
    %v1210 = vunpack.c.h.b16 %v330
    %v1211 = vunpack.c.l.b16 %v331
    %v1212 = vunpack.c.h.b16 %v331
    %v1213 = vunpack.c.l.b16 %v332
    %v1214 = vunpack.c.h.b16 %v332
    %v1215 = vunpack.c.l.b16 %v333
    %v1216 = vunpack.c.h.b16 %v333
    %v1217 = vunpack.c.l.b16 %v334
    %v1218 = vunpack.c.h.b16 %v334
    %v1219 = vunpack.c.l.b16 %v335
    %v1220 = vunpack.c.h.b16 %v335
    %v1221 = vunpack.c.l.b16 %v336
    %v1222 = vunpack.c.h.b16 %v336
    %v1223 = vpack.c.b16 %v835, %v831
    %v1224 = vpack.c.b16 %v836, %v832
    %v1225 = vpack.c.b16 %v837, %v833
    %v1226 = vpack.c.b16 %v838, %v834
    %v1227 = vpack.c.b16 %v843, %v839
    %v1228 = vpack.c.b16 %v844, %v840
    %v1229 = vpack.c.b16 %v845, %v841
    %v1230 = vpack.c.b16 %v846, %v842
    %v1231 = vpack.c.b16 %v851, %v847
    %v1232 = vpack.c.b16 %v852, %v848
    %v1233 = vpack.c.b16 %v853, %v849
    %v1234 = vpack.c.b16 %v854, %v850
    %v1235 = vpack.c.b16 %v859, %v855
    %v1236 = vpack.c.b16 %v860, %v856
    %v1237 = vpack.c.b16 %v861, %v857
    %v1238 = vpack.c.b16 %v862, %v858
    %v1239 = vpack.c.b16 %v867, %v863
    %v1240 = vpack.c.b16 %v868, %v864
    %v1241 = vpack.c.b16 %v869, %v865
    %v1242 = vpack.c.b16 %v870, %v866
    %v1243 = vpack.c.b16 %v875, %v871
    %v1244 = vpack.c.b16 %v876, %v872
    %v1245 = vpack.c.b16 %v877, %v873
    %v1246 = vpack.c.b16 %v878, %v874
    %v1247 = vpack.c.b16 %v883, %v879
    %v1248 = vpack.c.b16 %v884, %v880
    %v1249 = vpack.c.b16 %v885, %v881
    %v1250 = vpack.c.b16 %v886, %v882
    %v1251 = vpack.c.b16 %v891, %v887
    %v1252 = vpack.c.b16 %v892, %v888
    %v1253 = vpack.c.b16 %v893, %v889
    %v1254 = vpack.c.b16 %v894, %v890
    %v1255 = vpack.c.b16 %v899, %v895
    %v1256 = vpack.c.b16 %v900, %v896
    %v1257 = vpack.c.b16 %v901, %v897
    %v1258 = vpack.c.b16 %v902, %v898
    %v1259 = vpack.c.b16 %v907, %v903
    %v1260 = vpack.c.b16 %v908, %v904
    %v1261 = vpack.c.b16 %v909, %v905
    %v1262 = vpack.c.b16 %v910, %v906
    %v1263 = vpack.c.b16 %v915, %v911
    %v1264 = vpack.c.b16 %v916, %v912
    %v1265 = vpack.c.b16 %v917, %v913
    %v1266 = vpack.c.b16 %v918, %v914
    %v1267 = vpack.c.b16 %v923, %v919
    %v1268 = vpack.c.b16 %v924, %v920
    %v1269 = vpack.c.b16 %v925, %v921
    %v1270 = vpack.c.b16 %v926, %v922
    %v1271 = vpack.c.b16 %v931, %v927
    %v1272 = vpack.c.b16 %v932, %v928
    %v1273 = vpack.c.b16 %v933, %v929
    %v1274 = vpack.c.b16 %v934, %v930
    %v1275 = vpack.c.b16 %v939, %v935
    %v1276 = vpack.c.b16 %v940, %v936
    %v1277 = vpack.c.b16 %v941, %v937
    %v1278 = vpack.c.b16 %v942, %v938
    %v1279 = vpack.c.b16 %v947, %v943
    %v1280 = vpack.c.b16 %v948, %v944
    %v1281 = vpack.c.b16 %v949, %v945
    %v1282 = vpack.c.b16 %v950, %v946
    %v1283 = vpack.c.b16 %v955, %v951
    %v1284 = vpack.c.b16 %v956, %v952
    %v1285 = vpack.c.b16 %v957, %v953
    %v1286 = vpack.c.b16 %v958, %v954
    %v1287 = vpack.c.b16 %v963, %v959
    %v1288 = vpack.c.b16 %v964, %v960
    %v1289 = vpack.c.b16 %v965, %v961
    %v1290 = vpack.c.b16 %v966, %v962
    %v1291 = vpack.c.b16 %v971, %v967
    %v1292 = vpack.c.b16 %v972, %v968
    %v1293 = vpack.c.b16 %v973, %v969
    %v1294 = vpack.c.b16 %v974, %v970
    %v1295 = vpack.c.b16 %v979, %v975
    %v1296 = vpack.c.b16 %v980, %v976
    %v1297 = vpack.c.b16 %v981, %v977
    %v1298 = vpack.c.b16 %v982, %v978
    %v1299 = vpack.c.b16 %v987, %v983
    %v1300 = vpack.c.b16 %v988, %v984
    %v1301 = vpack.c.b16 %v989, %v985
    %v1302 = vpack.c.b16 %v990, %v986
    %v1303 = vpack.c.b16 %v995, %v991
    %v1304 = vpack.c.b16 %v996, %v992
    %v1305 = vpack.c.b16 %v997, %v993
    %v1306 = vpack.c.b16 %v998, %v994
    %v1307 = vpack.c.b16 %v1003, %v999
    %v1308 = vpack.c.b16 %v1004, %v1000
    %v1309 = vpack.c.b16 %v1005, %v1001
    %v1310 = vpack.c.b16 %v1006, %v1002
    %v1311 = vpack.c.b16 %v1011, %v1007
    %v1312 = vpack.c.b16 %v1012, %v1008
    %v1313 = vpack.c.b16 %v1013, %v1009
    %v1314 = vpack.c.b16 %v1014, %v1010
    %v1315 = vpack.c.b16 %v1019, %v1015
    %v1316 = vpack.c.b16 %v1020, %v1016
    %v1317 = vpack.c.b16 %v1021, %v1017
    %v1318 = vpack.c.b16 %v1022, %v1018
    %v1319 = vpack.c.b16 %v1027, %v1023
    %v1320 = vpack.c.b16 %v1028, %v1024
    %v1321 = vpack.c.b16 %v1029, %v1025
    %v1322 = vpack.c.b16 %v1030, %v1026
    %v1323 = vpack.c.b16 %v1035, %v1031
    %v1324 = vpack.c.b16 %v1036, %v1032
    %v1325 = vpack.c.b16 %v1037, %v1033
    %v1326 = vpack.c.b16 %v1038, %v1034
    %v1327 = vpack.c.b16 %v1043, %v1039
    %v1328 = vpack.c.b16 %v1044, %v1040
    %v1329 = vpack.c.b16 %v1045, %v1041
    %v1330 = vpack.c.b16 %v1046, %v1042
    %v1331 = vpack.c.b16 %v1051, %v1047
    %v1332 = vpack.c.b16 %v1052, %v1048
    %v1333 = vpack.c.b16 %v1053, %v1049
    %v1334 = vpack.c.b16 %v1054, %v1050
    %v1335 = vpack.c.b16 %v1059, %v1055
    %v1336 = vpack.c.b16 %v1060, %v1056
    %v1337 = vpack.c.b16 %v1061, %v1057
    %v1338 = vpack.c.b16 %v1062, %v1058
    %v1339 = vpack.c.b16 %v1067, %v1063
    %v1340 = vpack.c.b16 %v1068, %v1064
    %v1341 = vpack.c.b16 %v1069, %v1065
    %v1342 = vpack.c.b16 %v1070, %v1066
    %v1343 = vpack.c.b16 %v1075, %v1071
    %v1344 = vpack.c.b16 %v1076, %v1072
    %v1345 = vpack.c.b16 %v1077, %v1073
    %v1346 = vpack.c.b16 %v1078, %v1074
    %v1347 = vpack.c.b16 %v1083, %v1079
    %v1348 = vpack.c.b16 %v1084, %v1080
    %v1349 = vpack.c.b16 %v1085, %v1081
    %v1350 = vpack.c.b16 %v1086, %v1082
    %v1351 = vpack.c.b16 %v1091, %v1087
    %v1352 = vpack.c.b16 %v1092, %v1088
    %v1353 = vpack.c.b16 %v1093, %v1089
    %v1354 = vpack.c.b16 %v1094, %v1090
    %v1355 = vpack.c.b16 %v1099, %v1095
    %v1356 = vpack.c.b16 %v1100, %v1096
    %v1357 = vpack.c.b16 %v1101, %v1097
    %v1358 = vpack.c.b16 %v1102, %v1098
    %v1359 = vpack.c.b16 %v1107, %v1103
    %v1360 = vpack.c.b16 %v1108, %v1104
    %v1361 = vpack.c.b16 %v1109, %v1105
    %v1362 = vpack.c.b16 %v1110, %v1106
    %v1363 = vpack.c.b16 %v1115, %v1111
    %v1364 = vpack.c.b16 %v1116, %v1112
    %v1365 = vpack.c.b16 %v1117, %v1113
    %v1366 = vpack.c.b16 %v1118, %v1114
    %v1367 = vpack.c.b16 %v1123, %v1119
    %v1368 = vpack.c.b16 %v1124, %v1120
    %v1369 = vpack.c.b16 %v1125, %v1121
    %v1370 = vpack.c.b16 %v1126, %v1122
    %v1371 = vpack.c.b16 %v1131, %v1127
    %v1372 = vpack.c.b16 %v1132, %v1128
    %v1373 = vpack.c.b16 %v1133, %v1129
    %v1374 = vpack.c.b16 %v1134, %v1130
    %v1375 = vpack.c.b16 %v1139, %v1135
    %v1376 = vpack.c.b16 %v1140, %v1136
    %v1377 = vpack.c.b16 %v1141, %v1137
    %v1378 = vpack.c.b16 %v1142, %v1138
    %v1379 = vpack.c.b16 %v1147, %v1143
    %v1380 = vpack.c.b16 %v1148, %v1144
    %v1381 = vpack.c.b16 %v1149, %v1145
    %v1382 = vpack.c.b16 %v1150, %v1146
    %v1383 = vpack.c.b16 %v1155, %v1151
    %v1384 = vpack.c.b16 %v1156, %v1152
    %v1385 = vpack.c.b16 %v1157, %v1153
    %v1386 = vpack.c.b16 %v1158, %v1154
    %v1387 = vpack.c.b16 %v1163, %v1159
    %v1388 = vpack.c.b16 %v1164, %v1160
    %v1389 = vpack.c.b16 %v1165, %v1161
    %v1390 = vpack.c.b16 %v1166, %v1162
    %v1391 = vpack.c.b16 %v1171, %v1167
    %v1392 = vpack.c.b16 %v1172, %v1168
    %v1393 = vpack.c.b16 %v1173, %v1169
    %v1394 = vpack.c.b16 %v1174, %v1170
    %v1395 = vpack.c.b16 %v1179, %v1175
    %v1396 = vpack.c.b16 %v1180, %v1176
    %v1397 = vpack.c.b16 %v1181, %v1177
    %v1398 = vpack.c.b16 %v1182, %v1178
    %v1399 = vpack.c.b16 %v1187, %v1183
    %v1400 = vpack.c.b16 %v1188, %v1184
    %v1401 = vpack.c.b16 %v1189, %v1185
    %v1402 = vpack.c.b16 %v1190, %v1186
    %v1403 = vpack.c.b16 %v1195, %v1191
    %v1404 = vpack.c.b16 %v1196, %v1192
    %v1405 = vpack.c.b16 %v1197, %v1193
    %v1406 = vpack.c.b16 %v1198, %v1194
    %v1407 = vpack.c.b16 %v1203, %v1199
    %v1408 = vpack.c.b16 %v1204, %v1200
    %v1409 = vpack.c.b16 %v1205, %v1201
    %v1410 = vpack.c.b16 %v1206, %v1202
    %v1411 = vpack.c.b16 %v1211, %v1207
    %v1412 = vpack.c.b16 %v1212, %v1208
    %v1413 = vpack.c.b16 %v1213, %v1209
    %v1414 = vpack.c.b16 %v1214, %v1210
    %v1415 = vpack.c.b16 %v1219, %v1215
    %v1416 = vpack.c.b16 %v1220, %v1216
    %v1417 = vpack.c.b16 %v1221, %v1217
    %v1418 = vpack.c.b16 %v1222, %v1218
    %vm1615 = vcmask 130048
    %v1617 = vsel %vm1615, %v628, 0
    %1619 = vmatprep.subr.bf16.mxu0 %v1252
    %1620 = vmatpush1.bf16.msra.mxu0 %v1251
    %1621 = vmatprep.subr.bf16.mxu0 %v1248
    %1622 = vmatpush1.bf16.msra.mxu0 %v1247
    %1623 = vmatprep.subr.bf16.mxu0 %v1244
    %1624 = vmatpush1.bf16.msra.mxu0 %v1243
    %1625 = vmatprep.subr.bf16.mxu0 %v1240
    %1626 = vmatpush1.bf16.msra.mxu0 %v1239
    %1627 = vmatprep.subr.bf16.mxu0 %v1236
    %1628 = vmatpush1.bf16.msra.mxu0 %v1235
    %1629 = vmatprep.subr.bf16.mxu0 %v1232
    %1630 = vmatpush1.bf16.msra.mxu0 %v1231
    %1631 = vmatprep.subr.bf16.mxu0 %v1228
    %1632 = vmatpush1.bf16.msra.mxu0 %v1227
    %1633 = vmatprep.subr.bf16.mxu0 %v1224
    %1634 = vmatpush1.bf16.msra.mxu0 %v1223
    %1635 = vmatprep.subr.bf16.mxu0 %v1284
    %1636 = vmatpush2.bf16.msra.mxu0 %v1283
    %1637 = vmatprep.subr.bf16.mxu0 %v1280
    %1638 = vmatpush2.bf16.msra.mxu0 %v1279
    %1639 = vmatprep.subr.bf16.mxu0 %v1276
    %1640 = vmatpush2.bf16.msra.mxu0 %v1275
    %1641 = vmatprep.subr.bf16.mxu0 %v1272
    %1642 = vmatpush2.bf16.msra.mxu0 %v1271
    %1643 = vmatprep.subr.bf16.mxu0 %v1268
    %1644 = vmatpush2.bf16.msra.mxu0 %v1267
    %1645 = vmatprep.subr.bf16.mxu0 %v1264
    %1646 = vmatpush2.bf16.msra.mxu0 %v1263
    %1647 = vmatprep.subr.bf16.mxu0 %v1260
    %1648 = vmatpush2.bf16.msra.mxu0 %v1259
    %1649 = vmatprep.subr.bf16.mxu0 %v1256
    %1650 = vmatpush2.bf16.msra.mxu0 %v1255
    %1651 = vmatprep.mubr.bf16.mxu0 %v623
    %1652 = vmatmul.mubr.bf16.gmra.mxu0 %v622
    %v1653 = vpop.f32.mrf.mxu0
    %v1654 = vadd.f32 %v564, %v1653
    %v1655 = vpop.f32.mrf.mxu0
    %v1656 = vadd.f32 %v566, %v1655
    %v1657 = vpop.f32.mrf.mxu0
    %v1658 = vpop.f32.mrf.mxu0
    %1659 = vdwg.mxu0
    %1660 = vmatprep.subr.bf16.mxu0 %v1316
    %1661 = vmatpush1.bf16.msra.mxu0 %v1315
    %1662 = vmatprep.subr.bf16.mxu0 %v1312
    %1663 = vmatpush1.bf16.msra.mxu0 %v1311
    %1664 = vmatprep.subr.bf16.mxu0 %v1308
    %1665 = vmatpush1.bf16.msra.mxu0 %v1307
    %1666 = vmatprep.subr.bf16.mxu0 %v1304
    %1667 = vmatpush1.bf16.msra.mxu0 %v1303
    %1668 = vmatprep.subr.bf16.mxu0 %v1300
    %1669 = vmatpush1.bf16.msra.mxu0 %v1299
    %1670 = vmatprep.subr.bf16.mxu0 %v1296
    %1671 = vmatpush1.bf16.msra.mxu0 %v1295
    %1672 = vmatprep.subr.bf16.mxu0 %v1292
    %1673 = vmatpush1.bf16.msra.mxu0 %v1291
    %1674 = vmatprep.subr.bf16.mxu0 %v1288
    %1675 = vmatpush1.bf16.msra.mxu0 %v1287
    %1676 = vmatprep.subr.bf16.mxu0 %v1348
    %1677 = vmatpush2.bf16.msra.mxu0 %v1347
    %1678 = vmatprep.subr.bf16.mxu0 %v1344
    %1679 = vmatpush2.bf16.msra.mxu0 %v1343
    %1680 = vmatprep.subr.bf16.mxu0 %v1340
    %1681 = vmatpush2.bf16.msra.mxu0 %v1339
    %1682 = vmatprep.subr.bf16.mxu0 %v1336
    %1683 = vmatpush2.bf16.msra.mxu0 %v1335
    %1684 = vmatprep.subr.bf16.mxu0 %v1332
    %1685 = vmatpush2.bf16.msra.mxu0 %v1331
    %1686 = vmatprep.subr.bf16.mxu0 %v1328
    %1687 = vmatpush2.bf16.msra.mxu0 %v1327
    %1688 = vmatprep.subr.bf16.mxu0 %v1324
    %1689 = vmatpush2.bf16.msra.mxu0 %v1323
    %1690 = vmatprep.subr.bf16.mxu0 %v1320
    %1691 = vmatpush2.bf16.msra.mxu0 %v1319
    %1692 = vmatprep.mubr.bf16.mxu0 %v625
    %1693 = vmatmul.mubr.bf16.gmra.mxu0 %v624
    %v1694 = vpop.f32.mrf.mxu0
    %v1695 = vadd.f32 %v1654, %v1694
    %v1696 = vpop.f32.mrf.mxu0
    %v1697 = vadd.f32 %v1656, %v1696
    %v1698 = vpop.f32.mrf.mxu0
    %v1699 = vpop.f32.mrf.mxu0
    %1700 = vdwg.mxu0
    %1701 = vmatprep.subr.bf16.mxu0 %v1380
    %1702 = vmatpush1.bf16.msra.mxu0 %v1379
    %1703 = vmatprep.subr.bf16.mxu0 %v1376
    %1704 = vmatpush1.bf16.msra.mxu0 %v1375
    %1705 = vmatprep.subr.bf16.mxu0 %v1372
    %1706 = vmatpush1.bf16.msra.mxu0 %v1371
    %1707 = vmatprep.subr.bf16.mxu0 %v1368
    %1708 = vmatpush1.bf16.msra.mxu0 %v1367
    %1709 = vmatprep.subr.bf16.mxu0 %v1364
    %1710 = vmatpush1.bf16.msra.mxu0 %v1363
    %1711 = vmatprep.subr.bf16.mxu0 %v1360
    %1712 = vmatpush1.bf16.msra.mxu0 %v1359
    %1713 = vmatprep.subr.bf16.mxu0 %v1356
    %1714 = vmatpush1.bf16.msra.mxu0 %v1355
    %1715 = vmatprep.subr.bf16.mxu0 %v1352
    %1716 = vmatpush1.bf16.msra.mxu0 %v1351
    %1717 = vmatprep.subr.bf16.mxu0 %v1412
    %1718 = vmatpush2.bf16.msra.mxu0 %v1411
    %1719 = vmatprep.subr.bf16.mxu0 %v1408
    %1720 = vmatpush2.bf16.msra.mxu0 %v1407
    %1721 = vmatprep.subr.bf16.mxu0 %v1404
    %1722 = vmatpush2.bf16.msra.mxu0 %v1403
    %1723 = vmatprep.subr.bf16.mxu0 %v1400
    %1724 = vmatpush2.bf16.msra.mxu0 %v1399
    %1725 = vmatprep.subr.bf16.mxu0 %v1396
    %1726 = vmatpush2.bf16.msra.mxu0 %v1395
    %1727 = vmatprep.subr.bf16.mxu0 %v1392
    %1728 = vmatpush2.bf16.msra.mxu0 %v1391
    %1729 = vmatprep.subr.bf16.mxu0 %v1388
    %1730 = vmatpush2.bf16.msra.mxu0 %v1387
    %1731 = vmatprep.subr.bf16.mxu0 %v1384
    %1732 = vmatpush2.bf16.msra.mxu0 %v1383
    %1733 = vmatprep.mubr.bf16.mxu0 %v627
    %1734 = vmatmul.mubr.bf16.gmra.mxu0 %v626
    %v1735 = vpop.f32.mrf.mxu0
    %v1736 = vadd.f32 %v1695, %v1735
    %v1737 = vpop.f32.mrf.mxu0
    %v1738 = vadd.f32 %v1697, %v1737
    %v1739 = vpop.f32.mrf.mxu0
    %v1740 = vpop.f32.mrf.mxu0
    %1741 = vdwg.mxu0
    %1742 = vmatprep.subr.bf16.mxu0 0
    %1743 = vmatpush1.bf16.msra.mxu0 0
    %1744 = vmatprep.subr.bf16.mxu0 0
    %1745 = vmatpush1.bf16.msra.mxu0 0
    %1746 = vmatprep.subr.bf16.mxu0 0
    %1747 = vmatpush1.bf16.msra.mxu0 0
    %1748 = vmatprep.subr.bf16.mxu0 0
    %1749 = vmatpush1.bf16.msra.mxu0 0
    %1750 = vmatprep.subr.bf16.mxu0 0
    %1751 = vmatpush1.bf16.msra.mxu0 0
    %1752 = vmatprep.subr.bf16.mxu0 0
    %1753 = vmatpush1.bf16.msra.mxu0 0
    %1754 = vmatprep.subr.bf16.mxu0 0
    %1755 = vmatpush1.bf16.msra.mxu0 0
    %1756 = vmatprep.subr.bf16.mxu0 %v1416
    %1757 = vmatpush1.bf16.msra.mxu0 %v1415
    %1758 = vmatprep.subr.bf16.mxu0 0
    %1759 = vmatpush2.bf16.msra.mxu0 0
    %1760 = vmatprep.subr.bf16.mxu0 0
    %1761 = vmatpush2.bf16.msra.mxu0 0
    %1762 = vmatprep.subr.bf16.mxu0 0
    %1763 = vmatpush2.bf16.msra.mxu0 0
    %1764 = vmatprep.subr.bf16.mxu0 0
    %1765 = vmatpush2.bf16.msra.mxu0 0
    %1766 = vmatprep.subr.bf16.mxu0 0
    %1767 = vmatpush2.bf16.msra.mxu0 0
    %1768 = vmatprep.subr.bf16.mxu0 0
    %1769 = vmatpush2.bf16.msra.mxu0 0
    %1770 = vmatprep.subr.bf16.mxu0 0
    %1771 = vmatpush2.bf16.msra.mxu0 0
    %1772 = vmatprep.subr.bf16.mxu0 0
    %1773 = vmatpush2.bf16.msra.mxu0 0
    %1774 = vmatprep.mubr.bf16.mxu0 0
    %1775 = vmatmul.mubr.bf16.gmra.mxu0 %v1617
    %v1776 = vpop.f32.mrf.mxu0
    %v1777 = vadd.f32 %v1736, %v1776
    %v1778 = vpop.f32.mrf.mxu0
    %v1779 = vadd.f32 %v1738, %v1778
    %v1780 = vpop.f32.mrf.mxu0
    %v1781 = vpop.f32.mrf.mxu0
    %1782 = vdwg.mxu0
    %1783 = vmatprep.subr.bf16.mxu0 %v1254
    %1784 = vmatpush1.bf16.msra.mxu0 %v1253
    %1785 = vmatprep.subr.bf16.mxu0 %v1250
    %1786 = vmatpush1.bf16.msra.mxu0 %v1249
    %1787 = vmatprep.subr.bf16.mxu0 %v1246
    %1788 = vmatpush1.bf16.msra.mxu0 %v1245
    %1789 = vmatprep.subr.bf16.mxu0 %v1242
    %1790 = vmatpush1.bf16.msra.mxu0 %v1241
    %1791 = vmatprep.subr.bf16.mxu0 %v1238
    %1792 = vmatpush1.bf16.msra.mxu0 %v1237
    %1793 = vmatprep.subr.bf16.mxu0 %v1234
    %1794 = vmatpush1.bf16.msra.mxu0 %v1233
    %1795 = vmatprep.subr.bf16.mxu0 %v1230
    %1796 = vmatpush1.bf16.msra.mxu0 %v1229
    %1797 = vmatprep.subr.bf16.mxu0 %v1226
    %1798 = vmatpush1.bf16.msra.mxu0 %v1225
    %1799 = vmatprep.subr.bf16.mxu0 %v1286
    %1800 = vmatpush2.bf16.msra.mxu0 %v1285
    %1801 = vmatprep.subr.bf16.mxu0 %v1282
    %1802 = vmatpush2.bf16.msra.mxu0 %v1281
    %1803 = vmatprep.subr.bf16.mxu0 %v1278
    %1804 = vmatpush2.bf16.msra.mxu0 %v1277
    %1805 = vmatprep.subr.bf16.mxu0 %v1274
    %1806 = vmatpush2.bf16.msra.mxu0 %v1273
    %1807 = vmatprep.subr.bf16.mxu0 %v1270
    %1808 = vmatpush2.bf16.msra.mxu0 %v1269
    %1809 = vmatprep.subr.bf16.mxu0 %v1266
    %1810 = vmatpush2.bf16.msra.mxu0 %v1265
    %1811 = vmatprep.subr.bf16.mxu0 %v1262
    %1812 = vmatpush2.bf16.msra.mxu0 %v1261
    %1813 = vmatprep.subr.bf16.mxu0 %v1258
    %1814 = vmatpush2.bf16.msra.mxu0 %v1257
    %1815 = vmatprep.mubr.bf16.mxu0 %v623
    %1816 = vmatmul.mubr.bf16.gmra.mxu0 %v622
    %v1817 = vpop.f32.mrf.mxu0
    %v1818 = vadd.f32 %v605, %v1817
    %v1819 = vpop.f32.mrf.mxu0
    %v1820 = vadd.f32 %v607, %v1819
    %v1821 = vpop.f32.mrf.mxu0
    %v1822 = vpop.f32.mrf.mxu0
    %1823 = vdwg.mxu0
    %1824 = vmatprep.subr.bf16.mxu0 %v1318
    %1825 = vmatpush1.bf16.msra.mxu0 %v1317
    %1826 = vmatprep.subr.bf16.mxu0 %v1314
    %1827 = vmatpush1.bf16.msra.mxu0 %v1313
    %1828 = vmatprep.subr.bf16.mxu0 %v1310
    %1829 = vmatpush1.bf16.msra.mxu0 %v1309
    %1830 = vmatprep.subr.bf16.mxu0 %v1306
    %1831 = vmatpush1.bf16.msra.mxu0 %v1305
    %1832 = vmatprep.subr.bf16.mxu0 %v1302
    %1833 = vmatpush1.bf16.msra.mxu0 %v1301
    %1834 = vmatprep.subr.bf16.mxu0 %v1298
    %1835 = vmatpush1.bf16.msra.mxu0 %v1297
    %1836 = vmatprep.subr.bf16.mxu0 %v1294
    %1837 = vmatpush1.bf16.msra.mxu0 %v1293
    %1838 = vmatprep.subr.bf16.mxu0 %v1290
    %1839 = vmatpush1.bf16.msra.mxu0 %v1289
    %1840 = vmatprep.subr.bf16.mxu0 %v1350
    %1841 = vmatpush2.bf16.msra.mxu0 %v1349
    %1842 = vmatprep.subr.bf16.mxu0 %v1346
    %1843 = vmatpush2.bf16.msra.mxu0 %v1345
    %1844 = vmatprep.subr.bf16.mxu0 %v1342
    %1845 = vmatpush2.bf16.msra.mxu0 %v1341
    %1846 = vmatprep.subr.bf16.mxu0 %v1338
    %1847 = vmatpush2.bf16.msra.mxu0 %v1337
    %1848 = vmatprep.subr.bf16.mxu0 %v1334
    %1849 = vmatpush2.bf16.msra.mxu0 %v1333
    %1850 = vmatprep.subr.bf16.mxu0 %v1330
    %1851 = vmatpush2.bf16.msra.mxu0 %v1329
    %1852 = vmatprep.subr.bf16.mxu0 %v1326
    %1853 = vmatpush2.bf16.msra.mxu0 %v1325
    %1854 = vmatprep.subr.bf16.mxu0 %v1322
    %1855 = vmatpush2.bf16.msra.mxu0 %v1321
    %1856 = vmatprep.mubr.bf16.mxu0 %v625
    %1857 = vmatmul.mubr.bf16.gmra.mxu0 %v624
    %v1858 = vpop.f32.mrf.mxu0
    %v1859 = vadd.f32 %v1818, %v1858
    %v1860 = vpop.f32.mrf.mxu0
    %v1861 = vadd.f32 %v1820, %v1860
    %v1862 = vpop.f32.mrf.mxu0
    %v1863 = vpop.f32.mrf.mxu0
    %1864 = vdwg.mxu0
    %1865 = vmatprep.subr.bf16.mxu0 %v1382
    %1866 = vmatpush1.bf16.msra.mxu0 %v1381
    %1867 = vmatprep.subr.bf16.mxu0 %v1378
    %1868 = vmatpush1.bf16.msra.mxu0 %v1377
    %1869 = vmatprep.subr.bf16.mxu0 %v1374
    %1870 = vmatpush1.bf16.msra.mxu0 %v1373
    %1871 = vmatprep.subr.bf16.mxu0 %v1370
    %1872 = vmatpush1.bf16.msra.mxu0 %v1369
    %1873 = vmatprep.subr.bf16.mxu0 %v1366
    %1874 = vmatpush1.bf16.msra.mxu0 %v1365
    %1875 = vmatprep.subr.bf16.mxu0 %v1362
    %1876 = vmatpush1.bf16.msra.mxu0 %v1361
    %1877 = vmatprep.subr.bf16.mxu0 %v1358
    %1878 = vmatpush1.bf16.msra.mxu0 %v1357
    %1879 = vmatprep.subr.bf16.mxu0 %v1354
    %1880 = vmatpush1.bf16.msra.mxu0 %v1353
    %1881 = vmatprep.subr.bf16.mxu0 %v1414
    %1882 = vmatpush2.bf16.msra.mxu0 %v1413
    %1883 = vmatprep.subr.bf16.mxu0 %v1410
    %1884 = vmatpush2.bf16.msra.mxu0 %v1409
    %1885 = vmatprep.subr.bf16.mxu0 %v1406
    %1886 = vmatpush2.bf16.msra.mxu0 %v1405
    %1887 = vmatprep.subr.bf16.mxu0 %v1402
    %1888 = vmatpush2.bf16.msra.mxu0 %v1401
    %1889 = vmatprep.subr.bf16.mxu0 %v1398
    %1890 = vmatpush2.bf16.msra.mxu0 %v1397
    %1891 = vmatprep.subr.bf16.mxu0 %v1394
    %1892 = vmatpush2.bf16.msra.mxu0 %v1393
    %1893 = vmatprep.subr.bf16.mxu0 %v1390
    %1894 = vmatpush2.bf16.msra.mxu0 %v1389
    %1895 = vmatprep.subr.bf16.mxu0 %v1386
    %1896 = vmatpush2.bf16.msra.mxu0 %v1385
    %1897 = vmatprep.mubr.bf16.mxu0 %v627
    %1898 = vmatmul.mubr.bf16.gmra.mxu0 %v626
    %v1899 = vpop.f32.mrf.mxu0
    %v1900 = vadd.f32 %v1859, %v1899
    %v1901 = vpop.f32.mrf.mxu0
    %v1902 = vadd.f32 %v1861, %v1901
    %v1903 = vpop.f32.mrf.mxu0
    %v1904 = vpop.f32.mrf.mxu0
    %1905 = vdwg.mxu0
    %1906 = vmatprep.subr.bf16.mxu0 0
    %1907 = vmatpush1.bf16.msra.mxu0 0
    %1908 = vmatprep.subr.bf16.mxu0 0
    %1909 = vmatpush1.bf16.msra.mxu0 0
    %1910 = vmatprep.subr.bf16.mxu0 0
    %1911 = vmatpush1.bf16.msra.mxu0 0
    %1912 = vmatprep.subr.bf16.mxu0 0
    %1913 = vmatpush1.bf16.msra.mxu0 0
    %1914 = vmatprep.subr.bf16.mxu0 0
    %1915 = vmatpush1.bf16.msra.mxu0 0
    %1916 = vmatprep.subr.bf16.mxu0 0
    %1917 = vmatpush1.bf16.msra.mxu0 0
    %1918 = vmatprep.subr.bf16.mxu0 0
    %1919 = vmatpush1.bf16.msra.mxu0 0
    %1920 = vmatprep.subr.bf16.mxu0 %v1418
    %1921 = vmatpush1.bf16.msra.mxu0 %v1417
    %1922 = vmatprep.subr.bf16.mxu0 0
    %1923 = vmatpush2.bf16.msra.mxu0 0
    %1924 = vmatprep.subr.bf16.mxu0 0
    %1925 = vmatpush2.bf16.msra.mxu0 0
    %1926 = vmatprep.subr.bf16.mxu0 0
    %1927 = vmatpush2.bf16.msra.mxu0 0
    %1928 = vmatprep.subr.bf16.mxu0 0
    %1929 = vmatpush2.bf16.msra.mxu0 0
    %1930 = vmatprep.subr.bf16.mxu0 0
    %1931 = vmatpush2.bf16.msra.mxu0 0
    %1932 = vmatprep.subr.bf16.mxu0 0
    %1933 = vmatpush2.bf16.msra.mxu0 0
    %1934 = vmatprep.subr.bf16.mxu0 0
    %1935 = vmatpush2.bf16.msra.mxu0 0
    %1936 = vmatprep.subr.bf16.mxu0 0
    %1937 = vmatpush2.bf16.msra.mxu0 0
    %1938 = vmatprep.mubr.bf16.mxu0 0
    %1939 = vmatmul.mubr.bf16.gmra.mxu0 %v1617
    %v1940 = vpop.f32.mrf.mxu0
    %v1941 = vadd.f32 %v1900, %v1940
    %v1942 = vpop.f32.mrf.mxu0
    %v1943 = vadd.f32 %v1902, %v1942
    %v1944 = vpop.f32.mrf.mxu0
    %v1945 = vpop.f32.mrf.mxu0
    %1946 = vdwg.mxu0
    %v1947 = vld [vmem:[%s4] sm:$0xf]
    %v1949 = vlaneseq
    %v1950 = vshrl.u32 %v1949, 7
    %v1951 = vsub.s32 0, %v1950
    %v1952 = vrot.slane %v1947, %v1951
    %v1953 = vlaneseq
    %v1954 = vshrl.u32 %v1953, 7
    %v1955 = vsub.s32 1, %v1954
    %v1956 = vrot.slane %v1947, %v1955
    %v1957 = vlaneseq
    %v1958 = vshrl.u32 %v1957, 7
    %v1959 = vsub.s32 2, %v1958
    %v1960 = vrot.slane %v1947, %v1959
    %v1961 = vlaneseq
    %v1962 = vshrl.u32 %v1961, 7
    %v1963 = vsub.s32 3, %v1962
    %v1964 = vrot.slane %v1947, %v1963
    %v1969 = vadd.f32 %v1777, %v1952
    %v1970 = vadd.f32 %v1779, %v1956
    %v1971 = vadd.f32 %v1941, %v1960
    %v1972 = vadd.f32 %v1943, %v1964
    %v1973 = vmax.f32 %v1969, 0.0
    %v1974 = vmax.f32 %v1970, 0.0
    %v1975 = vmax.f32 %v1971, 0.0
    %v1976 = vmax.f32 %v1972, 0.0
    %v1977 = vpack.c.bf16 %v1973, %v1973
    %v1978 = vpack.c.bf16 %v1974, %v1974
    %v1979 = vpack.c.bf16 %v1975, %v1975
    %v1980 = vpack.c.bf16 %v1976, %v1976
    %v1981 = vld [vmem:[#allocation6] sm:$0xff]
    %v1982 = vld [vmem:[#allocation6 + $0x8] sm:$0xff]
    %v1983 = vld [vmem:[#allocation6 + $0x10] sm:$0xff]
    %v1984 = vld [vmem:[#allocation6 + $0x18] sm:$0xff]
    %v1985 = vld [vmem:[#allocation6 + $0x20] sm:$0xff]
    %v1986 = vld [vmem:[#allocation6 + $0x28] sm:$0xff]
    %v1987 = vld [vmem:[#allocation6 + $0x30] sm:$0xff]
    %v1988 = vld [vmem:[#allocation6 + $0x38] sm:$0xff]
    %v1989 = vld [vmem:[#allocation6 + $0x40] sm:$0xff]
    %v1990 = vld [vmem:[#allocation6 + $0x48] sm:$0xff]
    %v1991 = vld [vmem:[#allocation6 + $0x50] sm:$0xff]
    %v1992 = vld [vmem:[#allocation6 + $0x58] sm:$0xff]
    %v1993 = vld [vmem:[#allocation6 + $0x60] sm:$0xff]
    %v1994 = vld [vmem:[#allocation6 + $0x68] sm:$0xff]
    %v1995 = vld [vmem:[#allocation6 + $0x70] sm:$0xff]
    %v1996 = vld [vmem:[#allocation6 + $0x78] sm:$0xff]
    %v1997 = vld [vmem:[#allocation6 + $0x80] sm:$0xff]
    %v1998 = vld [vmem:[#allocation6 + $0x88] sm:$0xff]
    %v1999 = vld [vmem:[#allocation6 + $0x90] sm:$0xff]
    %v2000 = vld [vmem:[#allocation6 + $0x98] sm:$0xff]
    %v2001 = vld [vmem:[#allocation6 + $0xa0] sm:$0xff]
    %v2002 = vld [vmem:[#allocation6 + $0xa8] sm:$0xff]
    %v2003 = vld [vmem:[#allocation6 + $0xb0] sm:$0xff]
    %v2004 = vld [vmem:[#allocation6 + $0xb8] sm:$0xff]
    %v2005 = vld [vmem:[#allocation6 + $0xc0] sm:$0xff]
    %v2006 = vld [vmem:[#allocation6 + $0xc8] sm:$0xff]
    %v2007 = vld [vmem:[#allocation6 + $0xd0] sm:$0xff]
    %v2008 = vld [vmem:[#allocation6 + $0xd8] sm:$0xff]
    %v2009 = vld [vmem:[#allocation6 + $0xe0] sm:$0xff]
    %v2010 = vld [vmem:[#allocation6 + $0xe8] sm:$0xff]
    %v2011 = vld [vmem:[#allocation6 + $0xf0] sm:$0xff]
    %v2012 = vld [vmem:[#allocation6 + $0xf8] sm:$0xff]
    %v2013 = vld [vmem:[#allocation6 + $0x100] sm:$0xff]
    %v2014 = vld [vmem:[#allocation6 + $0x108] sm:$0xff]
    %v2015 = vld [vmem:[#allocation6 + $0x110] sm:$0xff]
    %v2016 = vld [vmem:[#allocation6 + $0x118] sm:$0xff]
    %v2017 = vld [vmem:[#allocation6 + $0x120] sm:$0xff]
    %v2018 = vld [vmem:[#allocation6 + $0x128] sm:$0xff]
    %v2019 = vld [vmem:[#allocation6 + $0x130] sm:$0xff]
    %v2020 = vld [vmem:[#allocation6 + $0x138] sm:$0xff]
    %v2021 = vld [vmem:[#allocation6 + $0x140] sm:$0xff]
    %v2022 = vld [vmem:[#allocation6 + $0x148] sm:$0xff]
    %v2023 = vld [vmem:[#allocation6 + $0x150] sm:$0xff]
    %v2024 = vld [vmem:[#allocation6 + $0x158] sm:$0xff]
    %v2025 = vld [vmem:[#allocation6 + $0x160] sm:$0xff]
    %v2026 = vld [vmem:[#allocation6 + $0x168] sm:$0xff]
    %v2027 = vld [vmem:[#allocation6 + $0x170] sm:$0xff]
    %v2028 = vld [vmem:[#allocation6 + $0x178] sm:$0xff]
    %v2029 = vld [vmem:[#allocation6 + $0x180] sm:$0xff]
    %v2030 = vld [vmem:[#allocation6 + $0x188] sm:$0xff]
    %v2031 = vld [vmem:[#allocation6 + $0x190] sm:$0xff]
    %v2032 = vld [vmem:[#allocation6 + $0x198] sm:$0xff]
    %v2033 = vld [vmem:[#allocation6 + $0x1a0] sm:$0xff]
    %v2034 = vld [vmem:[#allocation6 + $0x1a8] sm:$0xff]
    %v2035 = vld [vmem:[#allocation6 + $0x1b0] sm:$0xff]
    %v2036 = vld [vmem:[#allocation6 + $0x1b8] sm:$0xff]
    %v2037 = vld [vmem:[#allocation6 + $0x1c0] sm:$0xff]
    %v2038 = vld [vmem:[#allocation6 + $0x1c8] sm:$0xff]
    %v2039 = vld [vmem:[#allocation6 + $0x1d0] sm:$0xff]
    %v2040 = vld [vmem:[#allocation6 + $0x1d8] sm:$0xff]
    %v2041 = vld [vmem:[#allocation6 + $0x1e0] sm:$0xff]
    %v2042 = vld [vmem:[#allocation6 + $0x1e8] sm:$0xff]
    %v2043 = vld [vmem:[#allocation6 + $0x1f0] sm:$0xff]
    %v2044 = vld [vmem:[#allocation6 + $0x1f8] sm:$0xff]
    %v2045 = vld [vmem:[%s6] sm:$0x3]
    %v2047 = vlaneseq
    %v2048 = vshrl.u32 %v2047, 7
    %v2049 = vsub.s32 0, %v2048
    %v2050 = vrot.slane %v2045, %v2049
    %v2051 = vlaneseq
    %v2052 = vshrl.u32 %v2051, 7
    %v2053 = vsub.s32 1, %v2052
    %v2054 = vrot.slane %v2045, %v2053
    %v2121 = vunpack.c.l.b16 %v1981
    %v2122 = vunpack.c.h.b16 %v1981
    %v2123 = vunpack.c.l.b16 %v1982
    %v2124 = vunpack.c.h.b16 %v1982
    %v2125 = vunpack.c.l.b16 %v1983
    %v2126 = vunpack.c.h.b16 %v1983
    %v2127 = vunpack.c.l.b16 %v1984
    %v2128 = vunpack.c.h.b16 %v1984
    %v2129 = vunpack.c.l.b16 %v1985
    %v2130 = vunpack.c.h.b16 %v1985
    %v2131 = vunpack.c.l.b16 %v1986
    %v2132 = vunpack.c.h.b16 %v1986
    %v2133 = vunpack.c.l.b16 %v1987
    %v2134 = vunpack.c.h.b16 %v1987
    %v2135 = vunpack.c.l.b16 %v1988
    %v2136 = vunpack.c.h.b16 %v1988
    %v2137 = vunpack.c.l.b16 %v1989
    %v2138 = vunpack.c.h.b16 %v1989
    %v2139 = vunpack.c.l.b16 %v1990
    %v2140 = vunpack.c.h.b16 %v1990
    %v2141 = vunpack.c.l.b16 %v1991
    %v2142 = vunpack.c.h.b16 %v1991
    %v2143 = vunpack.c.l.b16 %v1992
    %v2144 = vunpack.c.h.b16 %v1992
    %v2145 = vunpack.c.l.b16 %v1993
    %v2146 = vunpack.c.h.b16 %v1993
    %v2147 = vunpack.c.l.b16 %v1994
    %v2148 = vunpack.c.h.b16 %v1994
    %v2149 = vunpack.c.l.b16 %v1995
    %v2150 = vunpack.c.h.b16 %v1995
    %v2151 = vunpack.c.l.b16 %v1996
    %v2152 = vunpack.c.h.b16 %v1996
    %v2153 = vunpack.c.l.b16 %v1997
    %v2154 = vunpack.c.h.b16 %v1997
    %v2155 = vunpack.c.l.b16 %v1998
    %v2156 = vunpack.c.h.b16 %v1998
    %v2157 = vunpack.c.l.b16 %v1999
    %v2158 = vunpack.c.h.b16 %v1999
    %v2159 = vunpack.c.l.b16 %v2000
    %v2160 = vunpack.c.h.b16 %v2000
    %v2161 = vunpack.c.l.b16 %v2001
    %v2162 = vunpack.c.h.b16 %v2001
    %v2163 = vunpack.c.l.b16 %v2002
    %v2164 = vunpack.c.h.b16 %v2002
    %v2165 = vunpack.c.l.b16 %v2003
    %v2166 = vunpack.c.h.b16 %v2003
    %v2167 = vunpack.c.l.b16 %v2004
    %v2168 = vunpack.c.h.b16 %v2004
    %v2169 = vunpack.c.l.b16 %v2005
    %v2170 = vunpack.c.h.b16 %v2005
    %v2171 = vunpack.c.l.b16 %v2006
    %v2172 = vunpack.c.h.b16 %v2006
    %v2173 = vunpack.c.l.b16 %v2007
    %v2174 = vunpack.c.h.b16 %v2007
    %v2175 = vunpack.c.l.b16 %v2008
    %v2176 = vunpack.c.h.b16 %v2008
    %v2177 = vunpack.c.l.b16 %v2009
    %v2178 = vunpack.c.h.b16 %v2009
    %v2179 = vunpack.c.l.b16 %v2010
    %v2180 = vunpack.c.h.b16 %v2010
    %v2181 = vunpack.c.l.b16 %v2011
    %v2182 = vunpack.c.h.b16 %v2011
    %v2183 = vunpack.c.l.b16 %v2012
    %v2184 = vunpack.c.h.b16 %v2012
    %v2185 = vunpack.c.l.b16 %v2013
    %v2186 = vunpack.c.h.b16 %v2013
    %v2187 = vunpack.c.l.b16 %v2014
    %v2188 = vunpack.c.h.b16 %v2014
    %v2189 = vunpack.c.l.b16 %v2015
    %v2190 = vunpack.c.h.b16 %v2015
    %v2191 = vunpack.c.l.b16 %v2016
    %v2192 = vunpack.c.h.b16 %v2016
    %v2193 = vunpack.c.l.b16 %v2017
    %v2194 = vunpack.c.h.b16 %v2017
    %v2195 = vunpack.c.l.b16 %v2018
    %v2196 = vunpack.c.h.b16 %v2018
    %v2197 = vunpack.c.l.b16 %v2019
    %v2198 = vunpack.c.h.b16 %v2019
    %v2199 = vunpack.c.l.b16 %v2020
    %v2200 = vunpack.c.h.b16 %v2020
    %v2201 = vunpack.c.l.b16 %v2021
    %v2202 = vunpack.c.h.b16 %v2021
    %v2203 = vunpack.c.l.b16 %v2022
    %v2204 = vunpack.c.h.b16 %v2022
    %v2205 = vunpack.c.l.b16 %v2023
    %v2206 = vunpack.c.h.b16 %v2023
    %v2207 = vunpack.c.l.b16 %v2024
    %v2208 = vunpack.c.h.b16 %v2024
    %v2209 = vunpack.c.l.b16 %v2025
    %v2210 = vunpack.c.h.b16 %v2025
    %v2211 = vunpack.c.l.b16 %v2026
    %v2212 = vunpack.c.h.b16 %v2026
    %v2213 = vunpack.c.l.b16 %v2027
    %v2214 = vunpack.c.h.b16 %v2027
    %v2215 = vunpack.c.l.b16 %v2028
    %v2216 = vunpack.c.h.b16 %v2028
    %v2217 = vunpack.c.l.b16 %v2029
    %v2218 = vunpack.c.h.b16 %v2029
    %v2219 = vunpack.c.l.b16 %v2030
    %v2220 = vunpack.c.h.b16 %v2030
    %v2221 = vunpack.c.l.b16 %v2031
    %v2222 = vunpack.c.h.b16 %v2031
    %v2223 = vunpack.c.l.b16 %v2032
    %v2224 = vunpack.c.h.b16 %v2032
    %v2225 = vunpack.c.l.b16 %v2033
    %v2226 = vunpack.c.h.b16 %v2033
    %v2227 = vunpack.c.l.b16 %v2034
    %v2228 = vunpack.c.h.b16 %v2034
    %v2229 = vunpack.c.l.b16 %v2035
    %v2230 = vunpack.c.h.b16 %v2035
    %v2231 = vunpack.c.l.b16 %v2036
    %v2232 = vunpack.c.h.b16 %v2036
    %v2233 = vunpack.c.l.b16 %v2037
    %v2234 = vunpack.c.h.b16 %v2037
    %v2235 = vunpack.c.l.b16 %v2038
    %v2236 = vunpack.c.h.b16 %v2038
    %v2237 = vunpack.c.l.b16 %v2039
    %v2238 = vunpack.c.h.b16 %v2039
    %v2239 = vunpack.c.l.b16 %v2040
    %v2240 = vunpack.c.h.b16 %v2040
    %v2241 = vunpack.c.l.b16 %v2041
    %v2242 = vunpack.c.h.b16 %v2041
    %v2243 = vunpack.c.l.b16 %v2042
    %v2244 = vunpack.c.h.b16 %v2042
    %v2245 = vunpack.c.l.b16 %v2043
    %v2246 = vunpack.c.h.b16 %v2043
    %v2247 = vunpack.c.l.b16 %v2044
    %v2248 = vunpack.c.h.b16 %v2044
    %v2249 = vpack.c.b16 %v2123, %v2121
    %v2250 = vpack.c.b16 %v2124, %v2122
    %v2251 = vpack.c.b16 %v2127, %v2125
    %v2252 = vpack.c.b16 %v2128, %v2126
    %v2253 = vpack.c.b16 %v2131, %v2129
    %v2254 = vpack.c.b16 %v2132, %v2130
    %v2255 = vpack.c.b16 %v2135, %v2133
    %v2256 = vpack.c.b16 %v2136, %v2134
    %v2257 = vpack.c.b16 %v2139, %v2137
    %v2258 = vpack.c.b16 %v2140, %v2138
    %v2259 = vpack.c.b16 %v2143, %v2141
    %v2260 = vpack.c.b16 %v2144, %v2142
    %v2261 = vpack.c.b16 %v2147, %v2145
    %v2262 = vpack.c.b16 %v2148, %v2146
    %v2263 = vpack.c.b16 %v2151, %v2149
    %v2264 = vpack.c.b16 %v2152, %v2150
    %v2265 = vpack.c.b16 %v2155, %v2153
    %v2266 = vpack.c.b16 %v2156, %v2154
    %v2267 = vpack.c.b16 %v2159, %v2157
    %v2268 = vpack.c.b16 %v2160, %v2158
    %v2269 = vpack.c.b16 %v2163, %v2161
    %v2270 = vpack.c.b16 %v2164, %v2162
    %v2271 = vpack.c.b16 %v2167, %v2165
    %v2272 = vpack.c.b16 %v2168, %v2166
    %v2273 = vpack.c.b16 %v2171, %v2169
    %v2274 = vpack.c.b16 %v2172, %v2170
    %v2275 = vpack.c.b16 %v2175, %v2173
    %v2276 = vpack.c.b16 %v2176, %v2174
    %v2277 = vpack.c.b16 %v2179, %v2177
    %v2278 = vpack.c.b16 %v2180, %v2178
    %v2279 = vpack.c.b16 %v2183, %v2181
    %v2280 = vpack.c.b16 %v2184, %v2182
    %v2281 = vpack.c.b16 %v2187, %v2185
    %v2282 = vpack.c.b16 %v2188, %v2186
    %v2283 = vpack.c.b16 %v2191, %v2189
    %v2284 = vpack.c.b16 %v2192, %v2190
    %v2285 = vpack.c.b16 %v2195, %v2193
    %v2286 = vpack.c.b16 %v2196, %v2194
    %v2287 = vpack.c.b16 %v2199, %v2197
    %v2288 = vpack.c.b16 %v2200, %v2198
    %v2289 = vpack.c.b16 %v2203, %v2201
    %v2290 = vpack.c.b16 %v2204, %v2202
    %v2291 = vpack.c.b16 %v2207, %v2205
    %v2292 = vpack.c.b16 %v2208, %v2206
    %v2293 = vpack.c.b16 %v2211, %v2209
    %v2294 = vpack.c.b16 %v2212, %v2210
    %v2295 = vpack.c.b16 %v2215, %v2213
    %v2296 = vpack.c.b16 %v2216, %v2214
    %v2297 = vpack.c.b16 %v2219, %v2217
    %v2298 = vpack.c.b16 %v2220, %v2218
    %v2299 = vpack.c.b16 %v2223, %v2221
    %v2300 = vpack.c.b16 %v2224, %v2222
    %v2301 = vpack.c.b16 %v2227, %v2225
    %v2302 = vpack.c.b16 %v2228, %v2226
    %v2303 = vpack.c.b16 %v2231, %v2229
    %v2304 = vpack.c.b16 %v2232, %v2230
    %v2305 = vpack.c.b16 %v2235, %v2233
    %v2306 = vpack.c.b16 %v2236, %v2234
    %v2307 = vpack.c.b16 %v2239, %v2237
    %v2308 = vpack.c.b16 %v2240, %v2238
    %v2309 = vpack.c.b16 %v2243, %v2241
    %v2310 = vpack.c.b16 %v2244, %v2242
    %v2311 = vpack.c.b16 %v2247, %v2245
    %v2312 = vpack.c.b16 %v2248, %v2246
    %2377 = vmatprep.subr.bf16.mxu0 %v2264
    %2378 = vmatpush1.bf16.msra.mxu0 %v2263
    %2379 = vmatprep.subr.bf16.mxu0 %v2262
    %2380 = vmatpush1.bf16.msra.mxu0 %v2261
    %2381 = vmatprep.subr.bf16.mxu0 %v2260
    %2382 = vmatpush1.bf16.msra.mxu0 %v2259
    %2383 = vmatprep.subr.bf16.mxu0 %v2258
    %2384 = vmatpush1.bf16.msra.mxu0 %v2257
    %2385 = vmatprep.subr.bf16.mxu0 %v2256
    %2386 = vmatpush1.bf16.msra.mxu0 %v2255
    %2387 = vmatprep.subr.bf16.mxu0 %v2254
    %2388 = vmatpush1.bf16.msra.mxu0 %v2253
    %2389 = vmatprep.subr.bf16.mxu0 %v2252
    %2390 = vmatpush1.bf16.msra.mxu0 %v2251
    %2391 = vmatprep.subr.bf16.mxu0 %v2250
    %2392 = vmatpush1.bf16.msra.mxu0 %v2249
    %2393 = vmatprep.subr.bf16.mxu0 %v2280
    %2394 = vmatpush2.bf16.msra.mxu0 %v2279
    %2395 = vmatprep.subr.bf16.mxu0 %v2278
    %2396 = vmatpush2.bf16.msra.mxu0 %v2277
    %2397 = vmatprep.subr.bf16.mxu0 %v2276
    %2398 = vmatpush2.bf16.msra.mxu0 %v2275
    %2399 = vmatprep.subr.bf16.mxu0 %v2274
    %2400 = vmatpush2.bf16.msra.mxu0 %v2273
    %2401 = vmatprep.subr.bf16.mxu0 %v2272
    %2402 = vmatpush2.bf16.msra.mxu0 %v2271
    %2403 = vmatprep.subr.bf16.mxu0 %v2270
    %2404 = vmatpush2.bf16.msra.mxu0 %v2269
    %2405 = vmatprep.subr.bf16.mxu0 %v2268
    %2406 = vmatpush2.bf16.msra.mxu0 %v2267
    %2407 = vmatprep.subr.bf16.mxu0 %v2266
    %2408 = vmatpush2.bf16.msra.mxu0 %v2265
    %2409 = vmatprep.mubr.bf16.mxu0 %v1978
    %2410 = vmatmul.mubr.bf16.gmra.mxu0 %v1977
    %v2411 = vpop.f32.mrf.mxu0
    %v2412 = vadd.f32 %v2050, %v2411
    %v2413 = vpop.f32.mrf.mxu0
    %v2414 = vadd.f32 %v2054, %v2413
    %v2415 = vpop.f32.mrf.mxu0
    %v2416 = vpop.f32.mrf.mxu0
    %2417 = vdwg.mxu0
    %2418 = vmatprep.subr.bf16.mxu0 %v2296
    %2419 = vmatpush1.bf16.msra.mxu0 %v2295
    %2420 = vmatprep.subr.bf16.mxu0 %v2294
    %2421 = vmatpush1.bf16.msra.mxu0 %v2293
    %2422 = vmatprep.subr.bf16.mxu0 %v2292
    %2423 = vmatpush1.bf16.msra.mxu0 %v2291
    %2424 = vmatprep.subr.bf16.mxu0 %v2290
    %2425 = vmatpush1.bf16.msra.mxu0 %v2289
    %2426 = vmatprep.subr.bf16.mxu0 %v2288
    %2427 = vmatpush1.bf16.msra.mxu0 %v2287
    %2428 = vmatprep.subr.bf16.mxu0 %v2286
    %2429 = vmatpush1.bf16.msra.mxu0 %v2285
    %2430 = vmatprep.subr.bf16.mxu0 %v2284
    %2431 = vmatpush1.bf16.msra.mxu0 %v2283
    %2432 = vmatprep.subr.bf16.mxu0 %v2282
    %2433 = vmatpush1.bf16.msra.mxu0 %v2281
    %2434 = vmatprep.subr.bf16.mxu0 %v2312
    %2435 = vmatpush2.bf16.msra.mxu0 %v2311
    %2436 = vmatprep.subr.bf16.mxu0 %v2310
    %2437 = vmatpush2.bf16.msra.mxu0 %v2309
    %2438 = vmatprep.subr.bf16.mxu0 %v2308
    %2439 = vmatpush2.bf16.msra.mxu0 %v2307
    %2440 = vmatprep.subr.bf16.mxu0 %v2306
    %2441 = vmatpush2.bf16.msra.mxu0 %v2305
    %2442 = vmatprep.subr.bf16.mxu0 %v2304
    %2443 = vmatpush2.bf16.msra.mxu0 %v2303
    %2444 = vmatprep.subr.bf16.mxu0 %v2302
    %2445 = vmatpush2.bf16.msra.mxu0 %v2301
    %2446 = vmatprep.subr.bf16.mxu0 %v2300
    %2447 = vmatpush2.bf16.msra.mxu0 %v2299
    %2448 = vmatprep.subr.bf16.mxu0 %v2298
    %2449 = vmatpush2.bf16.msra.mxu0 %v2297
    %2450 = vmatprep.mubr.bf16.mxu0 %v1980
    %2451 = vmatmul.mubr.bf16.gmra.mxu0 %v1979
    %v2452 = vpop.f32.mrf.mxu0
    %v2453 = vadd.f32 %v2412, %v2452
    %v2454 = vpop.f32.mrf.mxu0
    %v2455 = vadd.f32 %v2414, %v2454
    %v2456 = vpop.f32.mrf.mxu0
    %v2457 = vpop.f32.mrf.mxu0
    %2458 = vdwg.mxu0
    %v2459 = vmax.f32 %v2453, 0.0
    %v2460 = vmax.f32 %v2455, 0.0
    %v2461 = vpack.c.bf16 %v2459, %v2459
    %v2462 = vpack.c.bf16 %v2460, %v2460
    %v2463 = vld [vmem:[#allocation7] sm:$0xff]
    %v2464 = vld [vmem:[#allocation7 + $0x8] sm:$0xff]
    %v2465 = vld [vmem:[#allocation7 + $0x10] sm:$0xff]
    %v2466 = vld [vmem:[#allocation7 + $0x18] sm:$0xff]
    %v2467 = vld [vmem:[#allocation7 + $0x20] sm:$0xff]
    %v2468 = vld [vmem:[#allocation7 + $0x28] sm:$0xff]
    %v2469 = vld [vmem:[#allocation7 + $0x30] sm:$0xff]
    %v2470 = vld [vmem:[#allocation7 + $0x38] sm:$0xff]
    %v2471 = vld [vmem:[#allocation7 + $0x40] sm:$0xff]
    %v2472 = vld [vmem:[#allocation7 + $0x48] sm:$0xff]
    %v2473 = vld [vmem:[#allocation7 + $0x50] sm:$0xff]
    %v2474 = vld [vmem:[#allocation7 + $0x58] sm:$0xff]
    %v2475 = vld [vmem:[#allocation7 + $0x60] sm:$0xff]
    %v2476 = vld [vmem:[#allocation7 + $0x68] sm:$0xff]
    %v2477 = vld [vmem:[#allocation7 + $0x70] sm:$0xff]
    %v2478 = vld [vmem:[#allocation7 + $0x78] sm:$0xff]
    %v2479 = vld [vmem:[#allocation7 + $0x80] sm:$0xff]
    %v2480 = vld [vmem:[#allocation7 + $0x88] sm:$0xff]
    %v2481 = vld [vmem:[#allocation7 + $0x90] sm:$0xff]
    %v2482 = vld [vmem:[#allocation7 + $0x98] sm:$0xff]
    %v2483 = vld [vmem:[#allocation7 + $0xa0] sm:$0xff]
    %v2484 = vld [vmem:[#allocation7 + $0xa8] sm:$0xff]
    %v2485 = vld [vmem:[#allocation7 + $0xb0] sm:$0xff]
    %v2486 = vld [vmem:[#allocation7 + $0xb8] sm:$0xff]
    %v2487 = vld [vmem:[#allocation7 + $0xc0] sm:$0xff]
    %v2488 = vld [vmem:[#allocation7 + $0xc8] sm:$0xff]
    %v2489 = vld [vmem:[#allocation7 + $0xd0] sm:$0xff]
    %v2490 = vld [vmem:[#allocation7 + $0xd8] sm:$0xff]
    %v2491 = vld [vmem:[#allocation7 + $0xe0] sm:$0xff]
    %v2492 = vld [vmem:[#allocation7 + $0xe8] sm:$0xff]
    %v2493 = vld [vmem:[#allocation7 + $0xf0] sm:$0xff]
    %v2494 = vld [vmem:[#allocation7 + $0xf8] sm:$0xff]
    %v2495 = vld [vmem:[%s8] sm:$0x3]
    %v2497 = vlaneseq
    %v2498 = vshrl.u32 %v2497, 7
    %v2499 = vsub.s32 0, %v2498
    %v2500 = vrot.slane %v2495, %v2499
    %v2501 = vlaneseq
    %v2502 = vshrl.u32 %v2501, 7
    %v2503 = vsub.s32 1, %v2502
    %v2504 = vrot.slane %v2495, %v2503
    %v2539 = vunpack.c.l.b16 %v2463
    %v2540 = vunpack.c.h.b16 %v2463
    %v2541 = vunpack.c.l.b16 %v2464
    %v2542 = vunpack.c.h.b16 %v2464
    %v2543 = vunpack.c.l.b16 %v2465
    %v2544 = vunpack.c.h.b16 %v2465
    %v2545 = vunpack.c.l.b16 %v2466
    %v2546 = vunpack.c.h.b16 %v2466
    %v2547 = vunpack.c.l.b16 %v2467
    %v2548 = vunpack.c.h.b16 %v2467
    %v2549 = vunpack.c.l.b16 %v2468
    %v2550 = vunpack.c.h.b16 %v2468
    %v2551 = vunpack.c.l.b16 %v2469
    %v2552 = vunpack.c.h.b16 %v2469
    %v2553 = vunpack.c.l.b16 %v2470
    %v2554 = vunpack.c.h.b16 %v2470
    %v2555 = vunpack.c.l.b16 %v2471
    %v2556 = vunpack.c.h.b16 %v2471
    %v2557 = vunpack.c.l.b16 %v2472
    %v2558 = vunpack.c.h.b16 %v2472
    %v2559 = vunpack.c.l.b16 %v2473
    %v2560 = vunpack.c.h.b16 %v2473
    %v2561 = vunpack.c.l.b16 %v2474
    %v2562 = vunpack.c.h.b16 %v2474
    %v2563 = vunpack.c.l.b16 %v2475
    %v2564 = vunpack.c.h.b16 %v2475
    %v2565 = vunpack.c.l.b16 %v2476
    %v2566 = vunpack.c.h.b16 %v2476
    %v2567 = vunpack.c.l.b16 %v2477
    %v2568 = vunpack.c.h.b16 %v2477
    %v2569 = vunpack.c.l.b16 %v2478
    %v2570 = vunpack.c.h.b16 %v2478
    %v2571 = vunpack.c.l.b16 %v2479
    %v2572 = vunpack.c.h.b16 %v2479
    %v2573 = vunpack.c.l.b16 %v2480
    %v2574 = vunpack.c.h.b16 %v2480
    %v2575 = vunpack.c.l.b16 %v2481
    %v2576 = vunpack.c.h.b16 %v2481
    %v2577 = vunpack.c.l.b16 %v2482
    %v2578 = vunpack.c.h.b16 %v2482
    %v2579 = vunpack.c.l.b16 %v2483
    %v2580 = vunpack.c.h.b16 %v2483
    %v2581 = vunpack.c.l.b16 %v2484
    %v2582 = vunpack.c.h.b16 %v2484
    %v2583 = vunpack.c.l.b16 %v2485
    %v2584 = vunpack.c.h.b16 %v2485
    %v2585 = vunpack.c.l.b16 %v2486
    %v2586 = vunpack.c.h.b16 %v2486
    %v2587 = vunpack.c.l.b16 %v2487
    %v2588 = vunpack.c.h.b16 %v2487
    %v2589 = vunpack.c.l.b16 %v2488
    %v2590 = vunpack.c.h.b16 %v2488
    %v2591 = vunpack.c.l.b16 %v2489
    %v2592 = vunpack.c.h.b16 %v2489
    %v2593 = vunpack.c.l.b16 %v2490
    %v2594 = vunpack.c.h.b16 %v2490
    %v2595 = vunpack.c.l.b16 %v2491
    %v2596 = vunpack.c.h.b16 %v2491
    %v2597 = vunpack.c.l.b16 %v2492
    %v2598 = vunpack.c.h.b16 %v2492
    %v2599 = vunpack.c.l.b16 %v2493
    %v2600 = vunpack.c.h.b16 %v2493
    %v2601 = vunpack.c.l.b16 %v2494
    %v2602 = vunpack.c.h.b16 %v2494
    %v2603 = vpack.c.b16 %v2541, %v2539
    %v2604 = vpack.c.b16 %v2542, %v2540
    %v2605 = vpack.c.b16 %v2545, %v2543
    %v2606 = vpack.c.b16 %v2546, %v2544
    %v2607 = vpack.c.b16 %v2549, %v2547
    %v2608 = vpack.c.b16 %v2550, %v2548
    %v2609 = vpack.c.b16 %v2553, %v2551
    %v2610 = vpack.c.b16 %v2554, %v2552
    %v2611 = vpack.c.b16 %v2557, %v2555
    %v2612 = vpack.c.b16 %v2558, %v2556
    %v2613 = vpack.c.b16 %v2561, %v2559
    %v2614 = vpack.c.b16 %v2562, %v2560
    %v2615 = vpack.c.b16 %v2565, %v2563
    %v2616 = vpack.c.b16 %v2566, %v2564
    %v2617 = vpack.c.b16 %v2569, %v2567
    %v2618 = vpack.c.b16 %v2570, %v2568
    %v2619 = vpack.c.b16 %v2573, %v2571
    %v2620 = vpack.c.b16 %v2574, %v2572
    %v2621 = vpack.c.b16 %v2577, %v2575
    %v2622 = vpack.c.b16 %v2578, %v2576
    %v2623 = vpack.c.b16 %v2581, %v2579
    %v2624 = vpack.c.b16 %v2582, %v2580
    %v2625 = vpack.c.b16 %v2585, %v2583
    %v2626 = vpack.c.b16 %v2586, %v2584
    %v2627 = vpack.c.b16 %v2589, %v2587
    %v2628 = vpack.c.b16 %v2590, %v2588
    %v2629 = vpack.c.b16 %v2593, %v2591
    %v2630 = vpack.c.b16 %v2594, %v2592
    %v2631 = vpack.c.b16 %v2597, %v2595
    %v2632 = vpack.c.b16 %v2598, %v2596
    %v2633 = vpack.c.b16 %v2601, %v2599
    %v2634 = vpack.c.b16 %v2602, %v2600
    %2667 = vmatprep.subr.bf16.mxu0 %v2618
    %2668 = vmatpush1.bf16.msra.mxu0 %v2617
    %2669 = vmatprep.subr.bf16.mxu0 %v2616
    %2670 = vmatpush1.bf16.msra.mxu0 %v2615
    %2671 = vmatprep.subr.bf16.mxu0 %v2614
    %2672 = vmatpush1.bf16.msra.mxu0 %v2613
    %2673 = vmatprep.subr.bf16.mxu0 %v2612
    %2674 = vmatpush1.bf16.msra.mxu0 %v2611
    %2675 = vmatprep.subr.bf16.mxu0 %v2610
    %2676 = vmatpush1.bf16.msra.mxu0 %v2609
    %2677 = vmatprep.subr.bf16.mxu0 %v2608
    %2678 = vmatpush1.bf16.msra.mxu0 %v2607
    %2679 = vmatprep.subr.bf16.mxu0 %v2606
    %2680 = vmatpush1.bf16.msra.mxu0 %v2605
    %2681 = vmatprep.subr.bf16.mxu0 %v2604
    %2682 = vmatpush1.bf16.msra.mxu0 %v2603
    %2683 = vmatprep.subr.bf16.mxu0 %v2634
    %2684 = vmatpush2.bf16.msra.mxu0 %v2633
    %2685 = vmatprep.subr.bf16.mxu0 %v2632
    %2686 = vmatpush2.bf16.msra.mxu0 %v2631
    %2687 = vmatprep.subr.bf16.mxu0 %v2630
    %2688 = vmatpush2.bf16.msra.mxu0 %v2629
    %2689 = vmatprep.subr.bf16.mxu0 %v2628
    %2690 = vmatpush2.bf16.msra.mxu0 %v2627
    %2691 = vmatprep.subr.bf16.mxu0 %v2626
    %2692 = vmatpush2.bf16.msra.mxu0 %v2625
    %2693 = vmatprep.subr.bf16.mxu0 %v2624
    %2694 = vmatpush2.bf16.msra.mxu0 %v2623
    %2695 = vmatprep.subr.bf16.mxu0 %v2622
    %2696 = vmatpush2.bf16.msra.mxu0 %v2621
    %2697 = vmatprep.subr.bf16.mxu0 %v2620
    %2698 = vmatpush2.bf16.msra.mxu0 %v2619
    %2699 = vmatprep.mubr.bf16.mxu0 %v2462
    %2700 = vmatmul.mubr.bf16.gmra.mxu0 %v2461
    %v2701 = vpop.f32.mrf.mxu0
    %v2702 = vadd.f32 %v2500, %v2701
    %v2703 = vpop.f32.mrf.mxu0
    %v2704 = vadd.f32 %v2504, %v2703
    %v2705 = vpop.f32.mrf.mxu0
    %v2706 = vpop.f32.mrf.mxu0
    %2707 = vdwg.mxu0
    %2708 = vst [vmem:[%s16] sm:$0xff] %v2702
    %2709 = vst [vmem:[%s16 + $0x8] sm:$0xff] %v2704
    %v2710 = vmul.f32 %v2704, 0.5
    %v2711 = vmul.f32 %v2710, 1.442695
    %v2712 = vpow.pop %v2711
    %v2713 = vmul.f32 %v139, %v2712
    %v2714 = vadd.f32 %v2702, %v2713
    %v2715 = vpack.c.bf16 %v2714, %v2714
    %v2716 = vld [vmem:[%s9] sm:$0xff]
    %v2717 = vld [vmem:[%s9 + $0x8] sm:$0xff]
    %v2718 = vld [vmem:[%s9 + $0x10] sm:$0xff]
    %v2719 = vld [vmem:[%s9 + $0x18] sm:$0xff]
    %v2720 = vld [vmem:[%s9 + $0x20] sm:$0xff]
    %v2721 = vld [vmem:[%s9 + $0x28] sm:$0xff]
    %v2722 = vld [vmem:[%s9 + $0x30] sm:$0xff]
    %v2723 = vld [vmem:[%s9 + $0x38] sm:$0xff]
    %v2724 = vld [vmem:[%s9 + $0x40] sm:$0xff]
    %v2725 = vld [vmem:[%s9 + $0x48] sm:$0xff]
    %v2726 = vld [vmem:[%s9 + $0x50] sm:$0xff]
    %v2727 = vld [vmem:[%s9 + $0x58] sm:$0xff]
    %v2728 = vld [vmem:[%s9 + $0x60] sm:$0xff]
    %v2729 = vld [vmem:[%s9 + $0x68] sm:$0xff]
    %v2730 = vld [vmem:[%s9 + $0x70] sm:$0xff]
    %v2731 = vld [vmem:[%s9 + $0x78] sm:$0xff]
    %v2732 = vld [vmem:[%s10] sm:$0x3]
    %v2734 = vlaneseq
    %v2735 = vshrl.u32 %v2734, 7
    %v2736 = vsub.s32 0, %v2735
    %v2737 = vrot.slane %v2732, %v2736
    %v2738 = vlaneseq
    %v2739 = vshrl.u32 %v2738, 7
    %v2740 = vsub.s32 1, %v2739
    %v2741 = vrot.slane %v2732, %v2740
    %v2760 = vunpack.c.l.b16 %v2716
    %v2761 = vunpack.c.h.b16 %v2716
    %v2762 = vunpack.c.l.b16 %v2717
    %v2763 = vunpack.c.h.b16 %v2717
    %v2764 = vunpack.c.l.b16 %v2718
    %v2765 = vunpack.c.h.b16 %v2718
    %v2766 = vunpack.c.l.b16 %v2719
    %v2767 = vunpack.c.h.b16 %v2719
    %v2768 = vunpack.c.l.b16 %v2720
    %v2769 = vunpack.c.h.b16 %v2720
    %v2770 = vunpack.c.l.b16 %v2721
    %v2771 = vunpack.c.h.b16 %v2721
    %v2772 = vunpack.c.l.b16 %v2722
    %v2773 = vunpack.c.h.b16 %v2722
    %v2774 = vunpack.c.l.b16 %v2723
    %v2775 = vunpack.c.h.b16 %v2723
    %v2776 = vunpack.c.l.b16 %v2724
    %v2777 = vunpack.c.h.b16 %v2724
    %v2778 = vunpack.c.l.b16 %v2725
    %v2779 = vunpack.c.h.b16 %v2725
    %v2780 = vunpack.c.l.b16 %v2726
    %v2781 = vunpack.c.h.b16 %v2726
    %v2782 = vunpack.c.l.b16 %v2727
    %v2783 = vunpack.c.h.b16 %v2727
    %v2784 = vunpack.c.l.b16 %v2728
    %v2785 = vunpack.c.h.b16 %v2728
    %v2786 = vunpack.c.l.b16 %v2729
    %v2787 = vunpack.c.h.b16 %v2729
    %v2788 = vunpack.c.l.b16 %v2730
    %v2789 = vunpack.c.h.b16 %v2730
    %v2790 = vunpack.c.l.b16 %v2731
    %v2791 = vunpack.c.h.b16 %v2731
    %v2792 = vpack.c.b16 %v2762, %v2760
    %v2793 = vpack.c.b16 %v2763, %v2761
    %v2794 = vpack.c.b16 %v2766, %v2764
    %v2795 = vpack.c.b16 %v2767, %v2765
    %v2796 = vpack.c.b16 %v2770, %v2768
    %v2797 = vpack.c.b16 %v2771, %v2769
    %v2798 = vpack.c.b16 %v2774, %v2772
    %v2799 = vpack.c.b16 %v2775, %v2773
    %v2800 = vpack.c.b16 %v2778, %v2776
    %v2801 = vpack.c.b16 %v2779, %v2777
    %v2802 = vpack.c.b16 %v2782, %v2780
    %v2803 = vpack.c.b16 %v2783, %v2781
    %v2804 = vpack.c.b16 %v2786, %v2784
    %v2805 = vpack.c.b16 %v2787, %v2785
    %v2806 = vpack.c.b16 %v2790, %v2788
    %v2807 = vpack.c.b16 %v2791, %v2789
    %2824 = vmatprep.subr.bf16.mxu0 %v2807
    %2825 = vmatpush1.bf16.msra.mxu0 %v2806
    %2826 = vmatprep.subr.bf16.mxu0 %v2805
    %2827 = vmatpush1.bf16.msra.mxu0 %v2804
    %2828 = vmatprep.subr.bf16.mxu0 %v2803
    %2829 = vmatpush1.bf16.msra.mxu0 %v2802
    %2830 = vmatprep.subr.bf16.mxu0 %v2801
    %2831 = vmatpush1.bf16.msra.mxu0 %v2800
    %2832 = vmatprep.subr.bf16.mxu0 %v2799
    %2833 = vmatpush1.bf16.msra.mxu0 %v2798
    %2834 = vmatprep.subr.bf16.mxu0 %v2797
    %2835 = vmatpush1.bf16.msra.mxu0 %v2796
    %2836 = vmatprep.subr.bf16.mxu0 %v2795
    %2837 = vmatpush1.bf16.msra.mxu0 %v2794
    %2838 = vmatprep.subr.bf16.mxu0 %v2793
    %2839 = vmatpush1.bf16.msra.mxu0 %v2792
    %2840 = vmatprep.subr.bf16.mxu0 0
    %2841 = vmatpush2.bf16.msra.mxu0 0
    %2842 = vmatprep.subr.bf16.mxu0 0
    %2843 = vmatpush2.bf16.msra.mxu0 0
    %2844 = vmatprep.subr.bf16.mxu0 0
    %2845 = vmatpush2.bf16.msra.mxu0 0
    %2846 = vmatprep.subr.bf16.mxu0 0
    %2847 = vmatpush2.bf16.msra.mxu0 0
    %2848 = vmatprep.subr.bf16.mxu0 0
    %2849 = vmatpush2.bf16.msra.mxu0 0
    %2850 = vmatprep.subr.bf16.mxu0 0
    %2851 = vmatpush2.bf16.msra.mxu0 0
    %2852 = vmatprep.subr.bf16.mxu0 0
    %2853 = vmatpush2.bf16.msra.mxu0 0
    %2854 = vmatprep.subr.bf16.mxu0 0
    %2855 = vmatpush2.bf16.msra.mxu0 0
    %2856 = vmatprep.mubr.bf16.mxu0 0
    %2857 = vmatmul.mubr.bf16.gmra.mxu0 %v2715
    %v2858 = vpop.f32.mrf.mxu0
    %v2859 = vadd.f32 %v2737, %v2858
    %v2860 = vpop.f32.mrf.mxu0
    %v2861 = vadd.f32 %v2741, %v2860
    %v2862 = vpop.f32.mrf.mxu0
    %v2863 = vpop.f32.mrf.mxu0
    %2864 = vdwg.mxu0
    %v2865 = vmax.f32 %v2859, 0.0
    %v2866 = vmax.f32 %v2861, 0.0
    %v2867 = vpack.c.bf16 %v2865, %v2865
    %v2868 = vpack.c.bf16 %v2866, %v2866
    %v2869 = vld [vmem:[#allocation9] sm:$0xff]
    %v2870 = vld [vmem:[#allocation9 + $0x8] sm:$0xff]
    %v2871 = vld [vmem:[#allocation9 + $0x10] sm:$0xff]
    %v2872 = vld [vmem:[#allocation9 + $0x18] sm:$0xff]
    %v2873 = vld [vmem:[#allocation9 + $0x20] sm:$0xff]
    %v2874 = vld [vmem:[#allocation9 + $0x28] sm:$0xff]
    %v2875 = vld [vmem:[#allocation9 + $0x30] sm:$0xff]
    %v2876 = vld [vmem:[#allocation9 + $0x38] sm:$0xff]
    %v2877 = vld [vmem:[#allocation9 + $0x40] sm:$0xff]
    %v2878 = vld [vmem:[#allocation9 + $0x48] sm:$0xff]
    %v2879 = vld [vmem:[#allocation9 + $0x50] sm:$0xff]
    %v2880 = vld [vmem:[#allocation9 + $0x58] sm:$0xff]
    %v2881 = vld [vmem:[#allocation9 + $0x60] sm:$0xff]
    %v2882 = vld [vmem:[#allocation9 + $0x68] sm:$0xff]
    %v2883 = vld [vmem:[#allocation9 + $0x70] sm:$0xff]
    %v2884 = vld [vmem:[#allocation9 + $0x78] sm:$0xff]
    %v2885 = vld [vmem:[#allocation9 + $0x80] sm:$0xff]
    %v2886 = vld [vmem:[#allocation9 + $0x88] sm:$0xff]
    %v2887 = vld [vmem:[#allocation9 + $0x90] sm:$0xff]
    %v2888 = vld [vmem:[#allocation9 + $0x98] sm:$0xff]
    %v2889 = vld [vmem:[#allocation9 + $0xa0] sm:$0xff]
    %v2890 = vld [vmem:[#allocation9 + $0xa8] sm:$0xff]
    %v2891 = vld [vmem:[#allocation9 + $0xb0] sm:$0xff]
    %v2892 = vld [vmem:[#allocation9 + $0xb8] sm:$0xff]
    %v2893 = vld [vmem:[#allocation9 + $0xc0] sm:$0xff]
    %v2894 = vld [vmem:[#allocation9 + $0xc8] sm:$0xff]
    %v2895 = vld [vmem:[#allocation9 + $0xd0] sm:$0xff]
    %v2896 = vld [vmem:[#allocation9 + $0xd8] sm:$0xff]
    %v2897 = vld [vmem:[#allocation9 + $0xe0] sm:$0xff]
    %v2898 = vld [vmem:[#allocation9 + $0xe8] sm:$0xff]
    %v2899 = vld [vmem:[#allocation9 + $0xf0] sm:$0xff]
    %v2900 = vld [vmem:[#allocation9 + $0xf8] sm:$0xff]
    %v2901 = vld [vmem:[#allocation9 + $0x100] sm:$0xff]
    %v2902 = vld [vmem:[#allocation9 + $0x108] sm:$0xff]
    %v2903 = vld [vmem:[#allocation9 + $0x110] sm:$0xff]
    %v2904 = vld [vmem:[#allocation9 + $0x118] sm:$0xff]
    %v2905 = vld [vmem:[#allocation9 + $0x120] sm:$0xff]
    %v2906 = vld [vmem:[#allocation9 + $0x128] sm:$0xff]
    %v2907 = vld [vmem:[#allocation9 + $0x130] sm:$0xff]
    %v2908 = vld [vmem:[#allocation9 + $0x138] sm:$0xff]
    %v2909 = vld [vmem:[#allocation9 + $0x140] sm:$0xff]
    %v2910 = vld [vmem:[#allocation9 + $0x148] sm:$0xff]
    %v2911 = vld [vmem:[#allocation9 + $0x150] sm:$0xff]
    %v2912 = vld [vmem:[#allocation9 + $0x158] sm:$0xff]
    %v2913 = vld [vmem:[#allocation9 + $0x160] sm:$0xff]
    %v2914 = vld [vmem:[#allocation9 + $0x168] sm:$0xff]
    %v2915 = vld [vmem:[#allocation9 + $0x170] sm:$0xff]
    %v2916 = vld [vmem:[#allocation9 + $0x178] sm:$0xff]
    %v2917 = vld [vmem:[#allocation9 + $0x180] sm:$0xff]
    %v2918 = vld [vmem:[#allocation9 + $0x188] sm:$0xff]
    %v2919 = vld [vmem:[#allocation9 + $0x190] sm:$0xff]
    %v2920 = vld [vmem:[#allocation9 + $0x198] sm:$0xff]
    %v2921 = vld [vmem:[#allocation9 + $0x1a0] sm:$0xff]
    %v2922 = vld [vmem:[#allocation9 + $0x1a8] sm:$0xff]
    %v2923 = vld [vmem:[#allocation9 + $0x1b0] sm:$0xff]
    %v2924 = vld [vmem:[#allocation9 + $0x1b8] sm:$0xff]
    %v2925 = vld [vmem:[#allocation9 + $0x1c0] sm:$0xff]
    %v2926 = vld [vmem:[#allocation9 + $0x1c8] sm:$0xff]
    %v2927 = vld [vmem:[#allocation9 + $0x1d0] sm:$0xff]
    %v2928 = vld [vmem:[#allocation9 + $0x1d8] sm:$0xff]
    %v2929 = vld [vmem:[#allocation9 + $0x1e0] sm:$0xff]
    %v2930 = vld [vmem:[#allocation9 + $0x1e8] sm:$0xff]
    %v2931 = vld [vmem:[#allocation9 + $0x1f0] sm:$0xff]
    %v2932 = vld [vmem:[#allocation9 + $0x1f8] sm:$0xff]
    %v2933 = vld [vmem:[%s12] sm:$0xf]
    %v2935 = vlaneseq
    %v2936 = vshrl.u32 %v2935, 7
    %v2937 = vsub.s32 0, %v2936
    %v2938 = vrot.slane %v2933, %v2937
    %v2939 = vlaneseq
    %v2940 = vshrl.u32 %v2939, 7
    %v2941 = vsub.s32 1, %v2940
    %v2942 = vrot.slane %v2933, %v2941
    %v2943 = vlaneseq
    %v2944 = vshrl.u32 %v2943, 7
    %v2945 = vsub.s32 2, %v2944
    %v2946 = vrot.slane %v2933, %v2945
    %v2947 = vlaneseq
    %v2948 = vshrl.u32 %v2947, 7
    %v2949 = vsub.s32 3, %v2948
    %v2950 = vrot.slane %v2933, %v2949
    %v3019 = vunpack.c.l.b16 %v2869
    %v3020 = vunpack.c.h.b16 %v2869
    %v3021 = vunpack.c.l.b16 %v2870
    %v3022 = vunpack.c.h.b16 %v2870
    %v3023 = vunpack.c.l.b16 %v2871
    %v3024 = vunpack.c.h.b16 %v2871
    %v3025 = vunpack.c.l.b16 %v2872
    %v3026 = vunpack.c.h.b16 %v2872
    %v3027 = vunpack.c.l.b16 %v2873
    %v3028 = vunpack.c.h.b16 %v2873
    %v3029 = vunpack.c.l.b16 %v2874
    %v3030 = vunpack.c.h.b16 %v2874
    %v3031 = vunpack.c.l.b16 %v2875
    %v3032 = vunpack.c.h.b16 %v2875
    %v3033 = vunpack.c.l.b16 %v2876
    %v3034 = vunpack.c.h.b16 %v2876
    %v3035 = vunpack.c.l.b16 %v2877
    %v3036 = vunpack.c.h.b16 %v2877
    %v3037 = vunpack.c.l.b16 %v2878
    %v3038 = vunpack.c.h.b16 %v2878
    %v3039 = vunpack.c.l.b16 %v2879
    %v3040 = vunpack.c.h.b16 %v2879
    %v3041 = vunpack.c.l.b16 %v2880
    %v3042 = vunpack.c.h.b16 %v2880
    %v3043 = vunpack.c.l.b16 %v2881
    %v3044 = vunpack.c.h.b16 %v2881
    %v3045 = vunpack.c.l.b16 %v2882
    %v3046 = vunpack.c.h.b16 %v2882
    %v3047 = vunpack.c.l.b16 %v2883
    %v3048 = vunpack.c.h.b16 %v2883
    %v3049 = vunpack.c.l.b16 %v2884
    %v3050 = vunpack.c.h.b16 %v2884
    %v3051 = vunpack.c.l.b16 %v2885
    %v3052 = vunpack.c.h.b16 %v2885
    %v3053 = vunpack.c.l.b16 %v2886
    %v3054 = vunpack.c.h.b16 %v2886
    %v3055 = vunpack.c.l.b16 %v2887
    %v3056 = vunpack.c.h.b16 %v2887
    %v3057 = vunpack.c.l.b16 %v2888
    %v3058 = vunpack.c.h.b16 %v2888
    %v3059 = vunpack.c.l.b16 %v2889
    %v3060 = vunpack.c.h.b16 %v2889
    %v3061 = vunpack.c.l.b16 %v2890
    %v3062 = vunpack.c.h.b16 %v2890
    %v3063 = vunpack.c.l.b16 %v2891
    %v3064 = vunpack.c.h.b16 %v2891
    %v3065 = vunpack.c.l.b16 %v2892
    %v3066 = vunpack.c.h.b16 %v2892
    %v3067 = vunpack.c.l.b16 %v2893
    %v3068 = vunpack.c.h.b16 %v2893
    %v3069 = vunpack.c.l.b16 %v2894
    %v3070 = vunpack.c.h.b16 %v2894
    %v3071 = vunpack.c.l.b16 %v2895
    %v3072 = vunpack.c.h.b16 %v2895
    %v3073 = vunpack.c.l.b16 %v2896
    %v3074 = vunpack.c.h.b16 %v2896
    %v3075 = vunpack.c.l.b16 %v2897
    %v3076 = vunpack.c.h.b16 %v2897
    %v3077 = vunpack.c.l.b16 %v2898
    %v3078 = vunpack.c.h.b16 %v2898
    %v3079 = vunpack.c.l.b16 %v2899
    %v3080 = vunpack.c.h.b16 %v2899
    %v3081 = vunpack.c.l.b16 %v2900
    %v3082 = vunpack.c.h.b16 %v2900
    %v3083 = vunpack.c.l.b16 %v2901
    %v3084 = vunpack.c.h.b16 %v2901
    %v3085 = vunpack.c.l.b16 %v2902
    %v3086 = vunpack.c.h.b16 %v2902
    %v3087 = vunpack.c.l.b16 %v2903
    %v3088 = vunpack.c.h.b16 %v2903
    %v3089 = vunpack.c.l.b16 %v2904
    %v3090 = vunpack.c.h.b16 %v2904
    %v3091 = vunpack.c.l.b16 %v2905
    %v3092 = vunpack.c.h.b16 %v2905
    %v3093 = vunpack.c.l.b16 %v2906
    %v3094 = vunpack.c.h.b16 %v2906
    %v3095 = vunpack.c.l.b16 %v2907
    %v3096 = vunpack.c.h.b16 %v2907
    %v3097 = vunpack.c.l.b16 %v2908
    %v3098 = vunpack.c.h.b16 %v2908
    %v3099 = vunpack.c.l.b16 %v2909
    %v3100 = vunpack.c.h.b16 %v2909
    %v3101 = vunpack.c.l.b16 %v2910
    %v3102 = vunpack.c.h.b16 %v2910
    %v3103 = vunpack.c.l.b16 %v2911
    %v3104 = vunpack.c.h.b16 %v2911
    %v3105 = vunpack.c.l.b16 %v2912
    %v3106 = vunpack.c.h.b16 %v2912
    %v3107 = vunpack.c.l.b16 %v2913
    %v3108 = vunpack.c.h.b16 %v2913
    %v3109 = vunpack.c.l.b16 %v2914
    %v3110 = vunpack.c.h.b16 %v2914
    %v3111 = vunpack.c.l.b16 %v2915
    %v3112 = vunpack.c.h.b16 %v2915
    %v3113 = vunpack.c.l.b16 %v2916
    %v3114 = vunpack.c.h.b16 %v2916
    %v3115 = vunpack.c.l.b16 %v2917
    %v3116 = vunpack.c.h.b16 %v2917
    %v3117 = vunpack.c.l.b16 %v2918
    %v3118 = vunpack.c.h.b16 %v2918
    %v3119 = vunpack.c.l.b16 %v2919
    %v3120 = vunpack.c.h.b16 %v2919
    %v3121 = vunpack.c.l.b16 %v2920
    %v3122 = vunpack.c.h.b16 %v2920
    %v3123 = vunpack.c.l.b16 %v2921
    %v3124 = vunpack.c.h.b16 %v2921
    %v3125 = vunpack.c.l.b16 %v2922
    %v3126 = vunpack.c.h.b16 %v2922
    %v3127 = vunpack.c.l.b16 %v2923
    %v3128 = vunpack.c.h.b16 %v2923
    %v3129 = vunpack.c.l.b16 %v2924
    %v3130 = vunpack.c.h.b16 %v2924
    %v3131 = vunpack.c.l.b16 %v2925
    %v3132 = vunpack.c.h.b16 %v2925
    %v3133 = vunpack.c.l.b16 %v2926
    %v3134 = vunpack.c.h.b16 %v2926
    %v3135 = vunpack.c.l.b16 %v2927
    %v3136 = vunpack.c.h.b16 %v2927
    %v3137 = vunpack.c.l.b16 %v2928
    %v3138 = vunpack.c.h.b16 %v2928
    %v3139 = vunpack.c.l.b16 %v2929
    %v3140 = vunpack.c.h.b16 %v2929
    %v3141 = vunpack.c.l.b16 %v2930
    %v3142 = vunpack.c.h.b16 %v2930
    %v3143 = vunpack.c.l.b16 %v2931
    %v3144 = vunpack.c.h.b16 %v2931
    %v3145 = vunpack.c.l.b16 %v2932
    %v3146 = vunpack.c.h.b16 %v2932
    %v3147 = vpack.c.b16 %v3023, %v3019
    %v3148 = vpack.c.b16 %v3024, %v3020
    %v3149 = vpack.c.b16 %v3025, %v3021
    %v3150 = vpack.c.b16 %v3026, %v3022
    %v3151 = vpack.c.b16 %v3031, %v3027
    %v3152 = vpack.c.b16 %v3032, %v3028
    %v3153 = vpack.c.b16 %v3033, %v3029
    %v3154 = vpack.c.b16 %v3034, %v3030
    %v3155 = vpack.c.b16 %v3039, %v3035
    %v3156 = vpack.c.b16 %v3040, %v3036
    %v3157 = vpack.c.b16 %v3041, %v3037
    %v3158 = vpack.c.b16 %v3042, %v3038
    %v3159 = vpack.c.b16 %v3047, %v3043
    %v3160 = vpack.c.b16 %v3048, %v3044
    %v3161 = vpack.c.b16 %v3049, %v3045
    %v3162 = vpack.c.b16 %v3050, %v3046
    %v3163 = vpack.c.b16 %v3055, %v3051
    %v3164 = vpack.c.b16 %v3056, %v3052
    %v3165 = vpack.c.b16 %v3057, %v3053
    %v3166 = vpack.c.b16 %v3058, %v3054
    %v3167 = vpack.c.b16 %v3063, %v3059
    %v3168 = vpack.c.b16 %v3064, %v3060
    %v3169 = vpack.c.b16 %v3065, %v3061
    %v3170 = vpack.c.b16 %v3066, %v3062
    %v3171 = vpack.c.b16 %v3071, %v3067
    %v3172 = vpack.c.b16 %v3072, %v3068
    %v3173 = vpack.c.b16 %v3073, %v3069
    %v3174 = vpack.c.b16 %v3074, %v3070
    %v3175 = vpack.c.b16 %v3079, %v3075
    %v3176 = vpack.c.b16 %v3080, %v3076
    %v3177 = vpack.c.b16 %v3081, %v3077
    %v3178 = vpack.c.b16 %v3082, %v3078
    %v3179 = vpack.c.b16 %v3087, %v3083
    %v3180 = vpack.c.b16 %v3088, %v3084
    %v3181 = vpack.c.b16 %v3089, %v3085
    %v3182 = vpack.c.b16 %v3090, %v3086
    %v3183 = vpack.c.b16 %v3095, %v3091
    %v3184 = vpack.c.b16 %v3096, %v3092
    %v3185 = vpack.c.b16 %v3097, %v3093
    %v3186 = vpack.c.b16 %v3098, %v3094
    %v3187 = vpack.c.b16 %v3103, %v3099
    %v3188 = vpack.c.b16 %v3104, %v3100
    %v3189 = vpack.c.b16 %v3105, %v3101
    %v3190 = vpack.c.b16 %v3106, %v3102
    %v3191 = vpack.c.b16 %v3111, %v3107
    %v3192 = vpack.c.b16 %v3112, %v3108
    %v3193 = vpack.c.b16 %v3113, %v3109
    %v3194 = vpack.c.b16 %v3114, %v3110
    %v3195 = vpack.c.b16 %v3119, %v3115
    %v3196 = vpack.c.b16 %v3120, %v3116
    %v3197 = vpack.c.b16 %v3121, %v3117
    %v3198 = vpack.c.b16 %v3122, %v3118
    %v3199 = vpack.c.b16 %v3127, %v3123
    %v3200 = vpack.c.b16 %v3128, %v3124
    %v3201 = vpack.c.b16 %v3129, %v3125
    %v3202 = vpack.c.b16 %v3130, %v3126
    %v3203 = vpack.c.b16 %v3135, %v3131
    %v3204 = vpack.c.b16 %v3136, %v3132
    %v3205 = vpack.c.b16 %v3137, %v3133
    %v3206 = vpack.c.b16 %v3138, %v3134
    %v3207 = vpack.c.b16 %v3143, %v3139
    %v3208 = vpack.c.b16 %v3144, %v3140
    %v3209 = vpack.c.b16 %v3145, %v3141
    %v3210 = vpack.c.b16 %v3146, %v3142
    %3275 = vmatprep.subr.bf16.mxu0 %v3176
    %3276 = vmatpush1.bf16.msra.mxu0 %v3175
    %3277 = vmatprep.subr.bf16.mxu0 %v3172
    %3278 = vmatpush1.bf16.msra.mxu0 %v3171
    %3279 = vmatprep.subr.bf16.mxu0 %v3168
    %3280 = vmatpush1.bf16.msra.mxu0 %v3167
    %3281 = vmatprep.subr.bf16.mxu0 %v3164
    %3282 = vmatpush1.bf16.msra.mxu0 %v3163
    %3283 = vmatprep.subr.bf16.mxu0 %v3160
    %3284 = vmatpush1.bf16.msra.mxu0 %v3159
    %3285 = vmatprep.subr.bf16.mxu0 %v3156
    %3286 = vmatpush1.bf16.msra.mxu0 %v3155
    %3287 = vmatprep.subr.bf16.mxu0 %v3152
    %3288 = vmatpush1.bf16.msra.mxu0 %v3151
    %3289 = vmatprep.subr.bf16.mxu0 %v3148
    %3290 = vmatpush1.bf16.msra.mxu0 %v3147
    %3291 = vmatprep.subr.bf16.mxu0 %v3208
    %3292 = vmatpush2.bf16.msra.mxu0 %v3207
    %3293 = vmatprep.subr.bf16.mxu0 %v3204
    %3294 = vmatpush2.bf16.msra.mxu0 %v3203
    %3295 = vmatprep.subr.bf16.mxu0 %v3200
    %3296 = vmatpush2.bf16.msra.mxu0 %v3199
    %3297 = vmatprep.subr.bf16.mxu0 %v3196
    %3298 = vmatpush2.bf16.msra.mxu0 %v3195
    %3299 = vmatprep.subr.bf16.mxu0 %v3192
    %3300 = vmatpush2.bf16.msra.mxu0 %v3191
    %3301 = vmatprep.subr.bf16.mxu0 %v3188
    %3302 = vmatpush2.bf16.msra.mxu0 %v3187
    %3303 = vmatprep.subr.bf16.mxu0 %v3184
    %3304 = vmatpush2.bf16.msra.mxu0 %v3183
    %3305 = vmatprep.subr.bf16.mxu0 %v3180
    %3306 = vmatpush2.bf16.msra.mxu0 %v3179
    %3307 = vmatprep.mubr.bf16.mxu0 %v2868
    %3308 = vmatmul.mubr.bf16.gmra.mxu0 %v2867
    %v3309 = vpop.f32.mrf.mxu0
    %v3310 = vadd.f32 %v2938, %v3309
    %v3311 = vpop.f32.mrf.mxu0
    %v3312 = vadd.f32 %v2942, %v3311
    %v3313 = vpop.f32.mrf.mxu0
    %v3314 = vpop.f32.mrf.mxu0
    %3315 = vdwg.mxu0
    %3316 = vmatprep.subr.bf16.mxu0 %v3178
    %3317 = vmatpush1.bf16.msra.mxu0 %v3177
    %3318 = vmatprep.subr.bf16.mxu0 %v3174
    %3319 = vmatpush1.bf16.msra.mxu0 %v3173
    %3320 = vmatprep.subr.bf16.mxu0 %v3170
    %3321 = vmatpush1.bf16.msra.mxu0 %v3169
    %3322 = vmatprep.subr.bf16.mxu0 %v3166
    %3323 = vmatpush1.bf16.msra.mxu0 %v3165
    %3324 = vmatprep.subr.bf16.mxu0 %v3162
    %3325 = vmatpush1.bf16.msra.mxu0 %v3161
    %3326 = vmatprep.subr.bf16.mxu0 %v3158
    %3327 = vmatpush1.bf16.msra.mxu0 %v3157
    %3328 = vmatprep.subr.bf16.mxu0 %v3154
    %3329 = vmatpush1.bf16.msra.mxu0 %v3153
    %3330 = vmatprep.subr.bf16.mxu0 %v3150
    %3331 = vmatpush1.bf16.msra.mxu0 %v3149
    %3332 = vmatprep.subr.bf16.mxu0 %v3210
    %3333 = vmatpush2.bf16.msra.mxu0 %v3209
    %3334 = vmatprep.subr.bf16.mxu0 %v3206
    %3335 = vmatpush2.bf16.msra.mxu0 %v3205
    %3336 = vmatprep.subr.bf16.mxu0 %v3202
    %3337 = vmatpush2.bf16.msra.mxu0 %v3201
    %3338 = vmatprep.subr.bf16.mxu0 %v3198
    %3339 = vmatpush2.bf16.msra.mxu0 %v3197
    %3340 = vmatprep.subr.bf16.mxu0 %v3194
    %3341 = vmatpush2.bf16.msra.mxu0 %v3193
    %3342 = vmatprep.subr.bf16.mxu0 %v3190
    %3343 = vmatpush2.bf16.msra.mxu0 %v3189
    %3344 = vmatprep.subr.bf16.mxu0 %v3186
    %3345 = vmatpush2.bf16.msra.mxu0 %v3185
    %3346 = vmatprep.subr.bf16.mxu0 %v3182
    %3347 = vmatpush2.bf16.msra.mxu0 %v3181
    %3348 = vmatprep.mubr.bf16.mxu0 %v2868
    %3349 = vmatmul.mubr.bf16.gmra.mxu0 %v2867
    %v3350 = vpop.f32.mrf.mxu0
    %v3351 = vadd.f32 %v2946, %v3350
    %v3352 = vpop.f32.mrf.mxu0
    %v3353 = vadd.f32 %v2950, %v3352
    %v3354 = vpop.f32.mrf.mxu0
    %v3355 = vpop.f32.mrf.mxu0
    %3356 = vdwg.mxu0
    %v3357 = vmax.f32 %v3310, 0.0
    %v3358 = vmax.f32 %v3312, 0.0
    %v3359 = vmax.f32 %v3351, 0.0
    %v3360 = vmax.f32 %v3353, 0.0
    %v3361 = vpack.c.bf16 %v3357, %v3357
    %v3362 = vpack.c.bf16 %v3358, %v3358
    %v3363 = vpack.c.bf16 %v3359, %v3359
    %v3364 = vpack.c.bf16 %v3360, %v3360
    %v3365 = vld [vmem:[#allocation10] sm:$0xff]
    %v3366 = vld [vmem:[#allocation10 + $0x8] sm:$0xff]
    %v3367 = vld [vmem:[#allocation10 + $0x10] sm:$0xff]
    %v3368 = vld [vmem:[#allocation10 + $0x18] sm:$0xf]
    %v3369 = vld [vmem:[#allocation10 + $0x1c] sm:$0xff]
    %v3370 = vld [vmem:[#allocation10 + $0x24] sm:$0xff]
    %v3371 = vld [vmem:[#allocation10 + $0x2c] sm:$0xff]
    %v3372 = vld [vmem:[#allocation10 + $0x34] sm:$0xf]
    %v3373 = vld [vmem:[#allocation10 + $0x38] sm:$0xff]
    %v3374 = vld [vmem:[#allocation10 + $0x40] sm:$0xff]
    %v3375 = vld [vmem:[#allocation10 + $0x48] sm:$0xff]
    %v3376 = vld [vmem:[#allocation10 + $0x50] sm:$0xf]
    %v3377 = vld [vmem:[#allocation10 + $0x54] sm:$0xff]
    %v3378 = vld [vmem:[#allocation10 + $0x5c] sm:$0xff]
    %v3379 = vld [vmem:[#allocation10 + $0x64] sm:$0xff]
    %v3380 = vld [vmem:[#allocation10 + $0x6c] sm:$0xf]
    %v3381 = vld [vmem:[#allocation10 + $0x70] sm:$0xff]
    %v3382 = vld [vmem:[#allocation10 + $0x78] sm:$0xff]
    %v3383 = vld [vmem:[#allocation10 + $0x80] sm:$0xff]
    %v3384 = vld [vmem:[#allocation10 + $0x88] sm:$0xf]
    %v3385 = vld [vmem:[#allocation10 + $0x8c] sm:$0xff]
    %v3386 = vld [vmem:[#allocation10 + $0x94] sm:$0xff]
    %v3387 = vld [vmem:[#allocation10 + $0x9c] sm:$0xff]
    %v3388 = vld [vmem:[#allocation10 + $0xa4] sm:$0xf]
    %v3389 = vld [vmem:[#allocation10 + $0xa8] sm:$0xff]
    %v3390 = vld [vmem:[#allocation10 + $0xb0] sm:$0xff]
    %v3391 = vld [vmem:[#allocation10 + $0xb8] sm:$0xff]
    %v3392 = vld [vmem:[#allocation10 + $0xc0] sm:$0xf]
    %v3393 = vld [vmem:[#allocation10 + $0xc4] sm:$0xff]
    %v3394 = vld [vmem:[#allocation10 + $0xcc] sm:$0xff]
    %v3395 = vld [vmem:[#allocation10 + $0xd4] sm:$0xff]
    %v3396 = vld [vmem:[#allocation10 + $0xdc] sm:$0xf]
    %v3397 = vld [vmem:[#allocation10 + $0xe0] sm:$0xff]
    %v3398 = vld [vmem:[#allocation10 + $0xe8] sm:$0xff]
    %v3399 = vld [vmem:[#allocation10 + $0xf0] sm:$0xff]
    %v3400 = vld [vmem:[#allocation10 + $0xf8] sm:$0xf]
    %v3401 = vld [vmem:[#allocation10 + $0xfc] sm:$0xff]
    %v3402 = vld [vmem:[#allocation10 + $0x104] sm:$0xff]
    %v3403 = vld [vmem:[#allocation10 + $0x10c] sm:$0xff]
    %v3404 = vld [vmem:[#allocation10 + $0x114] sm:$0xf]
    %v3405 = vld [vmem:[#allocation10 + $0x118] sm:$0xff]
    %v3406 = vld [vmem:[#allocation10 + $0x120] sm:$0xff]
    %v3407 = vld [vmem:[#allocation10 + $0x128] sm:$0xff]
    %v3408 = vld [vmem:[#allocation10 + $0x130] sm:$0xf]
    %v3409 = vld [vmem:[#allocation10 + $0x134] sm:$0xff]
    %v3410 = vld [vmem:[#allocation10 + $0x13c] sm:$0xff]
    %v3411 = vld [vmem:[#allocation10 + $0x144] sm:$0xff]
    %v3412 = vld [vmem:[#allocation10 + $0x14c] sm:$0xf]
    %v3413 = vld [vmem:[#allocation10 + $0x150] sm:$0xff]
    %v3414 = vld [vmem:[#allocation10 + $0x158] sm:$0xff]
    %v3415 = vld [vmem:[#allocation10 + $0x160] sm:$0xff]
    %v3416 = vld [vmem:[#allocation10 + $0x168] sm:$0xf]
    %v3417 = vld [vmem:[#allocation10 + $0x16c] sm:$0xff]
    %v3418 = vld [vmem:[#allocation10 + $0x174] sm:$0xff]
    %v3419 = vld [vmem:[#allocation10 + $0x17c] sm:$0xff]
    %v3420 = vld [vmem:[#allocation10 + $0x184] sm:$0xf]
    %v3421 = vld [vmem:[#allocation10 + $0x188] sm:$0xff]
    %v3422 = vld [vmem:[#allocation10 + $0x190] sm:$0xff]
    %v3423 = vld [vmem:[#allocation10 + $0x198] sm:$0xff]
    %v3424 = vld [vmem:[#allocation10 + $0x1a0] sm:$0xf]
    %v3425 = vld [vmem:[#allocation10 + $0x1a4] sm:$0xff]
    %v3426 = vld [vmem:[#allocation10 + $0x1ac] sm:$0xff]
    %v3427 = vld [vmem:[#allocation10 + $0x1b4] sm:$0xff]
    %v3428 = vld [vmem:[#allocation10 + $0x1bc] sm:$0xf]
    %v3429 = vld [vmem:[#allocation10 + $0x1c0] sm:$0xff]
    %v3430 = vld [vmem:[#allocation10 + $0x1c8] sm:$0xff]
    %v3431 = vld [vmem:[#allocation10 + $0x1d0] sm:$0xff]
    %v3432 = vld [vmem:[#allocation10 + $0x1d8] sm:$0xf]
    %v3433 = vld [vmem:[#allocation10 + $0x1dc] sm:$0xff]
    %v3434 = vld [vmem:[#allocation10 + $0x1e4] sm:$0xff]
    %v3435 = vld [vmem:[#allocation10 + $0x1ec] sm:$0xff]
    %v3436 = vld [vmem:[#allocation10 + $0x1f4] sm:$0xf]
    %v3437 = vld [vmem:[#allocation10 + $0x1f8] sm:$0xff]
    %v3438 = vld [vmem:[#allocation10 + $0x200] sm:$0xff]
    %v3439 = vld [vmem:[#allocation10 + $0x208] sm:$0xff]
    %v3440 = vld [vmem:[#allocation10 + $0x210] sm:$0xf]
    %v3441 = vld [vmem:[#allocation10 + $0x214] sm:$0xff]
    %v3442 = vld [vmem:[#allocation10 + $0x21c] sm:$0xff]
    %v3443 = vld [vmem:[#allocation10 + $0x224] sm:$0xff]
    %v3444 = vld [vmem:[#allocation10 + $0x22c] sm:$0xf]
    %v3445 = vld [vmem:[#allocation10 + $0x230] sm:$0xff]
    %v3446 = vld [vmem:[#allocation10 + $0x238] sm:$0xff]
    %v3447 = vld [vmem:[#allocation10 + $0x240] sm:$0xff]
    %v3448 = vld [vmem:[#allocation10 + $0x248] sm:$0xf]
    %v3449 = vld [vmem:[#allocation10 + $0x24c] sm:$0xff]
    %v3450 = vld [vmem:[#allocation10 + $0x254] sm:$0xff]
    %v3451 = vld [vmem:[#allocation10 + $0x25c] sm:$0xff]
    %v3452 = vld [vmem:[#allocation10 + $0x264] sm:$0xf]
    %v3453 = vld [vmem:[#allocation10 + $0x268] sm:$0xff]
    %v3454 = vld [vmem:[#allocation10 + $0x270] sm:$0xff]
    %v3455 = vld [vmem:[#allocation10 + $0x278] sm:$0xff]
    %v3456 = vld [vmem:[#allocation10 + $0x280] sm:$0xf]
    %v3457 = vld [vmem:[#allocation10 + $0x284] sm:$0xff]
    %v3458 = vld [vmem:[#allocation10 + $0x28c] sm:$0xff]
    %v3459 = vld [vmem:[#allocation10 + $0x294] sm:$0xff]
    %v3460 = vld [vmem:[#allocation10 + $0x29c] sm:$0xf]
    %v3461 = vld [vmem:[#allocation10 + $0x2a0] sm:$0xff]
    %v3462 = vld [vmem:[#allocation10 + $0x2a8] sm:$0xff]
    %v3463 = vld [vmem:[#allocation10 + $0x2b0] sm:$0xff]
    %v3464 = vld [vmem:[#allocation10 + $0x2b8] sm:$0xf]
    %v3465 = vld [vmem:[#allocation10 + $0x2bc] sm:$0xff]
    %v3466 = vld [vmem:[#allocation10 + $0x2c4] sm:$0xff]
    %v3467 = vld [vmem:[#allocation10 + $0x2cc] sm:$0xff]
    %v3468 = vld [vmem:[#allocation10 + $0x2d4] sm:$0xf]
    %v3469 = vld [vmem:[#allocation10 + $0x2d8] sm:$0xff]
    %v3470 = vld [vmem:[#allocation10 + $0x2e0] sm:$0xff]
    %v3471 = vld [vmem:[#allocation10 + $0x2e8] sm:$0xff]
    %v3472 = vld [vmem:[#allocation10 + $0x2f0] sm:$0xf]
    %v3473 = vld [vmem:[#allocation10 + $0x2f4] sm:$0xff]
    %v3474 = vld [vmem:[#allocation10 + $0x2fc] sm:$0xff]
    %v3475 = vld [vmem:[#allocation10 + $0x304] sm:$0xff]
    %v3476 = vld [vmem:[#allocation10 + $0x30c] sm:$0xf]
    %v3477 = vld [vmem:[#allocation10 + $0x310] sm:$0xff]
    %v3478 = vld [vmem:[#allocation10 + $0x318] sm:$0xff]
    %v3479 = vld [vmem:[#allocation10 + $0x320] sm:$0xff]
    %v3480 = vld [vmem:[#allocation10 + $0x328] sm:$0xf]
    %v3481 = vld [vmem:[#allocation10 + $0x32c] sm:$0xff]
    %v3482 = vld [vmem:[#allocation10 + $0x334] sm:$0xff]
    %v3483 = vld [vmem:[#allocation10 + $0x33c] sm:$0xff]
    %v3484 = vld [vmem:[#allocation10 + $0x344] sm:$0xf]
    %v3485 = vld [vmem:[#allocation10 + $0x348] sm:$0xff]
    %v3486 = vld [vmem:[#allocation10 + $0x350] sm:$0xff]
    %v3487 = vld [vmem:[#allocation10 + $0x358] sm:$0xff]
    %v3488 = vld [vmem:[#allocation10 + $0x360] sm:$0xf]
    %v3489 = vld [vmem:[#allocation10 + $0x364] sm:$0xff]
    %v3490 = vld [vmem:[#allocation10 + $0x36c] sm:$0xff]
    %v3491 = vld [vmem:[#allocation10 + $0x374] sm:$0xff]
    %v3492 = vld [vmem:[#allocation10 + $0x37c] sm:$0xf]
    %v3493 = vld [vmem:[#allocation10 + $0x380] sm:$0xff]
    %v3494 = vld [vmem:[#allocation10 + $0x388] sm:$0xff]
    %v3495 = vld [vmem:[#allocation10 + $0x390] sm:$0xff]
    %v3496 = vld [vmem:[#allocation10 + $0x398] sm:$0xf]
    %v3497 = vld [vmem:[#allocation10 + $0x39c] sm:$0xff]
    %v3498 = vld [vmem:[#allocation10 + $0x3a4] sm:$0xff]
    %v3499 = vld [vmem:[#allocation10 + $0x3ac] sm:$0xff]
    %v3500 = vld [vmem:[#allocation10 + $0x3b4] sm:$0xf]
    %v3501 = vld [vmem:[#allocation10 + $0x3b8] sm:$0xff]
    %v3502 = vld [vmem:[#allocation10 + $0x3c0] sm:$0xff]
    %v3503 = vld [vmem:[#allocation10 + $0x3c8] sm:$0xff]
    %v3504 = vld [vmem:[#allocation10 + $0x3d0] sm:$0xf]
    %v3505 = vld [vmem:[#allocation10 + $0x3d4] sm:$0xff]
    %v3506 = vld [vmem:[#allocation10 + $0x3dc] sm:$0xff]
    %v3507 = vld [vmem:[#allocation10 + $0x3e4] sm:$0xff]
    %v3508 = vld [vmem:[#allocation10 + $0x3ec] sm:$0xf]
    %v3509 = vld [vmem:[#allocation10 + $0x3f0] sm:$0xff]
    %v3510 = vld [vmem:[#allocation10 + $0x3f8] sm:$0xff]
    %v3511 = vld [vmem:[#allocation10 + $0x400] sm:$0xff]
    %v3512 = vld [vmem:[#allocation10 + $0x408] sm:$0xf]
    %v3513 = vld [vmem:[#allocation10 + $0x40c] sm:$0xff]
    %v3514 = vld [vmem:[#allocation10 + $0x414] sm:$0xff]
    %v3515 = vld [vmem:[#allocation10 + $0x41c] sm:$0xff]
    %v3516 = vld [vmem:[#allocation10 + $0x424] sm:$0xf]
    %v3517 = vld [vmem:[#allocation10 + $0x428] sm:$0xff]
    %v3518 = vld [vmem:[#allocation10 + $0x430] sm:$0xff]
    %v3519 = vld [vmem:[#allocation10 + $0x438] sm:$0xff]
    %v3520 = vld [vmem:[#allocation10 + $0x440] sm:$0xf]
    %v3521 = vld [vmem:[#allocation10 + $0x444] sm:$0xff]
    %v3522 = vld [vmem:[#allocation10 + $0x44c] sm:$0xff]
    %v3523 = vld [vmem:[#allocation10 + $0x454] sm:$0xff]
    %v3524 = vld [vmem:[#allocation10 + $0x45c] sm:$0xf]
    %v3525 = vld [vmem:[#allocation10 + $0x460] sm:$0xff]
    %v3526 = vld [vmem:[#allocation10 + $0x468] sm:$0xff]
    %v3527 = vld [vmem:[#allocation10 + $0x470] sm:$0xff]
    %v3528 = vld [vmem:[#allocation10 + $0x478] sm:$0xf]
    %v3529 = vld [vmem:[#allocation10 + $0x47c] sm:$0xff]
    %v3530 = vld [vmem:[#allocation10 + $0x484] sm:$0xff]
    %v3531 = vld [vmem:[#allocation10 + $0x48c] sm:$0xff]
    %v3532 = vld [vmem:[#allocation10 + $0x494] sm:$0xf]
    %v3533 = vld [vmem:[#allocation10 + $0x498] sm:$0xff]
    %v3534 = vld [vmem:[#allocation10 + $0x4a0] sm:$0xff]
    %v3535 = vld [vmem:[#allocation10 + $0x4a8] sm:$0xff]
    %v3536 = vld [vmem:[#allocation10 + $0x4b0] sm:$0xf]
    %v3537 = vld [vmem:[#allocation10 + $0x4b4] sm:$0xff]
    %v3538 = vld [vmem:[#allocation10 + $0x4bc] sm:$0xff]
    %v3539 = vld [vmem:[#allocation10 + $0x4c4] sm:$0xff]
    %v3540 = vld [vmem:[#allocation10 + $0x4cc] sm:$0xf]
    %v3541 = vld [vmem:[#allocation10 + $0x4d0] sm:$0xff]
    %v3542 = vld [vmem:[#allocation10 + $0x4d8] sm:$0xff]
    %v3543 = vld [vmem:[#allocation10 + $0x4e0] sm:$0xff]
    %v3544 = vld [vmem:[#allocation10 + $0x4e8] sm:$0xf]
    %v3545 = vld [vmem:[#allocation10 + $0x4ec] sm:$0xff]
    %v3546 = vld [vmem:[#allocation10 + $0x4f4] sm:$0xff]
    %v3547 = vld [vmem:[#allocation10 + $0x4fc] sm:$0xff]
    %v3548 = vld [vmem:[#allocation10 + $0x504] sm:$0xf]
    %v3549 = vld [vmem:[#allocation10 + $0x508] sm:$0xff]
    %v3550 = vld [vmem:[#allocation10 + $0x510] sm:$0xff]
    %v3551 = vld [vmem:[#allocation10 + $0x518] sm:$0xff]
    %v3552 = vld [vmem:[#allocation10 + $0x520] sm:$0xf]
    %v3553 = vld [vmem:[#allocation10 + $0x524] sm:$0xff]
    %v3554 = vld [vmem:[#allocation10 + $0x52c] sm:$0xff]
    %v3555 = vld [vmem:[#allocation10 + $0x534] sm:$0xff]
    %v3556 = vld [vmem:[#allocation10 + $0x53c] sm:$0xf]
    %v3557 = vld [vmem:[#allocation10 + $0x540] sm:$0xff]
    %v3558 = vld [vmem:[#allocation10 + $0x548] sm:$0xff]
    %v3559 = vld [vmem:[#allocation10 + $0x550] sm:$0xff]
    %v3560 = vld [vmem:[#allocation10 + $0x558] sm:$0xf]
    %v3561 = vld [vmem:[#allocation10 + $0x55c] sm:$0xff]
    %v3562 = vld [vmem:[#allocation10 + $0x564] sm:$0xff]
    %v3563 = vld [vmem:[#allocation10 + $0x56c] sm:$0xff]
    %v3564 = vld [vmem:[#allocation10 + $0x574] sm:$0xf]
    %v3565 = vld [vmem:[#allocation10 + $0x578] sm:$0xff]
    %v3566 = vld [vmem:[#allocation10 + $0x580] sm:$0xff]
    %v3567 = vld [vmem:[#allocation10 + $0x588] sm:$0xff]
    %v3568 = vld [vmem:[#allocation10 + $0x590] sm:$0xf]
    %v3569 = vld [vmem:[#allocation10 + $0x594] sm:$0xff]
    %v3570 = vld [vmem:[#allocation10 + $0x59c] sm:$0xff]
    %v3571 = vld [vmem:[#allocation10 + $0x5a4] sm:$0xff]
    %v3572 = vld [vmem:[#allocation10 + $0x5ac] sm:$0xf]
    %v3573 = vld [vmem:[#allocation10 + $0x5b0] sm:$0xff]
    %v3574 = vld [vmem:[#allocation10 + $0x5b8] sm:$0xff]
    %v3575 = vld [vmem:[#allocation10 + $0x5c0] sm:$0xff]
    %v3576 = vld [vmem:[#allocation10 + $0x5c8] sm:$0xf]
    %v3577 = vld [vmem:[#allocation10 + $0x5cc] sm:$0xff]
    %v3578 = vld [vmem:[#allocation10 + $0x5d4] sm:$0xff]
    %v3579 = vld [vmem:[#allocation10 + $0x5dc] sm:$0xff]
    %v3580 = vld [vmem:[#allocation10 + $0x5e4] sm:$0xf]
    %v3581 = vld [vmem:[#allocation10 + $0x5e8] sm:$0xff]
    %v3582 = vld [vmem:[#allocation10 + $0x5f0] sm:$0xff]
    %v3583 = vld [vmem:[#allocation10 + $0x5f8] sm:$0xff]
    %v3584 = vld [vmem:[#allocation10 + $0x600] sm:$0xf]
    %v3585 = vld [vmem:[#allocation10 + $0x604] sm:$0xff]
    %v3586 = vld [vmem:[#allocation10 + $0x60c] sm:$0xff]
    %v3587 = vld [vmem:[#allocation10 + $0x614] sm:$0xff]
    %v3588 = vld [vmem:[#allocation10 + $0x61c] sm:$0xf]
    %v3589 = vld [vmem:[#allocation10 + $0x620] sm:$0xff]
    %v3590 = vld [vmem:[#allocation10 + $0x628] sm:$0xff]
    %v3591 = vld [vmem:[#allocation10 + $0x630] sm:$0xff]
    %v3592 = vld [vmem:[#allocation10 + $0x638] sm:$0xf]
    %v3593 = vld [vmem:[#allocation10 + $0x63c] sm:$0xff]
    %v3594 = vld [vmem:[#allocation10 + $0x644] sm:$0xff]
    %v3595 = vld [vmem:[#allocation10 + $0x64c] sm:$0xff]
    %v3596 = vld [vmem:[#allocation10 + $0x654] sm:$0xf]
    %v3597 = vld [vmem:[#allocation10 + $0x658] sm:$0xff]
    %v3598 = vld [vmem:[#allocation10 + $0x660] sm:$0xff]
    %v3599 = vld [vmem:[#allocation10 + $0x668] sm:$0xff]
    %v3600 = vld [vmem:[#allocation10 + $0x670] sm:$0xf]
    %v3601 = vld [vmem:[#allocation10 + $0x674] sm:$0xff]
    %v3602 = vld [vmem:[#allocation10 + $0x67c] sm:$0xff]
    %v3603 = vld [vmem:[#allocation10 + $0x684] sm:$0xff]
    %v3604 = vld [vmem:[#allocation10 + $0x68c] sm:$0xf]
    %v3605 = vld [vmem:[#allocation10 + $0x690] sm:$0xff]
    %v3606 = vld [vmem:[#allocation10 + $0x698] sm:$0xff]
    %v3607 = vld [vmem:[#allocation10 + $0x6a0] sm:$0xff]
    %v3608 = vld [vmem:[#allocation10 + $0x6a8] sm:$0xf]
    %v3609 = vld [vmem:[#allocation10 + $0x6ac] sm:$0xff]
    %v3610 = vld [vmem:[#allocation10 + $0x6b4] sm:$0xff]
    %v3611 = vld [vmem:[#allocation10 + $0x6bc] sm:$0xff]
    %v3612 = vld [vmem:[#allocation10 + $0x6c4] sm:$0xf]
    %v3613 = vld [vmem:[#allocation10 + $0x6c8] sm:$0xff]
    %v3614 = vld [vmem:[#allocation10 + $0x6d0] sm:$0xff]
    %v3615 = vld [vmem:[#allocation10 + $0x6d8] sm:$0xff]
    %v3616 = vld [vmem:[#allocation10 + $0x6e0] sm:$0xf]
    %v3617 = vld [vmem:[#allocation10 + $0x6e4] sm:$0xff]
    %v3618 = vld [vmem:[#allocation10 + $0x6ec] sm:$0xff]
    %v3619 = vld [vmem:[#allocation10 + $0x6f4] sm:$0xff]
    %v3620 = vld [vmem:[#allocation10 + $0x6fc] sm:$0xf]
    %v3621 = vld [vmem:[%s14] sm:$0xff]
    %v3623 = vlaneseq
    %v3624 = vshrl.u32 %v3623, 7
    %v3625 = vsub.s32 0, %v3624
    %v3626 = vrot.slane %v3621, %v3625
    %v3627 = vlaneseq
    %v3628 = vshrl.u32 %v3627, 7
    %v3629 = vsub.s32 1, %v3628
    %v3630 = vrot.slane %v3621, %v3629
    %v3631 = vlaneseq
    %v3632 = vshrl.u32 %v3631, 7
    %v3633 = vsub.s32 2, %v3632
    %v3634 = vrot.slane %v3621, %v3633
    %v3635 = vlaneseq
    %v3636 = vshrl.u32 %v3635, 7
    %v3637 = vsub.s32 3, %v3636
    %v3638 = vrot.slane %v3621, %v3637
    %v3639 = vlaneseq
    %v3640 = vshrl.u32 %v3639, 7
    %v3641 = vsub.s32 4, %v3640
    %v3642 = vrot.slane %v3621, %v3641
    %v3643 = vlaneseq
    %v3644 = vshrl.u32 %v3643, 7
    %v3645 = vsub.s32 5, %v3644
    %v3646 = vrot.slane %v3621, %v3645
    %v3647 = vlaneseq
    %v3648 = vshrl.u32 %v3647, 7
    %v3649 = vsub.s32 6, %v3648
    %v3650 = vrot.slane %v3621, %v3649
    %v3914 = vunpack.c.l.b16 %v3365
    %v3915 = vunpack.c.h.b16 %v3365
    %v3916 = vunpack.c.l.b16 %v3366
    %v3917 = vunpack.c.h.b16 %v3366
    %v3918 = vunpack.c.l.b16 %v3367
    %v3919 = vunpack.c.h.b16 %v3367
    %v3920 = vunpack.c.l.b16 %v3368
    %v3921 = vunpack.c.l.b16 %v3369
    %v3922 = vunpack.c.h.b16 %v3369
    %v3923 = vunpack.c.l.b16 %v3370
    %v3924 = vunpack.c.h.b16 %v3370
    %v3925 = vunpack.c.l.b16 %v3371
    %v3926 = vunpack.c.h.b16 %v3371
    %v3927 = vunpack.c.l.b16 %v3372
    %v3928 = vunpack.c.l.b16 %v3373
    %v3929 = vunpack.c.h.b16 %v3373
    %v3930 = vunpack.c.l.b16 %v3374
    %v3931 = vunpack.c.h.b16 %v3374
    %v3932 = vunpack.c.l.b16 %v3375
    %v3933 = vunpack.c.h.b16 %v3375
    %v3934 = vunpack.c.l.b16 %v3376
    %v3935 = vunpack.c.l.b16 %v3377
    %v3936 = vunpack.c.h.b16 %v3377
    %v3937 = vunpack.c.l.b16 %v3378
    %v3938 = vunpack.c.h.b16 %v3378
    %v3939 = vunpack.c.l.b16 %v3379
    %v3940 = vunpack.c.h.b16 %v3379
    %v3941 = vunpack.c.l.b16 %v3380
    %v3942 = vunpack.c.l.b16 %v3381
    %v3943 = vunpack.c.h.b16 %v3381
    %v3944 = vunpack.c.l.b16 %v3382
    %v3945 = vunpack.c.h.b16 %v3382
    %v3946 = vunpack.c.l.b16 %v3383
    %v3947 = vunpack.c.h.b16 %v3383
    %v3948 = vunpack.c.l.b16 %v3384
    %v3949 = vunpack.c.l.b16 %v3385
    %v3950 = vunpack.c.h.b16 %v3385
    %v3951 = vunpack.c.l.b16 %v3386
    %v3952 = vunpack.c.h.b16 %v3386
    %v3953 = vunpack.c.l.b16 %v3387
    %v3954 = vunpack.c.h.b16 %v3387
    %v3955 = vunpack.c.l.b16 %v3388
    %v3956 = vunpack.c.l.b16 %v3389
    %v3957 = vunpack.c.h.b16 %v3389
    %v3958 = vunpack.c.l.b16 %v3390
    %v3959 = vunpack.c.h.b16 %v3390
    %v3960 = vunpack.c.l.b16 %v3391
    %v3961 = vunpack.c.h.b16 %v3391
    %v3962 = vunpack.c.l.b16 %v3392
    %v3963 = vunpack.c.l.b16 %v3393
    %v3964 = vunpack.c.h.b16 %v3393
    %v3965 = vunpack.c.l.b16 %v3394
    %v3966 = vunpack.c.h.b16 %v3394
    %v3967 = vunpack.c.l.b16 %v3395
    %v3968 = vunpack.c.h.b16 %v3395
    %v3969 = vunpack.c.l.b16 %v3396
    %v3970 = vunpack.c.l.b16 %v3397
    %v3971 = vunpack.c.h.b16 %v3397
    %v3972 = vunpack.c.l.b16 %v3398
    %v3973 = vunpack.c.h.b16 %v3398
    %v3974 = vunpack.c.l.b16 %v3399
    %v3975 = vunpack.c.h.b16 %v3399
    %v3976 = vunpack.c.l.b16 %v3400
    %v3977 = vunpack.c.l.b16 %v3401
    %v3978 = vunpack.c.h.b16 %v3401
    %v3979 = vunpack.c.l.b16 %v3402
    %v3980 = vunpack.c.h.b16 %v3402
    %v3981 = vunpack.c.l.b16 %v3403
    %v3982 = vunpack.c.h.b16 %v3403
    %v3983 = vunpack.c.l.b16 %v3404
    %v3984 = vunpack.c.l.b16 %v3405
    %v3985 = vunpack.c.h.b16 %v3405
    %v3986 = vunpack.c.l.b16 %v3406
    %v3987 = vunpack.c.h.b16 %v3406
    %v3988 = vunpack.c.l.b16 %v3407
    %v3989 = vunpack.c.h.b16 %v3407
    %v3990 = vunpack.c.l.b16 %v3408
    %v3991 = vunpack.c.l.b16 %v3409
    %v3992 = vunpack.c.h.b16 %v3409
    %v3993 = vunpack.c.l.b16 %v3410
    %v3994 = vunpack.c.h.b16 %v3410
    %v3995 = vunpack.c.l.b16 %v3411
    %v3996 = vunpack.c.h.b16 %v3411
    %v3997 = vunpack.c.l.b16 %v3412
    %v3998 = vunpack.c.l.b16 %v3413
    %v3999 = vunpack.c.h.b16 %v3413
    %v4000 = vunpack.c.l.b16 %v3414
    %v4001 = vunpack.c.h.b16 %v3414
    %v4002 = vunpack.c.l.b16 %v3415
    %v4003 = vunpack.c.h.b16 %v3415
    %v4004 = vunpack.c.l.b16 %v3416
    %v4005 = vunpack.c.l.b16 %v3417
    %v4006 = vunpack.c.h.b16 %v3417
    %v4007 = vunpack.c.l.b16 %v3418
    %v4008 = vunpack.c.h.b16 %v3418
    %v4009 = vunpack.c.l.b16 %v3419
    %v4010 = vunpack.c.h.b16 %v3419
    %v4011 = vunpack.c.l.b16 %v3420
    %v4012 = vunpack.c.l.b16 %v3421
    %v4013 = vunpack.c.h.b16 %v3421
    %v4014 = vunpack.c.l.b16 %v3422
    %v4015 = vunpack.c.h.b16 %v3422
    %v4016 = vunpack.c.l.b16 %v3423
    %v4017 = vunpack.c.h.b16 %v3423
    %v4018 = vunpack.c.l.b16 %v3424
    %v4019 = vunpack.c.l.b16 %v3425
    %v4020 = vunpack.c.h.b16 %v3425
    %v4021 = vunpack.c.l.b16 %v3426
    %v4022 = vunpack.c.h.b16 %v3426
    %v4023 = vunpack.c.l.b16 %v3427
    %v4024 = vunpack.c.h.b16 %v3427
    %v4025 = vunpack.c.l.b16 %v3428
    %v4026 = vunpack.c.l.b16 %v3429
    %v4027 = vunpack.c.h.b16 %v3429
    %v4028 = vunpack.c.l.b16 %v3430
    %v4029 = vunpack.c.h.b16 %v3430
    %v4030 = vunpack.c.l.b16 %v3431
    %v4031 = vunpack.c.h.b16 %v3431
    %v4032 = vunpack.c.l.b16 %v3432
    %v4033 = vunpack.c.l.b16 %v3433
    %v4034 = vunpack.c.h.b16 %v3433
    %v4035 = vunpack.c.l.b16 %v3434
    %v4036 = vunpack.c.h.b16 %v3434
    %v4037 = vunpack.c.l.b16 %v3435
    %v4038 = vunpack.c.h.b16 %v3435
    %v4039 = vunpack.c.l.b16 %v3436
    %v4040 = vunpack.c.l.b16 %v3437
    %v4041 = vunpack.c.h.b16 %v3437
    %v4042 = vunpack.c.l.b16 %v3438
    %v4043 = vunpack.c.h.b16 %v3438
    %v4044 = vunpack.c.l.b16 %v3439
    %v4045 = vunpack.c.h.b16 %v3439
    %v4046 = vunpack.c.l.b16 %v3440
    %v4047 = vunpack.c.l.b16 %v3441
    %v4048 = vunpack.c.h.b16 %v3441
    %v4049 = vunpack.c.l.b16 %v3442
    %v4050 = vunpack.c.h.b16 %v3442
    %v4051 = vunpack.c.l.b16 %v3443
    %v4052 = vunpack.c.h.b16 %v3443
    %v4053 = vunpack.c.l.b16 %v3444
    %v4054 = vunpack.c.l.b16 %v3445
    %v4055 = vunpack.c.h.b16 %v3445
    %v4056 = vunpack.c.l.b16 %v3446
    %v4057 = vunpack.c.h.b16 %v3446
    %v4058 = vunpack.c.l.b16 %v3447
    %v4059 = vunpack.c.h.b16 %v3447
    %v4060 = vunpack.c.l.b16 %v3448
    %v4061 = vunpack.c.l.b16 %v3449
    %v4062 = vunpack.c.h.b16 %v3449
    %v4063 = vunpack.c.l.b16 %v3450
    %v4064 = vunpack.c.h.b16 %v3450
    %v4065 = vunpack.c.l.b16 %v3451
    %v4066 = vunpack.c.h.b16 %v3451
    %v4067 = vunpack.c.l.b16 %v3452
    %v4068 = vunpack.c.l.b16 %v3453
    %v4069 = vunpack.c.h.b16 %v3453
    %v4070 = vunpack.c.l.b16 %v3454
    %v4071 = vunpack.c.h.b16 %v3454
    %v4072 = vunpack.c.l.b16 %v3455
    %v4073 = vunpack.c.h.b16 %v3455
    %v4074 = vunpack.c.l.b16 %v3456
    %v4075 = vunpack.c.l.b16 %v3457
    %v4076 = vunpack.c.h.b16 %v3457
    %v4077 = vunpack.c.l.b16 %v3458
    %v4078 = vunpack.c.h.b16 %v3458
    %v4079 = vunpack.c.l.b16 %v3459
    %v4080 = vunpack.c.h.b16 %v3459
    %v4081 = vunpack.c.l.b16 %v3460
    %v4082 = vunpack.c.l.b16 %v3461
    %v4083 = vunpack.c.h.b16 %v3461
    %v4084 = vunpack.c.l.b16 %v3462
    %v4085 = vunpack.c.h.b16 %v3462
    %v4086 = vunpack.c.l.b16 %v3463
    %v4087 = vunpack.c.h.b16 %v3463
    %v4088 = vunpack.c.l.b16 %v3464
    %v4089 = vunpack.c.l.b16 %v3465
    %v4090 = vunpack.c.h.b16 %v3465
    %v4091 = vunpack.c.l.b16 %v3466
    %v4092 = vunpack.c.h.b16 %v3466
    %v4093 = vunpack.c.l.b16 %v3467
    %v4094 = vunpack.c.h.b16 %v3467
    %v4095 = vunpack.c.l.b16 %v3468
    %v4096 = vunpack.c.l.b16 %v3469
    %v4097 = vunpack.c.h.b16 %v3469
    %v4098 = vunpack.c.l.b16 %v3470
    %v4099 = vunpack.c.h.b16 %v3470
    %v4100 = vunpack.c.l.b16 %v3471
    %v4101 = vunpack.c.h.b16 %v3471
    %v4102 = vunpack.c.l.b16 %v3472
    %v4103 = vunpack.c.l.b16 %v3473
    %v4104 = vunpack.c.h.b16 %v3473
    %v4105 = vunpack.c.l.b16 %v3474
    %v4106 = vunpack.c.h.b16 %v3474
    %v4107 = vunpack.c.l.b16 %v3475
    %v4108 = vunpack.c.h.b16 %v3475
    %v4109 = vunpack.c.l.b16 %v3476
    %v4110 = vunpack.c.l.b16 %v3477
    %v4111 = vunpack.c.h.b16 %v3477
    %v4112 = vunpack.c.l.b16 %v3478
    %v4113 = vunpack.c.h.b16 %v3478
    %v4114 = vunpack.c.l.b16 %v3479
    %v4115 = vunpack.c.h.b16 %v3479
    %v4116 = vunpack.c.l.b16 %v3480
    %v4117 = vunpack.c.l.b16 %v3481
    %v4118 = vunpack.c.h.b16 %v3481
    %v4119 = vunpack.c.l.b16 %v3482
    %v4120 = vunpack.c.h.b16 %v3482
    %v4121 = vunpack.c.l.b16 %v3483
    %v4122 = vunpack.c.h.b16 %v3483
    %v4123 = vunpack.c.l.b16 %v3484
    %v4124 = vunpack.c.l.b16 %v3485
    %v4125 = vunpack.c.h.b16 %v3485
    %v4126 = vunpack.c.l.b16 %v3486
    %v4127 = vunpack.c.h.b16 %v3486
    %v4128 = vunpack.c.l.b16 %v3487
    %v4129 = vunpack.c.h.b16 %v3487
    %v4130 = vunpack.c.l.b16 %v3488
    %v4131 = vunpack.c.l.b16 %v3489
    %v4132 = vunpack.c.h.b16 %v3489
    %v4133 = vunpack.c.l.b16 %v3490
    %v4134 = vunpack.c.h.b16 %v3490
    %v4135 = vunpack.c.l.b16 %v3491
    %v4136 = vunpack.c.h.b16 %v3491
    %v4137 = vunpack.c.l.b16 %v3492
    %v4138 = vunpack.c.l.b16 %v3493
    %v4139 = vunpack.c.h.b16 %v3493
    %v4140 = vunpack.c.l.b16 %v3494
    %v4141 = vunpack.c.h.b16 %v3494
    %v4142 = vunpack.c.l.b16 %v3495
    %v4143 = vunpack.c.h.b16 %v3495
    %v4144 = vunpack.c.l.b16 %v3496
    %v4145 = vunpack.c.l.b16 %v3497
    %v4146 = vunpack.c.h.b16 %v3497
    %v4147 = vunpack.c.l.b16 %v3498
    %v4148 = vunpack.c.h.b16 %v3498
    %v4149 = vunpack.c.l.b16 %v3499
    %v4150 = vunpack.c.h.b16 %v3499
    %v4151 = vunpack.c.l.b16 %v3500
    %v4152 = vunpack.c.l.b16 %v3501
    %v4153 = vunpack.c.h.b16 %v3501
    %v4154 = vunpack.c.l.b16 %v3502
    %v4155 = vunpack.c.h.b16 %v3502
    %v4156 = vunpack.c.l.b16 %v3503
    %v4157 = vunpack.c.h.b16 %v3503
    %v4158 = vunpack.c.l.b16 %v3504
    %v4159 = vunpack.c.l.b16 %v3505
    %v4160 = vunpack.c.h.b16 %v3505
    %v4161 = vunpack.c.l.b16 %v3506
    %v4162 = vunpack.c.h.b16 %v3506
    %v4163 = vunpack.c.l.b16 %v3507
    %v4164 = vunpack.c.h.b16 %v3507
    %v4165 = vunpack.c.l.b16 %v3508
    %v4166 = vunpack.c.l.b16 %v3509
    %v4167 = vunpack.c.h.b16 %v3509
    %v4168 = vunpack.c.l.b16 %v3510
    %v4169 = vunpack.c.h.b16 %v3510
    %v4170 = vunpack.c.l.b16 %v3511
    %v4171 = vunpack.c.h.b16 %v3511
    %v4172 = vunpack.c.l.b16 %v3512
    %v4173 = vunpack.c.l.b16 %v3513
    %v4174 = vunpack.c.h.b16 %v3513
    %v4175 = vunpack.c.l.b16 %v3514
    %v4176 = vunpack.c.h.b16 %v3514
    %v4177 = vunpack.c.l.b16 %v3515
    %v4178 = vunpack.c.h.b16 %v3515
    %v4179 = vunpack.c.l.b16 %v3516
    %v4180 = vunpack.c.l.b16 %v3517
    %v4181 = vunpack.c.h.b16 %v3517
    %v4182 = vunpack.c.l.b16 %v3518
    %v4183 = vunpack.c.h.b16 %v3518
    %v4184 = vunpack.c.l.b16 %v3519
    %v4185 = vunpack.c.h.b16 %v3519
    %v4186 = vunpack.c.l.b16 %v3520
    %v4187 = vunpack.c.l.b16 %v3521
    %v4188 = vunpack.c.h.b16 %v3521
    %v4189 = vunpack.c.l.b16 %v3522
    %v4190 = vunpack.c.h.b16 %v3522
    %v4191 = vunpack.c.l.b16 %v3523
    %v4192 = vunpack.c.h.b16 %v3523
    %v4193 = vunpack.c.l.b16 %v3524
    %v4194 = vunpack.c.l.b16 %v3525
    %v4195 = vunpack.c.h.b16 %v3525
    %v4196 = vunpack.c.l.b16 %v3526
    %v4197 = vunpack.c.h.b16 %v3526
    %v4198 = vunpack.c.l.b16 %v3527
    %v4199 = vunpack.c.h.b16 %v3527
    %v4200 = vunpack.c.l.b16 %v3528
    %v4201 = vunpack.c.l.b16 %v3529
    %v4202 = vunpack.c.h.b16 %v3529
    %v4203 = vunpack.c.l.b16 %v3530
    %v4204 = vunpack.c.h.b16 %v3530
    %v4205 = vunpack.c.l.b16 %v3531
    %v4206 = vunpack.c.h.b16 %v3531
    %v4207 = vunpack.c.l.b16 %v3532
    %v4208 = vunpack.c.l.b16 %v3533
    %v4209 = vunpack.c.h.b16 %v3533
    %v4210 = vunpack.c.l.b16 %v3534
    %v4211 = vunpack.c.h.b16 %v3534
    %v4212 = vunpack.c.l.b16 %v3535
    %v4213 = vunpack.c.h.b16 %v3535
    %v4214 = vunpack.c.l.b16 %v3536
    %v4215 = vunpack.c.l.b16 %v3537
    %v4216 = vunpack.c.h.b16 %v3537
    %v4217 = vunpack.c.l.b16 %v3538
    %v4218 = vunpack.c.h.b16 %v3538
    %v4219 = vunpack.c.l.b16 %v3539
    %v4220 = vunpack.c.h.b16 %v3539
    %v4221 = vunpack.c.l.b16 %v3540
    %v4222 = vunpack.c.l.b16 %v3541
    %v4223 = vunpack.c.h.b16 %v3541
    %v4224 = vunpack.c.l.b16 %v3542
    %v4225 = vunpack.c.h.b16 %v3542
    %v4226 = vunpack.c.l.b16 %v3543
    %v4227 = vunpack.c.h.b16 %v3543
    %v4228 = vunpack.c.l.b16 %v3544
    %v4229 = vunpack.c.l.b16 %v3545
    %v4230 = vunpack.c.h.b16 %v3545
    %v4231 = vunpack.c.l.b16 %v3546
    %v4232 = vunpack.c.h.b16 %v3546
    %v4233 = vunpack.c.l.b16 %v3547
    %v4234 = vunpack.c.h.b16 %v3547
    %v4235 = vunpack.c.l.b16 %v3548
    %v4236 = vunpack.c.l.b16 %v3549
    %v4237 = vunpack.c.h.b16 %v3549
    %v4238 = vunpack.c.l.b16 %v3550
    %v4239 = vunpack.c.h.b16 %v3550
    %v4240 = vunpack.c.l.b16 %v3551
    %v4241 = vunpack.c.h.b16 %v3551
    %v4242 = vunpack.c.l.b16 %v3552
    %v4243 = vunpack.c.l.b16 %v3553
    %v4244 = vunpack.c.h.b16 %v3553
    %v4245 = vunpack.c.l.b16 %v3554
    %v4246 = vunpack.c.h.b16 %v3554
    %v4247 = vunpack.c.l.b16 %v3555
    %v4248 = vunpack.c.h.b16 %v3555
    %v4249 = vunpack.c.l.b16 %v3556
    %v4250 = vunpack.c.l.b16 %v3557
    %v4251 = vunpack.c.h.b16 %v3557
    %v4252 = vunpack.c.l.b16 %v3558
    %v4253 = vunpack.c.h.b16 %v3558
    %v4254 = vunpack.c.l.b16 %v3559
    %v4255 = vunpack.c.h.b16 %v3559
    %v4256 = vunpack.c.l.b16 %v3560
    %v4257 = vunpack.c.l.b16 %v3561
    %v4258 = vunpack.c.h.b16 %v3561
    %v4259 = vunpack.c.l.b16 %v3562
    %v4260 = vunpack.c.h.b16 %v3562
    %v4261 = vunpack.c.l.b16 %v3563
    %v4262 = vunpack.c.h.b16 %v3563
    %v4263 = vunpack.c.l.b16 %v3564
    %v4264 = vunpack.c.l.b16 %v3565
    %v4265 = vunpack.c.h.b16 %v3565
    %v4266 = vunpack.c.l.b16 %v3566
    %v4267 = vunpack.c.h.b16 %v3566
    %v4268 = vunpack.c.l.b16 %v3567
    %v4269 = vunpack.c.h.b16 %v3567
    %v4270 = vunpack.c.l.b16 %v3568
    %v4271 = vunpack.c.l.b16 %v3569
    %v4272 = vunpack.c.h.b16 %v3569
    %v4273 = vunpack.c.l.b16 %v3570
    %v4274 = vunpack.c.h.b16 %v3570
    %v4275 = vunpack.c.l.b16 %v3571
    %v4276 = vunpack.c.h.b16 %v3571
    %v4277 = vunpack.c.l.b16 %v3572
    %v4278 = vunpack.c.l.b16 %v3573
    %v4279 = vunpack.c.h.b16 %v3573
    %v4280 = vunpack.c.l.b16 %v3574
    %v4281 = vunpack.c.h.b16 %v3574
    %v4282 = vunpack.c.l.b16 %v3575
    %v4283 = vunpack.c.h.b16 %v3575
    %v4284 = vunpack.c.l.b16 %v3576
    %v4285 = vunpack.c.l.b16 %v3577
    %v4286 = vunpack.c.h.b16 %v3577
    %v4287 = vunpack.c.l.b16 %v3578
    %v4288 = vunpack.c.h.b16 %v3578
    %v4289 = vunpack.c.l.b16 %v3579
    %v4290 = vunpack.c.h.b16 %v3579
    %v4291 = vunpack.c.l.b16 %v3580
    %v4292 = vunpack.c.l.b16 %v3581
    %v4293 = vunpack.c.h.b16 %v3581
    %v4294 = vunpack.c.l.b16 %v3582
    %v4295 = vunpack.c.h.b16 %v3582
    %v4296 = vunpack.c.l.b16 %v3583
    %v4297 = vunpack.c.h.b16 %v3583
    %v4298 = vunpack.c.l.b16 %v3584
    %v4299 = vunpack.c.l.b16 %v3585
    %v4300 = vunpack.c.h.b16 %v3585
    %v4301 = vunpack.c.l.b16 %v3586
    %v4302 = vunpack.c.h.b16 %v3586
    %v4303 = vunpack.c.l.b16 %v3587
    %v4304 = vunpack.c.h.b16 %v3587
    %v4305 = vunpack.c.l.b16 %v3588
    %v4306 = vunpack.c.l.b16 %v3589
    %v4307 = vunpack.c.h.b16 %v3589
    %v4308 = vunpack.c.l.b16 %v3590
    %v4309 = vunpack.c.h.b16 %v3590
    %v4310 = vunpack.c.l.b16 %v3591
    %v4311 = vunpack.c.h.b16 %v3591
    %v4312 = vunpack.c.l.b16 %v3592
    %v4313 = vunpack.c.l.b16 %v3593
    %v4314 = vunpack.c.h.b16 %v3593
    %v4315 = vunpack.c.l.b16 %v3594
    %v4316 = vunpack.c.h.b16 %v3594
    %v4317 = vunpack.c.l.b16 %v3595
    %v4318 = vunpack.c.h.b16 %v3595
    %v4319 = vunpack.c.l.b16 %v3596
    %v4320 = vunpack.c.l.b16 %v3597
    %v4321 = vunpack.c.h.b16 %v3597
    %v4322 = vunpack.c.l.b16 %v3598
    %v4323 = vunpack.c.h.b16 %v3598
    %v4324 = vunpack.c.l.b16 %v3599
    %v4325 = vunpack.c.h.b16 %v3599
    %v4326 = vunpack.c.l.b16 %v3600
    %v4327 = vunpack.c.l.b16 %v3601
    %v4328 = vunpack.c.h.b16 %v3601
    %v4329 = vunpack.c.l.b16 %v3602
    %v4330 = vunpack.c.h.b16 %v3602
    %v4331 = vunpack.c.l.b16 %v3603
    %v4332 = vunpack.c.h.b16 %v3603
    %v4333 = vunpack.c.l.b16 %v3604
    %v4334 = vunpack.c.l.b16 %v3605
    %v4335 = vunpack.c.h.b16 %v3605
    %v4336 = vunpack.c.l.b16 %v3606
    %v4337 = vunpack.c.h.b16 %v3606
    %v4338 = vunpack.c.l.b16 %v3607
    %v4339 = vunpack.c.h.b16 %v3607
    %v4340 = vunpack.c.l.b16 %v3608
    %v4341 = vunpack.c.l.b16 %v3609
    %v4342 = vunpack.c.h.b16 %v3609
    %v4343 = vunpack.c.l.b16 %v3610
    %v4344 = vunpack.c.h.b16 %v3610
    %v4345 = vunpack.c.l.b16 %v3611
    %v4346 = vunpack.c.h.b16 %v3611
    %v4347 = vunpack.c.l.b16 %v3612
    %v4348 = vunpack.c.l.b16 %v3613
    %v4349 = vunpack.c.h.b16 %v3613
    %v4350 = vunpack.c.l.b16 %v3614
    %v4351 = vunpack.c.h.b16 %v3614
    %v4352 = vunpack.c.l.b16 %v3615
    %v4353 = vunpack.c.h.b16 %v3615
    %v4354 = vunpack.c.l.b16 %v3616
    %v4355 = vunpack.c.l.b16 %v3617
    %v4356 = vunpack.c.h.b16 %v3617
    %v4357 = vunpack.c.l.b16 %v3618
    %v4358 = vunpack.c.h.b16 %v3618
    %v4359 = vunpack.c.l.b16 %v3619
    %v4360 = vunpack.c.h.b16 %v3619
    %v4361 = vunpack.c.l.b16 %v3620
    %v4362 = vpack.c.b16 %v3921, %v3914
    %v4363 = vpack.c.b16 %v3922, %v3915
    %v4364 = vpack.c.b16 %v3923, %v3916
    %v4365 = vpack.c.b16 %v3924, %v3917
    %v4366 = vpack.c.b16 %v3925, %v3918
    %v4367 = vpack.c.b16 %v3926, %v3919
    %v4368 = vpack.c.b16 %v3927, %v3920
    %v4369 = vpack.c.b16 %v3935, %v3928
    %v4370 = vpack.c.b16 %v3936, %v3929
    %v4371 = vpack.c.b16 %v3937, %v3930
    %v4372 = vpack.c.b16 %v3938, %v3931
    %v4373 = vpack.c.b16 %v3939, %v3932
    %v4374 = vpack.c.b16 %v3940, %v3933
    %v4375 = vpack.c.b16 %v3941, %v3934
    %v4376 = vpack.c.b16 %v3949, %v3942
    %v4377 = vpack.c.b16 %v3950, %v3943
    %v4378 = vpack.c.b16 %v3951, %v3944
    %v4379 = vpack.c.b16 %v3952, %v3945
    %v4380 = vpack.c.b16 %v3953, %v3946
    %v4381 = vpack.c.b16 %v3954, %v3947
    %v4382 = vpack.c.b16 %v3955, %v3948
    %v4383 = vpack.c.b16 %v3963, %v3956
    %v4384 = vpack.c.b16 %v3964, %v3957
    %v4385 = vpack.c.b16 %v3965, %v3958
    %v4386 = vpack.c.b16 %v3966, %v3959
    %v4387 = vpack.c.b16 %v3967, %v3960
    %v4388 = vpack.c.b16 %v3968, %v3961
    %v4389 = vpack.c.b16 %v3969, %v3962
    %v4390 = vpack.c.b16 %v3977, %v3970
    %v4391 = vpack.c.b16 %v3978, %v3971
    %v4392 = vpack.c.b16 %v3979, %v3972
    %v4393 = vpack.c.b16 %v3980, %v3973
    %v4394 = vpack.c.b16 %v3981, %v3974
    %v4395 = vpack.c.b16 %v3982, %v3975
    %v4396 = vpack.c.b16 %v3983, %v3976
    %v4397 = vpack.c.b16 %v3991, %v3984
    %v4398 = vpack.c.b16 %v3992, %v3985
    %v4399 = vpack.c.b16 %v3993, %v3986
    %v4400 = vpack.c.b16 %v3994, %v3987
    %v4401 = vpack.c.b16 %v3995, %v3988
    %v4402 = vpack.c.b16 %v3996, %v3989
    %v4403 = vpack.c.b16 %v3997, %v3990
    %v4404 = vpack.c.b16 %v4005, %v3998
    %v4405 = vpack.c.b16 %v4006, %v3999
    %v4406 = vpack.c.b16 %v4007, %v4000
    %v4407 = vpack.c.b16 %v4008, %v4001
    %v4408 = vpack.c.b16 %v4009, %v4002
    %v4409 = vpack.c.b16 %v4010, %v4003
    %v4410 = vpack.c.b16 %v4011, %v4004
    %v4411 = vpack.c.b16 %v4019, %v4012
    %v4412 = vpack.c.b16 %v4020, %v4013
    %v4413 = vpack.c.b16 %v4021, %v4014
    %v4414 = vpack.c.b16 %v4022, %v4015
    %v4415 = vpack.c.b16 %v4023, %v4016
    %v4416 = vpack.c.b16 %v4024, %v4017
    %v4417 = vpack.c.b16 %v4025, %v4018
    %v4418 = vpack.c.b16 %v4033, %v4026
    %v4419 = vpack.c.b16 %v4034, %v4027
    %v4420 = vpack.c.b16 %v4035, %v4028
    %v4421 = vpack.c.b16 %v4036, %v4029
    %v4422 = vpack.c.b16 %v4037, %v4030
    %v4423 = vpack.c.b16 %v4038, %v4031
    %v4424 = vpack.c.b16 %v4039, %v4032
    %v4425 = vpack.c.b16 %v4047, %v4040
    %v4426 = vpack.c.b16 %v4048, %v4041
    %v4427 = vpack.c.b16 %v4049, %v4042
    %v4428 = vpack.c.b16 %v4050, %v4043
    %v4429 = vpack.c.b16 %v4051, %v4044
    %v4430 = vpack.c.b16 %v4052, %v4045
    %v4431 = vpack.c.b16 %v4053, %v4046
    %v4432 = vpack.c.b16 %v4061, %v4054
    %v4433 = vpack.c.b16 %v4062, %v4055
    %v4434 = vpack.c.b16 %v4063, %v4056
    %v4435 = vpack.c.b16 %v4064, %v4057
    %v4436 = vpack.c.b16 %v4065, %v4058
    %v4437 = vpack.c.b16 %v4066, %v4059
    %v4438 = vpack.c.b16 %v4067, %v4060
    %v4439 = vpack.c.b16 %v4075, %v4068
    %v4440 = vpack.c.b16 %v4076, %v4069
    %v4441 = vpack.c.b16 %v4077, %v4070
    %v4442 = vpack.c.b16 %v4078, %v4071
    %v4443 = vpack.c.b16 %v4079, %v4072
    %v4444 = vpack.c.b16 %v4080, %v4073
    %v4445 = vpack.c.b16 %v4081, %v4074
    %v4446 = vpack.c.b16 %v4089, %v4082
    %v4447 = vpack.c.b16 %v4090, %v4083
    %v4448 = vpack.c.b16 %v4091, %v4084
    %v4449 = vpack.c.b16 %v4092, %v4085
    %v4450 = vpack.c.b16 %v4093, %v4086
    %v4451 = vpack.c.b16 %v4094, %v4087
    %v4452 = vpack.c.b16 %v4095, %v4088
    %v4453 = vpack.c.b16 %v4103, %v4096
    %v4454 = vpack.c.b16 %v4104, %v4097
    %v4455 = vpack.c.b16 %v4105, %v4098
    %v4456 = vpack.c.b16 %v4106, %v4099
    %v4457 = vpack.c.b16 %v4107, %v4100
    %v4458 = vpack.c.b16 %v4108, %v4101
    %v4459 = vpack.c.b16 %v4109, %v4102
    %v4460 = vpack.c.b16 %v4117, %v4110
    %v4461 = vpack.c.b16 %v4118, %v4111
    %v4462 = vpack.c.b16 %v4119, %v4112
    %v4463 = vpack.c.b16 %v4120, %v4113
    %v4464 = vpack.c.b16 %v4121, %v4114
    %v4465 = vpack.c.b16 %v4122, %v4115
    %v4466 = vpack.c.b16 %v4123, %v4116
    %v4467 = vpack.c.b16 %v4131, %v4124
    %v4468 = vpack.c.b16 %v4132, %v4125
    %v4469 = vpack.c.b16 %v4133, %v4126
    %v4470 = vpack.c.b16 %v4134, %v4127
    %v4471 = vpack.c.b16 %v4135, %v4128
    %v4472 = vpack.c.b16 %v4136, %v4129
    %v4473 = vpack.c.b16 %v4137, %v4130
    %v4474 = vpack.c.b16 %v4145, %v4138
    %v4475 = vpack.c.b16 %v4146, %v4139
    %v4476 = vpack.c.b16 %v4147, %v4140
    %v4477 = vpack.c.b16 %v4148, %v4141
    %v4478 = vpack.c.b16 %v4149, %v4142
    %v4479 = vpack.c.b16 %v4150, %v4143
    %v4480 = vpack.c.b16 %v4151, %v4144
    %v4481 = vpack.c.b16 %v4159, %v4152
    %v4482 = vpack.c.b16 %v4160, %v4153
    %v4483 = vpack.c.b16 %v4161, %v4154
    %v4484 = vpack.c.b16 %v4162, %v4155
    %v4485 = vpack.c.b16 %v4163, %v4156
    %v4486 = vpack.c.b16 %v4164, %v4157
    %v4487 = vpack.c.b16 %v4165, %v4158
    %v4488 = vpack.c.b16 %v4173, %v4166
    %v4489 = vpack.c.b16 %v4174, %v4167
    %v4490 = vpack.c.b16 %v4175, %v4168
    %v4491 = vpack.c.b16 %v4176, %v4169
    %v4492 = vpack.c.b16 %v4177, %v4170
    %v4493 = vpack.c.b16 %v4178, %v4171
    %v4494 = vpack.c.b16 %v4179, %v4172
    %v4495 = vpack.c.b16 %v4187, %v4180
    %v4496 = vpack.c.b16 %v4188, %v4181
    %v4497 = vpack.c.b16 %v4189, %v4182
    %v4498 = vpack.c.b16 %v4190, %v4183
    %v4499 = vpack.c.b16 %v4191, %v4184
    %v4500 = vpack.c.b16 %v4192, %v4185
    %v4501 = vpack.c.b16 %v4193, %v4186
    %v4502 = vpack.c.b16 %v4201, %v4194
    %v4503 = vpack.c.b16 %v4202, %v4195
    %v4504 = vpack.c.b16 %v4203, %v4196
    %v4505 = vpack.c.b16 %v4204, %v4197
    %v4506 = vpack.c.b16 %v4205, %v4198
    %v4507 = vpack.c.b16 %v4206, %v4199
    %v4508 = vpack.c.b16 %v4207, %v4200
    %v4509 = vpack.c.b16 %v4215, %v4208
    %v4510 = vpack.c.b16 %v4216, %v4209
    %v4511 = vpack.c.b16 %v4217, %v4210
    %v4512 = vpack.c.b16 %v4218, %v4211
    %v4513 = vpack.c.b16 %v4219, %v4212
    %v4514 = vpack.c.b16 %v4220, %v4213
    %v4515 = vpack.c.b16 %v4221, %v4214
    %v4516 = vpack.c.b16 %v4229, %v4222
    %v4517 = vpack.c.b16 %v4230, %v4223
    %v4518 = vpack.c.b16 %v4231, %v4224
    %v4519 = vpack.c.b16 %v4232, %v4225
    %v4520 = vpack.c.b16 %v4233, %v4226
    %v4521 = vpack.c.b16 %v4234, %v4227
    %v4522 = vpack.c.b16 %v4235, %v4228
    %v4523 = vpack.c.b16 %v4243, %v4236
    %v4524 = vpack.c.b16 %v4244, %v4237
    %v4525 = vpack.c.b16 %v4245, %v4238
    %v4526 = vpack.c.b16 %v4246, %v4239
    %v4527 = vpack.c.b16 %v4247, %v4240
    %v4528 = vpack.c.b16 %v4248, %v4241
    %v4529 = vpack.c.b16 %v4249, %v4242
    %v4530 = vpack.c.b16 %v4257, %v4250
    %v4531 = vpack.c.b16 %v4258, %v4251
    %v4532 = vpack.c.b16 %v4259, %v4252
    %v4533 = vpack.c.b16 %v4260, %v4253
    %v4534 = vpack.c.b16 %v4261, %v4254
    %v4535 = vpack.c.b16 %v4262, %v4255
    %v4536 = vpack.c.b16 %v4263, %v4256
    %v4537 = vpack.c.b16 %v4271, %v4264
    %v4538 = vpack.c.b16 %v4272, %v4265
    %v4539 = vpack.c.b16 %v4273, %v4266
    %v4540 = vpack.c.b16 %v4274, %v4267
    %v4541 = vpack.c.b16 %v4275, %v4268
    %v4542 = vpack.c.b16 %v4276, %v4269
    %v4543 = vpack.c.b16 %v4277, %v4270
    %v4544 = vpack.c.b16 %v4285, %v4278
    %v4545 = vpack.c.b16 %v4286, %v4279
    %v4546 = vpack.c.b16 %v4287, %v4280
    %v4547 = vpack.c.b16 %v4288, %v4281
    %v4548 = vpack.c.b16 %v4289, %v4282
    %v4549 = vpack.c.b16 %v4290, %v4283
    %v4550 = vpack.c.b16 %v4291, %v4284
    %v4551 = vpack.c.b16 %v4299, %v4292
    %v4552 = vpack.c.b16 %v4300, %v4293
    %v4553 = vpack.c.b16 %v4301, %v4294
    %v4554 = vpack.c.b16 %v4302, %v4295
    %v4555 = vpack.c.b16 %v4303, %v4296
    %v4556 = vpack.c.b16 %v4304, %v4297
    %v4557 = vpack.c.b16 %v4305, %v4298
    %v4558 = vpack.c.b16 %v4313, %v4306
    %v4559 = vpack.c.b16 %v4314, %v4307
    %v4560 = vpack.c.b16 %v4315, %v4308
    %v4561 = vpack.c.b16 %v4316, %v4309
    %v4562 = vpack.c.b16 %v4317, %v4310
    %v4563 = vpack.c.b16 %v4318, %v4311
    %v4564 = vpack.c.b16 %v4319, %v4312
    %v4565 = vpack.c.b16 %v4327, %v4320
    %v4566 = vpack.c.b16 %v4328, %v4321
    %v4567 = vpack.c.b16 %v4329, %v4322
    %v4568 = vpack.c.b16 %v4330, %v4323
    %v4569 = vpack.c.b16 %v4331, %v4324
    %v4570 = vpack.c.b16 %v4332, %v4325
    %v4571 = vpack.c.b16 %v4333, %v4326
    %v4572 = vpack.c.b16 %v4341, %v4334
    %v4573 = vpack.c.b16 %v4342, %v4335
    %v4574 = vpack.c.b16 %v4343, %v4336
    %v4575 = vpack.c.b16 %v4344, %v4337
    %v4576 = vpack.c.b16 %v4345, %v4338
    %v4577 = vpack.c.b16 %v4346, %v4339
    %v4578 = vpack.c.b16 %v4347, %v4340
    %v4579 = vpack.c.b16 %v4355, %v4348
    %v4580 = vpack.c.b16 %v4356, %v4349
    %v4581 = vpack.c.b16 %v4357, %v4350
    %v4582 = vpack.c.b16 %v4358, %v4351
    %v4583 = vpack.c.b16 %v4359, %v4352
    %v4584 = vpack.c.b16 %v4360, %v4353
    %v4585 = vpack.c.b16 %v4361, %v4354
    %4810 = vmatprep.subr.bf16.mxu0 %v4412
    %4811 = vmatpush1.bf16.msra.mxu0 %v4411
    %4812 = vmatprep.subr.bf16.mxu0 %v4405
    %4813 = vmatpush1.bf16.msra.mxu0 %v4404
    %4814 = vmatprep.subr.bf16.mxu0 %v4398
    %4815 = vmatpush1.bf16.msra.mxu0 %v4397
    %4816 = vmatprep.subr.bf16.mxu0 %v4391
    %4817 = vmatpush1.bf16.msra.mxu0 %v4390
    %4818 = vmatprep.subr.bf16.mxu0 %v4384
    %4819 = vmatpush1.bf16.msra.mxu0 %v4383
    %4820 = vmatprep.subr.bf16.mxu0 %v4377
    %4821 = vmatpush1.bf16.msra.mxu0 %v4376
    %4822 = vmatprep.subr.bf16.mxu0 %v4370
    %4823 = vmatpush1.bf16.msra.mxu0 %v4369
    %4824 = vmatprep.subr.bf16.mxu0 %v4363
    %4825 = vmatpush1.bf16.msra.mxu0 %v4362
    %4826 = vmatprep.subr.bf16.mxu0 %v4468
    %4827 = vmatpush2.bf16.msra.mxu0 %v4467
    %4828 = vmatprep.subr.bf16.mxu0 %v4461
    %4829 = vmatpush2.bf16.msra.mxu0 %v4460
    %4830 = vmatprep.subr.bf16.mxu0 %v4454
    %4831 = vmatpush2.bf16.msra.mxu0 %v4453
    %4832 = vmatprep.subr.bf16.mxu0 %v4447
    %4833 = vmatpush2.bf16.msra.mxu0 %v4446
    %4834 = vmatprep.subr.bf16.mxu0 %v4440
    %4835 = vmatpush2.bf16.msra.mxu0 %v4439
    %4836 = vmatprep.subr.bf16.mxu0 %v4433
    %4837 = vmatpush2.bf16.msra.mxu0 %v4432
    %4838 = vmatprep.subr.bf16.mxu0 %v4426
    %4839 = vmatpush2.bf16.msra.mxu0 %v4425
    %4840 = vmatprep.subr.bf16.mxu0 %v4419
    %4841 = vmatpush2.bf16.msra.mxu0 %v4418
    %4842 = vmatprep.mubr.bf16.mxu0 %v3362
    %4843 = vmatmul.mubr.bf16.gmra.mxu0 %v3361
    %v4844 = vpop.f32.mrf.mxu0
    %v4845 = vadd.f32 %v3626, %v4844
    %v4846 = vpop.f32.mrf.mxu0
    %v4847 = vadd.f32 %v3630, %v4846
    %v4848 = vpop.f32.mrf.mxu0
    %v4849 = vpop.f32.mrf.mxu0
    %4850 = vdwg.mxu0
    %4851 = vmatprep.subr.bf16.mxu0 %v4524
    %4852 = vmatpush1.bf16.msra.mxu0 %v4523
    %4853 = vmatprep.subr.bf16.mxu0 %v4517
    %4854 = vmatpush1.bf16.msra.mxu0 %v4516
    %4855 = vmatprep.subr.bf16.mxu0 %v4510
    %4856 = vmatpush1.bf16.msra.mxu0 %v4509
    %4857 = vmatprep.subr.bf16.mxu0 %v4503
    %4858 = vmatpush1.bf16.msra.mxu0 %v4502
    %4859 = vmatprep.subr.bf16.mxu0 %v4496
    %4860 = vmatpush1.bf16.msra.mxu0 %v4495
    %4861 = vmatprep.subr.bf16.mxu0 %v4489
    %4862 = vmatpush1.bf16.msra.mxu0 %v4488
    %4863 = vmatprep.subr.bf16.mxu0 %v4482
    %4864 = vmatpush1.bf16.msra.mxu0 %v4481
    %4865 = vmatprep.subr.bf16.mxu0 %v4475
    %4866 = vmatpush1.bf16.msra.mxu0 %v4474
    %4867 = vmatprep.subr.bf16.mxu0 %v4580
    %4868 = vmatpush2.bf16.msra.mxu0 %v4579
    %4869 = vmatprep.subr.bf16.mxu0 %v4573
    %4870 = vmatpush2.bf16.msra.mxu0 %v4572
    %4871 = vmatprep.subr.bf16.mxu0 %v4566
    %4872 = vmatpush2.bf16.msra.mxu0 %v4565
    %4873 = vmatprep.subr.bf16.mxu0 %v4559
    %4874 = vmatpush2.bf16.msra.mxu0 %v4558
    %4875 = vmatprep.subr.bf16.mxu0 %v4552
    %4876 = vmatpush2.bf16.msra.mxu0 %v4551
    %4877 = vmatprep.subr.bf16.mxu0 %v4545
    %4878 = vmatpush2.bf16.msra.mxu0 %v4544
    %4879 = vmatprep.subr.bf16.mxu0 %v4538
    %4880 = vmatpush2.bf16.msra.mxu0 %v4537
    %4881 = vmatprep.subr.bf16.mxu0 %v4531
    %4882 = vmatpush2.bf16.msra.mxu0 %v4530
    %4883 = vmatprep.mubr.bf16.mxu0 %v3364
    %4884 = vmatmul.mubr.bf16.gmra.mxu0 %v3363
    %v4885 = vpop.f32.mrf.mxu0
    %v4886 = vadd.f32 %v4845, %v4885
    %v4887 = vpop.f32.mrf.mxu0
    %v4888 = vadd.f32 %v4847, %v4887
    %v4889 = vpop.f32.mrf.mxu0
    %v4890 = vpop.f32.mrf.mxu0
    %4891 = vdwg.mxu0
    %4892 = vmatprep.subr.bf16.mxu0 %v4414
    %4893 = vmatpush1.bf16.msra.mxu0 %v4413
    %4894 = vmatprep.subr.bf16.mxu0 %v4407
    %4895 = vmatpush1.bf16.msra.mxu0 %v4406
    %4896 = vmatprep.subr.bf16.mxu0 %v4400
    %4897 = vmatpush1.bf16.msra.mxu0 %v4399
    %4898 = vmatprep.subr.bf16.mxu0 %v4393
    %4899 = vmatpush1.bf16.msra.mxu0 %v4392
    %4900 = vmatprep.subr.bf16.mxu0 %v4386
    %4901 = vmatpush1.bf16.msra.mxu0 %v4385
    %4902 = vmatprep.subr.bf16.mxu0 %v4379
    %4903 = vmatpush1.bf16.msra.mxu0 %v4378
    %4904 = vmatprep.subr.bf16.mxu0 %v4372
    %4905 = vmatpush1.bf16.msra.mxu0 %v4371
    %4906 = vmatprep.subr.bf16.mxu0 %v4365
    %4907 = vmatpush1.bf16.msra.mxu0 %v4364
    %4908 = vmatprep.subr.bf16.mxu0 %v4470
    %4909 = vmatpush2.bf16.msra.mxu0 %v4469
    %4910 = vmatprep.subr.bf16.mxu0 %v4463
    %4911 = vmatpush2.bf16.msra.mxu0 %v4462
    %4912 = vmatprep.subr.bf16.mxu0 %v4456
    %4913 = vmatpush2.bf16.msra.mxu0 %v4455
    %4914 = vmatprep.subr.bf16.mxu0 %v4449
    %4915 = vmatpush2.bf16.msra.mxu0 %v4448
    %4916 = vmatprep.subr.bf16.mxu0 %v4442
    %4917 = vmatpush2.bf16.msra.mxu0 %v4441
    %4918 = vmatprep.subr.bf16.mxu0 %v4435
    %4919 = vmatpush2.bf16.msra.mxu0 %v4434
    %4920 = vmatprep.subr.bf16.mxu0 %v4428
    %4921 = vmatpush2.bf16.msra.mxu0 %v4427
    %4922 = vmatprep.subr.bf16.mxu0 %v4421
    %4923 = vmatpush2.bf16.msra.mxu0 %v4420
    %4924 = vmatprep.mubr.bf16.mxu0 %v3362
    %4925 = vmatmul.mubr.bf16.gmra.mxu0 %v3361
    %v4926 = vpop.f32.mrf.mxu0
    %v4927 = vadd.f32 %v3634, %v4926
    %v4928 = vpop.f32.mrf.mxu0
    %v4929 = vadd.f32 %v3638, %v4928
    %v4930 = vpop.f32.mrf.mxu0
    %v4931 = vpop.f32.mrf.mxu0
    %4932 = vdwg.mxu0
    %4933 = vmatprep.subr.bf16.mxu0 %v4526
    %4934 = vmatpush1.bf16.msra.mxu0 %v4525
    %4935 = vmatprep.subr.bf16.mxu0 %v4519
    %4936 = vmatpush1.bf16.msra.mxu0 %v4518
    %4937 = vmatprep.subr.bf16.mxu0 %v4512
    %4938 = vmatpush1.bf16.msra.mxu0 %v4511
    %4939 = vmatprep.subr.bf16.mxu0 %v4505
    %4940 = vmatpush1.bf16.msra.mxu0 %v4504
    %4941 = vmatprep.subr.bf16.mxu0 %v4498
    %4942 = vmatpush1.bf16.msra.mxu0 %v4497
    %4943 = vmatprep.subr.bf16.mxu0 %v4491
    %4944 = vmatpush1.bf16.msra.mxu0 %v4490
    %4945 = vmatprep.subr.bf16.mxu0 %v4484
    %4946 = vmatpush1.bf16.msra.mxu0 %v4483
    %4947 = vmatprep.subr.bf16.mxu0 %v4477
    %4948 = vmatpush1.bf16.msra.mxu0 %v4476
    %4949 = vmatprep.subr.bf16.mxu0 %v4582
    %4950 = vmatpush2.bf16.msra.mxu0 %v4581
    %4951 = vmatprep.subr.bf16.mxu0 %v4575
    %4952 = vmatpush2.bf16.msra.mxu0 %v4574
    %4953 = vmatprep.subr.bf16.mxu0 %v4568
    %4954 = vmatpush2.bf16.msra.mxu0 %v4567
    %4955 = vmatprep.subr.bf16.mxu0 %v4561
    %4956 = vmatpush2.bf16.msra.mxu0 %v4560
    %4957 = vmatprep.subr.bf16.mxu0 %v4554
    %4958 = vmatpush2.bf16.msra.mxu0 %v4553
    %4959 = vmatprep.subr.bf16.mxu0 %v4547
    %4960 = vmatpush2.bf16.msra.mxu0 %v4546
    %4961 = vmatprep.subr.bf16.mxu0 %v4540
    %4962 = vmatpush2.bf16.msra.mxu0 %v4539
    %4963 = vmatprep.subr.bf16.mxu0 %v4533
    %4964 = vmatpush2.bf16.msra.mxu0 %v4532
    %4965 = vmatprep.mubr.bf16.mxu0 %v3364
    %4966 = vmatmul.mubr.bf16.gmra.mxu0 %v3363
    %v4967 = vpop.f32.mrf.mxu0
    %v4968 = vadd.f32 %v4927, %v4967
    %v4969 = vpop.f32.mrf.mxu0
    %v4970 = vadd.f32 %v4929, %v4969
    %v4971 = vpop.f32.mrf.mxu0
    %v4972 = vpop.f32.mrf.mxu0
    %4973 = vdwg.mxu0
    %4974 = vmatprep.subr.bf16.mxu0 %v4416
    %4975 = vmatpush1.bf16.msra.mxu0 %v4415
    %4976 = vmatprep.subr.bf16.mxu0 %v4409
    %4977 = vmatpush1.bf16.msra.mxu0 %v4408
    %4978 = vmatprep.subr.bf16.mxu0 %v4402
    %4979 = vmatpush1.bf16.msra.mxu0 %v4401
    %4980 = vmatprep.subr.bf16.mxu0 %v4395
    %4981 = vmatpush1.bf16.msra.mxu0 %v4394
    %4982 = vmatprep.subr.bf16.mxu0 %v4388
    %4983 = vmatpush1.bf16.msra.mxu0 %v4387
    %4984 = vmatprep.subr.bf16.mxu0 %v4381
    %4985 = vmatpush1.bf16.msra.mxu0 %v4380
    %4986 = vmatprep.subr.bf16.mxu0 %v4374
    %4987 = vmatpush1.bf16.msra.mxu0 %v4373
    %4988 = vmatprep.subr.bf16.mxu0 %v4367
    %4989 = vmatpush1.bf16.msra.mxu0 %v4366
    %4990 = vmatprep.subr.bf16.mxu0 %v4472
    %4991 = vmatpush2.bf16.msra.mxu0 %v4471
    %4992 = vmatprep.subr.bf16.mxu0 %v4465
    %4993 = vmatpush2.bf16.msra.mxu0 %v4464
    %4994 = vmatprep.subr.bf16.mxu0 %v4458
    %4995 = vmatpush2.bf16.msra.mxu0 %v4457
    %4996 = vmatprep.subr.bf16.mxu0 %v4451
    %4997 = vmatpush2.bf16.msra.mxu0 %v4450
    %4998 = vmatprep.subr.bf16.mxu0 %v4444
    %4999 = vmatpush2.bf16.msra.mxu0 %v4443
    %5000 = vmatprep.subr.bf16.mxu0 %v4437
    %5001 = vmatpush2.bf16.msra.mxu0 %v4436
    %5002 = vmatprep.subr.bf16.mxu0 %v4430
    %5003 = vmatpush2.bf16.msra.mxu0 %v4429
    %5004 = vmatprep.subr.bf16.mxu0 %v4423
    %5005 = vmatpush2.bf16.msra.mxu0 %v4422
    %5006 = vmatprep.mubr.bf16.mxu0 %v3362
    %5007 = vmatmul.mubr.bf16.gmra.mxu0 %v3361
    %v5008 = vpop.f32.mrf.mxu0
    %v5009 = vadd.f32 %v3642, %v5008
    %v5010 = vpop.f32.mrf.mxu0
    %v5011 = vadd.f32 %v3646, %v5010
    %v5012 = vpop.f32.mrf.mxu0
    %v5013 = vpop.f32.mrf.mxu0
    %5014 = vdwg.mxu0
    %5015 = vmatprep.subr.bf16.mxu0 %v4528
    %5016 = vmatpush1.bf16.msra.mxu0 %v4527
    %5017 = vmatprep.subr.bf16.mxu0 %v4521
    %5018 = vmatpush1.bf16.msra.mxu0 %v4520
    %5019 = vmatprep.subr.bf16.mxu0 %v4514
    %5020 = vmatpush1.bf16.msra.mxu0 %v4513
    %5021 = vmatprep.subr.bf16.mxu0 %v4507
    %5022 = vmatpush1.bf16.msra.mxu0 %v4506
    %5023 = vmatprep.subr.bf16.mxu0 %v4500
    %5024 = vmatpush1.bf16.msra.mxu0 %v4499
    %5025 = vmatprep.subr.bf16.mxu0 %v4493
    %5026 = vmatpush1.bf16.msra.mxu0 %v4492
    %5027 = vmatprep.subr.bf16.mxu0 %v4486
    %5028 = vmatpush1.bf16.msra.mxu0 %v4485
    %5029 = vmatprep.subr.bf16.mxu0 %v4479
    %5030 = vmatpush1.bf16.msra.mxu0 %v4478
    %5031 = vmatprep.subr.bf16.mxu0 %v4584
    %5032 = vmatpush2.bf16.msra.mxu0 %v4583
    %5033 = vmatprep.subr.bf16.mxu0 %v4577
    %5034 = vmatpush2.bf16.msra.mxu0 %v4576
    %5035 = vmatprep.subr.bf16.mxu0 %v4570
    %5036 = vmatpush2.bf16.msra.mxu0 %v4569
    %5037 = vmatprep.subr.bf16.mxu0 %v4563
    %5038 = vmatpush2.bf16.msra.mxu0 %v4562
    %5039 = vmatprep.subr.bf16.mxu0 %v4556
    %5040 = vmatpush2.bf16.msra.mxu0 %v4555
    %5041 = vmatprep.subr.bf16.mxu0 %v4549
    %5042 = vmatpush2.bf16.msra.mxu0 %v4548
    %5043 = vmatprep.subr.bf16.mxu0 %v4542
    %5044 = vmatpush2.bf16.msra.mxu0 %v4541
    %5045 = vmatprep.subr.bf16.mxu0 %v4535
    %5046 = vmatpush2.bf16.msra.mxu0 %v4534
    %5047 = vmatprep.mubr.bf16.mxu0 %v3364
    %5048 = vmatmul.mubr.bf16.gmra.mxu0 %v3363
    %v5049 = vpop.f32.mrf.mxu0
    %v5050 = vadd.f32 %v5009, %v5049
    %v5051 = vpop.f32.mrf.mxu0
    %v5052 = vadd.f32 %v5011, %v5051
    %v5053 = vpop.f32.mrf.mxu0
    %v5054 = vpop.f32.mrf.mxu0
    %5055 = vdwg.mxu0
    %5056 = vmatprep.subr.bf16.mxu0 0
    %5057 = vmatpush1.bf16.msra.mxu0 %v4417
    %5058 = vmatprep.subr.bf16.mxu0 0
    %5059 = vmatpush1.bf16.msra.mxu0 %v4410
    %5060 = vmatprep.subr.bf16.mxu0 0
    %5061 = vmatpush1.bf16.msra.mxu0 %v4403
    %5062 = vmatprep.subr.bf16.mxu0 0
    %5063 = vmatpush1.bf16.msra.mxu0 %v4396
    %5064 = vmatprep.subr.bf16.mxu0 0
    %5065 = vmatpush1.bf16.msra.mxu0 %v4389
    %5066 = vmatprep.subr.bf16.mxu0 0
    %5067 = vmatpush1.bf16.msra.mxu0 %v4382
    %5068 = vmatprep.subr.bf16.mxu0 0
    %5069 = vmatpush1.bf16.msra.mxu0 %v4375
    %5070 = vmatprep.subr.bf16.mxu0 0
    %5071 = vmatpush1.bf16.msra.mxu0 %v4368
    %5072 = vmatprep.subr.bf16.mxu0 0
    %5073 = vmatpush2.bf16.msra.mxu0 %v4473
    %5074 = vmatprep.subr.bf16.mxu0 0
    %5075 = vmatpush2.bf16.msra.mxu0 %v4466
    %5076 = vmatprep.subr.bf16.mxu0 0
    %5077 = vmatpush2.bf16.msra.mxu0 %v4459
    %5078 = vmatprep.subr.bf16.mxu0 0
    %5079 = vmatpush2.bf16.msra.mxu0 %v4452
    %5080 = vmatprep.subr.bf16.mxu0 0
    %5081 = vmatpush2.bf16.msra.mxu0 %v4445
    %5082 = vmatprep.subr.bf16.mxu0 0
    %5083 = vmatpush2.bf16.msra.mxu0 %v4438
    %5084 = vmatprep.subr.bf16.mxu0 0
    %5085 = vmatpush2.bf16.msra.mxu0 %v4431
    %5086 = vmatprep.subr.bf16.mxu0 0
    %5087 = vmatpush2.bf16.msra.mxu0 %v4424
    %5088 = vmatprep.mubr.bf16.mxu0 %v3362
    %5089 = vmatmul.mubr.bf16.gmra.mxu0 %v3361
    %v5090 = vpop.f32.mrf.mxu0
    %v5091 = vadd.f32 %v3650, %v5090
    %v5092 = vpop.f32.mrf.mxu0
    %v5093 = vpop.f32.mrf.mxu0
    %v5094 = vpop.f32.mrf.mxu0
    %5095 = vdwg.mxu0
    %5096 = vmatprep.subr.bf16.mxu0 0
    %5097 = vmatpush1.bf16.msra.mxu0 %v4529
    %5098 = vmatprep.subr.bf16.mxu0 0
    %5099 = vmatpush1.bf16.msra.mxu0 %v4522
    %5100 = vmatprep.subr.bf16.mxu0 0
    %5101 = vmatpush1.bf16.msra.mxu0 %v4515
    %5102 = vmatprep.subr.bf16.mxu0 0
    %5103 = vmatpush1.bf16.msra.mxu0 %v4508
    %5104 = vmatprep.subr.bf16.mxu0 0
    %5105 = vmatpush1.bf16.msra.mxu0 %v4501
    %5106 = vmatprep.subr.bf16.mxu0 0
    %5107 = vmatpush1.bf16.msra.mxu0 %v4494
    %5108 = vmatprep.subr.bf16.mxu0 0
    %5109 = vmatpush1.bf16.msra.mxu0 %v4487
    %5110 = vmatprep.subr.bf16.mxu0 0
    %5111 = vmatpush1.bf16.msra.mxu0 %v4480
    %5112 = vmatprep.subr.bf16.mxu0 0
    %5113 = vmatpush2.bf16.msra.mxu0 %v4585
    %5114 = vmatprep.subr.bf16.mxu0 0
    %5115 = vmatpush2.bf16.msra.mxu0 %v4578
    %5116 = vmatprep.subr.bf16.mxu0 0
    %5117 = vmatpush2.bf16.msra.mxu0 %v4571
    %5118 = vmatprep.subr.bf16.mxu0 0
    %5119 = vmatpush2.bf16.msra.mxu0 %v4564
    %5120 = vmatprep.subr.bf16.mxu0 0
    %5121 = vmatpush2.bf16.msra.mxu0 %v4557
    %5122 = vmatprep.subr.bf16.mxu0 0
    %5123 = vmatpush2.bf16.msra.mxu0 %v4550
    %5124 = vmatprep.subr.bf16.mxu0 0
    %5125 = vmatpush2.bf16.msra.mxu0 %v4543
    %5126 = vmatprep.subr.bf16.mxu0 0
    %5127 = vmatpush2.bf16.msra.mxu0 %v4536
    %5128 = vmatprep.mubr.bf16.mxu0 %v3364
    %5129 = vmatmul.mubr.bf16.gmra.mxu0 %v3363
    %v5130 = vpop.f32.mrf.mxu0
    %v5131 = vadd.f32 %v5091, %v5130
    %v5132 = vpop.f32.mrf.mxu0
    %v5133 = vpop.f32.mrf.mxu0
    %v5134 = vpop.f32.mrf.mxu0
    %5135 = vdwg.mxu0
    %v5136 = vtanh.pop %v4886
    %v5137 = vtanh.pop %v4888
    %v5138 = vtanh.pop %v4968
    %v5139 = vtanh.pop %v4970
    %v5140 = vtanh.pop %v5050
    %v5141 = vtanh.pop %v5052
    %v5142 = vtanh.pop %v5131
    %v5143 = vpack.c.bf16 %v5136, %v5136
    %v5144 = vpack.c.bf16 %v5137, %v5137
    %v5145 = vpack.c.bf16 %v5138, %v5138
    %v5146 = vpack.c.bf16 %v5139, %v5139
    %v5147 = vpack.c.bf16 %v5140, %v5140
    %v5148 = vpack.c.bf16 %v5141, %v5141
    %v5149 = vpack.c.bf16 %v5142, %v5142
    %v5157 = vunpack.c.l.b16 %v5143
    %v5158 = vunpack.c.l.b16 %v5144
    %v5159 = vunpack.c.l.b16 %v5145
    %v5160 = vunpack.c.l.b16 %v5146
    %v5161 = vunpack.c.l.b16 %v5147
    %v5162 = vunpack.c.l.b16 %v5148
    %v5163 = vunpack.c.l.b16 %v5149
    %v5164 = vpack.c.b16 %v5158, %v5157
    %v5165 = vpack.c.b16 %v5160, %v5159
    %v5166 = vpack.c.b16 %v5162, %v5161
    %v5167 = vpack.c.b16 %v5163, %v5163
    %5172 = vst [vmem:[%s15] sm:$0xff] %v5164
    %5173 = vst [vmem:[%s15 + $0x8] sm:$0xff] %v5165
    %5174 = vst [vmem:[%s15 + $0x10] sm:$0xff] %v5166
    %5175 = vst [vmem:[%s15 + $0x18] sm:$0xf] %v5167
    // Predicated region
    $region86: #{cvae_forward.1} parent=1 // pred_check
      _
    $region87: #{cvae_forward.1} parent=1 // pred_check_branch
      %5177 = sbr.rel (0) target = $region89
    $region88: #{cvae_forward.1} parent=1 // pred_region
      _
    $region89: #{cvae_forward.1} parent=1 // pred_fallthru
      _
    // Predicated region
    $region90: #{cvae_forward.1} parent=1 // pred_check
      _
    $region91: #{cvae_forward.1} parent=1 // pred_check_branch
      %5179 = sbr.rel (0) target = $region93
    $region92: #{cvae_forward.1} parent=1 // pred_region
      _
    $region93: #{cvae_forward.1} parent=1 // pred_fallthru
      _
    // Predicated region
    $region94: #{cvae_forward.1} parent=1 // pred_check
      _
    $region95: #{cvae_forward.1} parent=1 // pred_check_branch
      %5181 = sbr.rel (0) target = $region97
    $region96: #{cvae_forward.1} parent=1 // pred_region
      _
    $region97: #{cvae_forward.1} parent=1 // pred_fallthru
      _
    // Predicated region
    $region98: #{cvae_forward.1} parent=1 // pred_check
      _
    $region99: #{cvae_forward.1} parent=1 // pred_check_branch
      %5183 = sbr.rel (0) target = $region101
    $region100: #{cvae_forward.1} parent=1 // pred_region
      _
    $region101: #{cvae_forward.1} parent=1 // pred_fallthru
      _
    %5184 = vsyncpa [#allocation3], 1
    %5185 = vsyncpa [#allocation5], 1
    %5186 = vsyncpa [#allocation8], 1
    %5187 = vsyncpa [#allocation11], 1

</llo_original>
